<compile_context>
chip_gen: v7x
topology: tpu7x:2x2x1
jax: 0.10.0
libtpu: 0.0.40
codegen_flags: <defaults>
</compile_context>

<pallas_src>
import functools
import math

import numpy as np
import jax
import jax.numpy as jnp
from jax import lax
from jax.experimental import pallas as pl
from jax.experimental.pallas import tpu as pltpu

F32 = jnp.float32
BF16 = jnp.bfloat16
LN_EPS = 1e-5          # PyTorch LayerNorm / TransformerEncoderLayer default
NEG_INF = -1e30        # python float: must NOT be a jnp array (const capture)
LANE = 128             # lane width for lane-dense (padded) outputs


def _layernorm(x, gamma, beta):
    mu = jnp.mean(x, axis=-1, keepdims=True)
    var = jnp.mean((x - mu) ** 2, axis=-1, keepdims=True)
    return (x - mu) * lax.rsqrt(var + LN_EPS) * gamma + beta


def _shift_rows(x, direction):
    """x shifted by one row along axis 0 with zero fill.

    Implemented as a sublane concat of traced slices (no halo scratch, no
    unaligned pl.ds starts)."""
    zero = jnp.zeros_like(x[:1])
    if direction > 0:            # result[t] = x[t-1]
        return jnp.concatenate([zero, x[:-1]], axis=0)
    else:                        # result[t] = x[t+1]
        return jnp.concatenate([x[1:], zero], axis=0)


def _duration_head(x, dw1, db1, dg1, dbe1, dw2, db2, dg2, dbe2, dwl, dbl):
    """DurationPredictor on a VMEM-resident [T, C] activation.

    conv1d(k=3, p=1) == one [T, 3C] x [3C, F] matmul over the shifted concat
    (tap order: x[t-1], x[t], x[t+1]); triples K for MXU occupancy."""
    xc = jnp.concatenate([_shift_rows(x, +1), x, _shift_rows(x, -1)],
                         axis=-1).astype(BF16)
    h = jnp.dot(xc, dw1[...], preferred_element_type=F32) + db1[...]
    h = jnp.maximum(_layernorm(h, dg1[...], dbe1[...]), 0.0)

    hc = jnp.concatenate([_shift_rows(h, +1), h, _shift_rows(h, -1)],
                         axis=-1).astype(BF16)
    h2 = jnp.dot(hc, dw2[...], preferred_element_type=F32) + db2[...]
    h2 = jnp.maximum(_layernorm(h2, dg2[...], dbe2[...]), 0.0)

    # lane-dense (128-wide) head; only column 0 is the real log-duration
    return jnp.dot(h2.astype(BF16), dwl[...],
                   preferred_element_type=F32) + dbl[...]


# ---------------------------------------------------------------------------
# Fused transformer stack: PE add + L post-norm encoder layers
#   + (encoder) fused DurationPredictor epilogue
#   + (decoder) fused mel projection epilogue.
# One batch element per grid step; weights stacked [L, ...]; the [T, D]
# activation stays resident across layers inside the kernel.
# ---------------------------------------------------------------------------
def _stack_kernel(*refs, n_layers, n_heads, use_mask, project, with_dp):
    vlen_ref, x_ref, pe_ref = refs[0], refs[1], refs[2]
    idx = 3
    (wqkv_ref, bqkv_ref, wo_ref, bo_ref,
     g1_ref, b1_ref, wff1_ref, bff1_ref, wff2_ref, bff2_ref,
     g2_ref, b2_ref) = refs[idx:idx + 12]
    idx += 12
    if project:
        wp_ref, bp_ref = refs[idx:idx + 2]
        idx += 2
    if with_dp:
        dp_refs = refs[idx:idx + 10]
        idx += 10
    out_refs = refs[idx:]

    T, D = x_ref.shape[1], x_ref.shape[2]
    H = n_heads
    hd = D // H

    # Fused positional-encoding add (feeds layer 0).
    x0 = x_ref[0] + pe_ref[...]                          # [T, D] f32

    if use_mask:
        # Bucket-padding positions (>= valid_len) never act as keys.
        valid_len = vlen_ref[0]
        col = lax.broadcasted_iota(jnp.int32, (1, T, T), 2)
        key_mask = col < valid_len                        # [1, T, T] (bcast over H)

    dn_qk = (((2,), (2,)), ((0,), (0,)))   # [H,T,hd] x [H,S,hd] -> [H,T,S]
    dn_pv = (((2,), (1,)), ((0,), (0,)))   # [H,T,S]  x [H,S,hd] -> [H,T,hd]

    def layer(l, x):
        xb = x.astype(BF16)
        # Fused Q/K/V projection: one [T,D]x[D,3D] matmul (1/sqrt(hd) folded
        # into the Q columns at init).
        qkv = jnp.dot(xb, wqkv_ref[l], preferred_element_type=F32) + bqkv_ref[l]
        q = jnp.swapaxes(qkv[:, :D].reshape(T, H, hd), 0, 1).astype(BF16)
        k = jnp.swapaxes(qkv[:, D:2 * D].reshape(T, H, hd), 0, 1).astype(BF16)
        v = jnp.swapaxes(qkv[:, 2 * D:].reshape(T, H, hd), 0, 1).astype(BF16)

        s = lax.dot_general(q, k, dn_qk, preferred_element_type=F32)  # [H,T,T]
        if use_mask:
            s = jnp.where(key_mask, s, NEG_INF)
        s = s - jnp.max(s, axis=-1, keepdims=True)
        p = jnp.exp(s)
        p = p / jnp.sum(p, axis=-1, keepdims=True)        # exact softmax denom

        o = lax.dot_general(p.astype(BF16), v, dn_pv,
                            preferred_element_type=F32)   # [H, T, hd]
        o2 = jnp.swapaxes(o, 0, 1).reshape(T, D).astype(BF16)
        attn = jnp.dot(o2, wo_ref[l], preferred_element_type=F32) + bo_ref[l]

        h1 = _layernorm(x + attn, g1_ref[l], b1_ref[l])
        f = jnp.dot(h1.astype(BF16), wff1_ref[l],
                    preferred_element_type=F32) + bff1_ref[l]
        f = jnp.maximum(f, 0.0)
        f = jnp.dot(f.astype(BF16), wff2_ref[l],
                    preferred_element_type=F32) + bff2_ref[l]
        return _layernorm(h1 + f, g2_ref[l], b2_ref[l])

    # Layers are serially dependent -> no unrolling (keeps code size / live
    # ranges bounded for real layer counts).
    x_out = lax.fori_loop(0, n_layers, layer, x0)

    if with_dp:
        out_refs[0][0] = x_out                            # encoder hidden states
        out_refs[1][0] = _duration_head(x_out, *dp_refs)  # [T, LANE] log-durations
    elif project:
        out_refs[0][0] = (jnp.dot(x_out.astype(BF16), wp_ref[...],
                                  preferred_element_type=F32) + bp_ref[...])
    else:
        out_refs[0][0] = x_out


def transformer_stack(x, pe, valid_len, stack, *, n_heads, proj=None, dp=None):
    B, T, D = x.shape
    valid_len = int(valid_len)
    use_mask = valid_len < T
    project = proj is not None
    with_dp = dp is not None
    vlen = jnp.asarray([valid_len], dtype=jnp.int32)

    weight_args = [stack['wqkv'], stack['bqkv'], stack['wo'], stack['bo'],
                   stack['g1'], stack['b1'],
                   stack['wff1'], stack['bff1'], stack['wff2'], stack['bff2'],
                   stack['g2'], stack['b2']]
    if project:
        weight_args += [proj[0], proj[1]]
    if with_dp:
        weight_args += [dp['w1'], dp['b1'], dp['g1'], dp['be1'],
                        dp['w2'], dp['b2'], dp['g2'], dp['be2'],
                        dp['wl'], dp['bl']]

    in_specs = [pl.BlockSpec((1, T, D), lambda b, vl: (b, 0, 0)),
                pl.BlockSpec((T, D), lambda b, vl: (0, 0))]
    for a in weight_args:
        # Constant block index across the grid -> single-buffer the weights
        # (no dead 2x VMEM from default double-buffering).
        in_specs.append(pl.BlockSpec(a.shape,
                                     lambda b, vl, _nd=a.ndim: (0,) * _nd,
                                     pipeline_mode=pl.Buffered(1)))

    if with_dp:
        out_shape = (jax.ShapeDtypeStruct((B, T, D), F32),
                     jax.ShapeDtypeStruct((B, T, LANE), F32))
        out_specs = (pl.BlockSpec((1, T, D), lambda b, vl: (b, 0, 0)),
                     pl.BlockSpec((1, T, LANE), lambda b, vl: (b, 0, 0)))
    elif project:
        P = proj[0].shape[1]
        out_shape = jax.ShapeDtypeStruct((B, T, P), F32)
        out_specs = pl.BlockSpec((1, T, P), lambda b, vl: (b, 0, 0))
    else:
        out_shape = jax.ShapeDtypeStruct((B, T, D), F32)
        out_specs = pl.BlockSpec((1, T, D), lambda b, vl: (b, 0, 0))

    n_layers = stack['wqkv'].shape[0]
    kernel = functools.partial(_stack_kernel, n_layers=n_layers,
                               n_heads=n_heads, use_mask=use_mask,
                               project=project, with_dp=with_dp)
    return pl.pallas_call(
        kernel,
        out_shape=out_shape,
        grid_spec=pltpu.PrefetchScalarGridSpec(
            num_scalar_prefetch=1,
            grid=(B,),
            in_specs=in_specs,
            out_specs=out_specs),
        compiler_params=pltpu.CompilerParams(
            dimension_semantics=("parallel",),
            vmem_limit_bytes=64 * 1024 * 1024),
    )(vlen, x, pe, *weight_args)


# ---------------------------------------------------------------------------
# Parameters / positional encoding (deterministic, synthetic)
# ---------------------------------------------------------------------------
def make_pe(max_len, d_model):
    pos = np.arange(max_len, dtype=np.float32)[:, None]
    div = np.exp(np.arange(0, d_model, 2, dtype=np.float32)
                 * -(math.log(10000.0) / d_model))
    pe = np.zeros((max_len, d_model), np.float32)
    pe[:, 0::2] = np.sin(pos * div)
    pe[:, 1::2] = np.cos(pos * div)
    return jnp.asarray(pe)


def init_params(key, vocab_size, d_model, n_heads, num_layers, mel_bins,
                filter_size, ff_mult=4):
    keys = iter(jax.random.split(key, 64))
    hd = d_model // n_heads
    ff = d_model * ff_mult
    scale = 1.0 / math.sqrt(hd)

    def nrm_f32(shape, s=0.02):
        return jax.random.normal(next(keys), shape, dtype=F32) * s

    def nrm(shape, s=0.02):
        return nrm_f32(shape, s).astype(BF16)

    def zeros(shape):
        return jnp.zeros(shape, F32)

    def ones(shape):
        return jnp.ones(shape, F32)

    def stack():
        L = num_layers
        # 1/sqrt(hd) attention scale folded into the Q projection weights
        # (bias is zero, so nothing else to fold).
        wq = nrm_f32((L, d_model, d_model)) * scale
        wk = nrm_f32((L, d_model, d_model))
        wv = nrm_f32((L, d_model, d_model))
        return dict(
            wqkv=jnp.concatenate([wq, wk, wv], axis=-1).astype(BF16),  # [L,D,3D]
            bqkv=zeros((L, 1, 3 * d_model)),
            wo=nrm((L, d_model, d_model)), bo=zeros((L, 1, d_model)),
            g1=ones((L, 1, d_model)), b1=zeros((L, 1, d_model)),
            wff1=nrm((L, d_model, ff)), bff1=zeros((L, 1, ff)),
            wff2=nrm((L, ff, d_model)), bff2=zeros((L, 1, d_model)),
            g2=ones((L, 1, d_model)), b2=zeros((L, 1, d_model)),
        )

    # Lane-dense padded heads (extra columns are zero; sliced off outside).
    mel_w = nrm_f32((d_model, mel_bins))
    mel_w_pad = jnp.zeros((d_model, LANE), F32).at[:, :mel_bins].set(mel_w)
    wl = nrm_f32((filter_size, 1))
    wl_pad = jnp.zeros((filter_size, LANE), F32).at[:, :1].set(wl)

    return dict(
        embedding=nrm_f32((vocab_size, d_model), 0.1),
        encoder=stack(),
        decoder=stack(),
        dp=dict(
            # conv weights pre-packed as [3*C_in, F] (tap order t-1, t, t+1)
            w1=nrm((3 * d_model, filter_size)), b1=zeros((1, filter_size)),
            g1=ones((1, filter_size)), be1=zeros((1, filter_size)),
            w2=nrm((3 * filter_size, filter_size)), b2=zeros((1, filter_size)),
            g2=ones((1, filter_size)), be2=zeros((1, filter_size)),
            wl=wl_pad.astype(BF16), bl=zeros((1, LANE)),
        ),
        mel_w_pad=mel_w_pad.astype(BF16), mel_b_pad=zeros((1, LANE)),
        mel_bins=mel_bins,
    )


# ---------------------------------------------------------------------------
# Full forward
# ---------------------------------------------------------------------------
def fastspeech2_forward(params, phoneme_ids, pe, n_heads):
    B, T = phoneme_ids.shape
    mel_bins = params['mel_bins']

    x = params['embedding'][phoneme_ids]              # XLA glue: embedding gather

    # Encoder stack + fused DurationPredictor epilogue (x_enc stays in VMEM).
    x_enc, log_dur_pad = transformer_stack(
        x, pe[:T], T, params['encoder'], n_heads=n_heads, dp=params['dp'])
    log_dur = log_dur_pad[..., 0]                     # [B, T]

    durations = jnp.maximum(jnp.round(jnp.exp(log_dur) - 1.0), 1.0
                            ).astype(jnp.int32)       # TODO(synk): torch uses int64

    # LengthRegulator: repeat indices computed on device (cumsum + comparison
    # gather).  The decoder length is bucketed to a multiple of 16; bucket
    # padding frames are masked out of attention via valid_len so results
    # match the un-bucketed reference (PyTorch applies no key mask below
    # max_len, so none is applied there either).
    # TODO(synk): the data-dependent output length needs one host scalar sync.
    cum = jnp.cumsum(durations, axis=1)               # [B, T]
    total = cum[:, -1]                                # [B]
    max_len = int(jax.device_get(jnp.max(total)))
    T_out = max(16, ((max_len + 15) // 16) * 16)
    pos = jnp.arange(T_out, dtype=jnp.int32)
    idx = jnp.sum((cum[:, None, :] <= pos[None, :, None]).astype(jnp.int32),
                  axis=-1)
    idx = jnp.minimum(idx, T - 1)                     # [B, T_out]
    frame_mask = (pos[None, :] < total[:, None]).astype(F32)   # [B, T_out]
    x_reg = jnp.take_along_axis(x_enc, idx[..., None], axis=1) \
        * frame_mask[..., None]

    # Decoder stack + fused mel projection (lane-dense, padded to 128).
    mel_pad = transformer_stack(
        x_reg, pe[:T_out], max_len, params['decoder'], n_heads=n_heads,
        proj=(params['mel_w_pad'], params['mel_b_pad']))       # [B, T_out, 128]
    mel = mel_pad[:, :max_len, :mel_bins]
    return mel, durations


if __name__ == "__main__":
    vocab_size, d_model, n_heads, num_layers = 20, 32, 2, 2
    mel_bins, filter_size = 16, 64
    B, T = 2, 8

    key = jax.random.PRNGKey(0)
    pkey, ikey = jax.random.split(key)
    params = init_params(pkey, vocab_size, d_model, n_heads, num_layers,
                         mel_bins, filter_size)
    phoneme_ids = jax.random.randint(ikey, (B, T), 0, vocab_size,
                                     dtype=jnp.int32)
    pe = make_pe(1000, d_model)

    mel, durations = fastspeech2_forward(params, phoneme_ids, pe, n_heads)
    jax.block_until_ready(mel)
    jax.block_until_ready(durations)
    assert mel.ndim == 3 and mel.shape[0] == B and mel.shape[2] == mel_bins
    assert durations.shape == (B, T)
    assert bool(jnp.isfinite(mel).all())
    print("KERNEL_OK")
</pallas_src>

<mosaic_0001>
module attributes {stable_mosaic.version = 11 : i64} {
  func.func @_stack_kernel(%arg0: i32, %arg1: memref<1xi32, #tpu.memory_space<smem>>, %arg2: memref<1x8x32xf32, #tpu.memory_space<vmem>>, %arg3: memref<8x32xf32, #tpu.memory_space<vmem>>, %arg4: memref<2x32x96xbf16, #tpu.memory_space<vmem>>, %arg5: memref<2x1x96xf32, #tpu.memory_space<vmem>>, %arg6: memref<2x32x32xbf16, #tpu.memory_space<vmem>>, %arg7: memref<2x1x32xf32, #tpu.memory_space<vmem>>, %arg8: memref<2x1x32xf32, #tpu.memory_space<vmem>>, %arg9: memref<2x1x32xf32, #tpu.memory_space<vmem>>, %arg10: memref<2x32x128xbf16, #tpu.memory_space<vmem>>, %arg11: memref<2x1x128xf32, #tpu.memory_space<vmem>>, %arg12: memref<2x128x32xbf16, #tpu.memory_space<vmem>>, %arg13: memref<2x1x32xf32, #tpu.memory_space<vmem>>, %arg14: memref<2x1x32xf32, #tpu.memory_space<vmem>>, %arg15: memref<2x1x32xf32, #tpu.memory_space<vmem>>, %arg16: memref<96x64xbf16, #tpu.memory_space<vmem>>, %arg17: memref<1x64xf32, #tpu.memory_space<vmem>>, %arg18: memref<1x64xf32, #tpu.memory_space<vmem>>, %arg19: memref<1x64xf32, #tpu.memory_space<vmem>>, %arg20: memref<192x64xbf16, #tpu.memory_space<vmem>>, %arg21: memref<1x64xf32, #tpu.memory_space<vmem>>, %arg22: memref<1x64xf32, #tpu.memory_space<vmem>>, %arg23: memref<1x64xf32, #tpu.memory_space<vmem>>, %arg24: memref<64x128xbf16, #tpu.memory_space<vmem>>, %arg25: memref<1x128xf32, #tpu.memory_space<vmem>>, %arg26: memref<1x8x32xf32, #tpu.memory_space<vmem>>, %arg27: memref<1x8x128xf32, #tpu.memory_space<vmem>>) attributes {dimension_semantics = [#tpu.dimension_semantics<parallel>], iteration_bounds = array<i64: 2>, scalar_prefetch = 1 : i64, scratch_operands = 0 : i64, tpu.core_type = #tpu.core_type<tc>, window_params = [{transform_indices = @transform_0, window_bounds = array<i64: 1, 8, 32>}, {pipeline_mode = #tpu.pipeline_mode<synchronous>, transform_indices = @transform_1, window_bounds = array<i64: 8, 32>}, {pipeline_mode = #tpu.pipeline_mode<synchronous>, transform_indices = @transform_2, window_bounds = array<i64: 2, 32, 96>}, {pipeline_mode = #tpu.pipeline_mode<synchronous>, transform_indices = @transform_3, window_bounds = array<i64: 2, 1, 96>}, {pipeline_mode = #tpu.pipeline_mode<synchronous>, transform_indices = @transform_4, window_bounds = array<i64: 2, 32, 32>}, {pipeline_mode = #tpu.pipeline_mode<synchronous>, transform_indices = @transform_5, window_bounds = array<i64: 2, 1, 32>}, {pipeline_mode = #tpu.pipeline_mode<synchronous>, transform_indices = @transform_6, window_bounds = array<i64: 2, 1, 32>}, {pipeline_mode = #tpu.pipeline_mode<synchronous>, transform_indices = @transform_7, window_bounds = array<i64: 2, 1, 32>}, {pipeline_mode = #tpu.pipeline_mode<synchronous>, transform_indices = @transform_8, window_bounds = array<i64: 2, 32, 128>}, {pipeline_mode = #tpu.pipeline_mode<synchronous>, transform_indices = @transform_9, window_bounds = array<i64: 2, 1, 128>}, {pipeline_mode = #tpu.pipeline_mode<synchronous>, transform_indices = @transform_10, window_bounds = array<i64: 2, 128, 32>}, {pipeline_mode = #tpu.pipeline_mode<synchronous>, transform_indices = @transform_11, window_bounds = array<i64: 2, 1, 32>}, {pipeline_mode = #tpu.pipeline_mode<synchronous>, transform_indices = @transform_12, window_bounds = array<i64: 2, 1, 32>}, {pipeline_mode = #tpu.pipeline_mode<synchronous>, transform_indices = @transform_13, window_bounds = array<i64: 2, 1, 32>}, {pipeline_mode = #tpu.pipeline_mode<synchronous>, transform_indices = @transform_14, window_bounds = array<i64: 96, 64>}, {pipeline_mode = #tpu.pipeline_mode<synchronous>, transform_indices = @transform_15, window_bounds = array<i64: 1, 64>}, {pipeline_mode = #tpu.pipeline_mode<synchronous>, transform_indices = @transform_16, window_bounds = array<i64: 1, 64>}, {pipeline_mode = #tpu.pipeline_mode<synchronous>, transform_indices = @transform_17, window_bounds = array<i64: 1, 64>}, {pipeline_mode = #tpu.pipeline_mode<synchronous>, transform_indices = @transform_18, window_bounds = array<i64: 192, 64>}, {pipeline_mode = #tpu.pipeline_mode<synchronous>, transform_indices = @transform_19, window_bounds = array<i64: 1, 64>}, {pipeline_mode = #tpu.pipeline_mode<synchronous>, transform_indices = @transform_20, window_bounds = array<i64: 1, 64>}, {pipeline_mode = #tpu.pipeline_mode<synchronous>, transform_indices = @transform_21, window_bounds = array<i64: 1, 64>}, {pipeline_mode = #tpu.pipeline_mode<synchronous>, transform_indices = @transform_22, window_bounds = array<i64: 64, 128>}, {pipeline_mode = #tpu.pipeline_mode<synchronous>, transform_indices = @transform_23, window_bounds = array<i64: 1, 128>}, {transform_indices = @transform_24, window_bounds = array<i64: 1, 8, 32>}, {transform_indices = @transform_25, window_bounds = array<i64: 1, 8, 128>}]} {
    %c0 = arith.constant 0 : index
    %c0_0 = arith.constant 0 : index
    %c0_1 = arith.constant 0 : index
    %0 = vector.load %arg2[%c0, %c0_0, %c0_1] : memref<1x8x32xf32, #tpu.memory_space<vmem>>, vector<1x8x32xf32>
    %1 = vector.shape_cast %0 : vector<1x8x32xf32> to vector<8x32xf32>
    %c0_2 = arith.constant 0 : index
    %c0_3 = arith.constant 0 : index
    %2 = vector.load %arg3[%c0_2, %c0_3] : memref<8x32xf32, #tpu.memory_space<vmem>>, vector<8x32xf32>
    %3 = arith.addf %1, %2 : vector<8x32xf32>
    %c0_i32 = arith.constant 0 : i32
    %c2_i32 = arith.constant 2 : i32
    %4 = arith.addi %c0_i32, %c2_i32 : i32
    %c1_i32 = arith.constant 1 : i32
    %5 = scf.for %arg28 = %c0_i32 to %4 step %c1_i32 iter_args(%arg29 = %3) -> (vector<8x32xf32>)  : i32 {
      %96 = arith.truncf %arg29 : vector<8x32xf32> to vector<8x32xbf16>
      %97 = arith.index_cast %arg28 : i32 to index
      %c0_49 = arith.constant 0 : index
      %c0_50 = arith.constant 0 : index
      %98 = vector.load %arg4[%97, %c0_49, %c0_50] : memref<2x32x96xbf16, #tpu.memory_space<vmem>>, vector<1x32x96xbf16>
      %99 = vector.shape_cast %98 : vector<1x32x96xbf16> to vector<32x96xbf16>
      %cst_51 = arith.constant dense<0.000000e+00> : vector<8x96xf32>
      %100 = tpu.matmul %96, %99, %cst_51 {dimension_numbers = #tpu.dot_dimension_numbers<[1], [0], [0], [1], [0, 0, 1, 1], [], []>} : vector<8x32xbf16>, vector<32x96xbf16>, vector<8x96xf32> -> vector<8x96xf32>
      %101 = arith.index_cast %arg28 : i32 to index
      %c0_52 = arith.constant 0 : index
      %c0_53 = arith.constant 0 : index
      %102 = vector.load %arg5[%101, %c0_52, %c0_53] : memref<2x1x96xf32, #tpu.memory_space<vmem>>, vector<1x1x96xf32>
      %103 = vector.shape_cast %102 : vector<1x1x96xf32> to vector<1x96xf32>
      %104 = vector.broadcast %103 : vector<1x96xf32> to vector<8x96xf32>
      %105 = arith.addf %100, %104 : vector<8x96xf32>
      %106 = vector.extract_strided_slice %105 {offsets = [0, 0], sizes = [8, 32], strides = [1, 1]} : vector<8x96xf32> to vector<8x32xf32>
      %107 = vector.shape_cast %106 : vector<8x32xf32> to vector<8x2x16xf32>
      %108 = tpu.transpose %107, [1, 0, 2] : vector<8x2x16xf32> -> vector<2x8x16xf32>
      %109 = arith.truncf %108 : vector<2x8x16xf32> to vector<2x8x16xbf16>
      %110 = vector.extract_strided_slice %105 {offsets = [0, 32], sizes = [8, 32], strides = [1, 1]} : vector<8x96xf32> to vector<8x32xf32>
      %111 = vector.shape_cast %110 : vector<8x32xf32> to vector<8x2x16xf32>
      %112 = tpu.transpose %111, [1, 0, 2] : vector<8x2x16xf32> -> vector<2x8x16xf32>
      %113 = arith.truncf %112 : vector<2x8x16xf32> to vector<2x8x16xbf16>
      %114 = vector.extract_strided_slice %105 {offsets = [0, 64], sizes = [8, 32], strides = [1, 1]} : vector<8x96xf32> to vector<8x32xf32>
      %115 = vector.shape_cast %114 : vector<8x32xf32> to vector<8x2x16xf32>
      %116 = tpu.transpose %115, [1, 0, 2] : vector<8x2x16xf32> -> vector<2x8x16xf32>
      %117 = arith.truncf %116 : vector<2x8x16xf32> to vector<2x8x16xbf16>
      %cst_54 = arith.constant dense<0.000000e+00> : vector<2x8x8xf32>
      %118 = tpu.matmul %109, %113, %cst_54 {dimension_numbers = #tpu.dot_dimension_numbers<[2], [2], [1], [1], [0, 0, 0, 1, 1, 1], [0], [0]>} : vector<2x8x16xbf16>, vector<2x8x16xbf16>, vector<2x8x8xf32> -> vector<2x8x8xf32>
      %cst_55 = arith.constant dense<0xFF800000> : vector<2x8xf32>
      %119 = vector.multi_reduction <maximumf>, %118, %cst_55 [2] : vector<2x8x8xf32> to vector<2x8xf32>
      %120 = vector.shape_cast %119 : vector<2x8xf32> to vector<2x8x1xf32>
      %121 = vector.broadcast %120 : vector<2x8x1xf32> to vector<2x8x8xf32>
      %122 = arith.subf %118, %121 : vector<2x8x8xf32>
      %123 = math.exp %122 : vector<2x8x8xf32>
      %cst_56 = arith.constant dense<0.000000e+00> : vector<2x8xf32>
      %124 = vector.multi_reduction <add>, %123, %cst_56 [2] : vector<2x8x8xf32> to vector<2x8xf32>
      %125 = vector.shape_cast %124 : vector<2x8xf32> to vector<2x8x1xf32>
      %126 = vector.broadcast %125 : vector<2x8x1xf32> to vector<2x8x8xf32>
      %127 = arith.divf %123, %126 : vector<2x8x8xf32>
      %128 = arith.truncf %127 : vector<2x8x8xf32> to vector<2x8x8xbf16>
      %cst_57 = arith.constant dense<0.000000e+00> : vector<2x8x16xf32>
      %129 = tpu.matmul %128, %117, %cst_57 {dimension_numbers = #tpu.dot_dimension_numbers<[2], [1], [1], [2], [0, 0, 0, 1, 1, 2], [0], [0]>} : vector<2x8x8xbf16>, vector<2x8x16xbf16>, vector<2x8x16xf32> -> vector<2x8x16xf32>
      %130 = tpu.transpose %129, [1, 0, 2] : vector<2x8x16xf32> -> vector<8x2x16xf32>
      %131 = vector.shape_cast %130 : vector<8x2x16xf32> to vector<8x32xf32>
      %132 = arith.truncf %131 : vector<8x32xf32> to vector<8x32xbf16>
      %133 = arith.index_cast %arg28 : i32 to index
      %c0_58 = arith.constant 0 : index
      %c0_59 = arith.constant 0 : index
      %134 = vector.load %arg6[%133, %c0_58, %c0_59] : memref<2x32x32xbf16, #tpu.memory_space<vmem>>, vector<1x32x32xbf16>
      %135 = vector.shape_cast %134 : vector<1x32x32xbf16> to vector<32x32xbf16>
      %cst_60 = arith.constant dense<0.000000e+00> : vector<8x32xf32>
      %136 = tpu.matmul %132, %135, %cst_60 {dimension_numbers = #tpu.dot_dimension_numbers<[1], [0], [0], [1], [0, 0, 1, 1], [], []>} : vector<8x32xbf16>, vector<32x32xbf16>, vector<8x32xf32> -> vector<8x32xf32>
      %137 = arith.index_cast %arg28 : i32 to index
      %c0_61 = arith.constant 0 : index
      %c0_62 = arith.constant 0 : index
      %138 = vector.load %arg7[%137, %c0_61, %c0_62] : memref<2x1x32xf32, #tpu.memory_space<vmem>>, vector<1x1x32xf32>
      %139 = vector.shape_cast %138 : vector<1x1x32xf32> to vector<1x32xf32>
      %140 = vector.broadcast %139 : vector<1x32xf32> to vector<8x32xf32>
      %141 = arith.addf %136, %140 : vector<8x32xf32>
      %142 = arith.addf %arg29, %141 : vector<8x32xf32>
      %143 = arith.index_cast %arg28 : i32 to index
      %c0_63 = arith.constant 0 : index
      %c0_64 = arith.constant 0 : index
      %144 = vector.load %arg8[%143, %c0_63, %c0_64] : memref<2x1x32xf32, #tpu.memory_space<vmem>>, vector<1x1x32xf32>
      %145 = vector.shape_cast %144 : vector<1x1x32xf32> to vector<1x32xf32>
      %146 = arith.index_cast %arg28 : i32 to index
      %c0_65 = arith.constant 0 : index
      %c0_66 = arith.constant 0 : index
      %147 = vector.load %arg9[%146, %c0_65, %c0_66] : memref<2x1x32xf32, #tpu.memory_space<vmem>>, vector<1x1x32xf32>
      %148 = vector.shape_cast %147 : vector<1x1x32xf32> to vector<1x32xf32>
      %cst_67 = arith.constant dense<0.000000e+00> : vector<8xf32>
      %149 = vector.multi_reduction <add>, %142, %cst_67 [1] : vector<8x32xf32> to vector<8xf32>
      %150 = vector.shape_cast %149 : vector<8xf32> to vector<8x1xf32>
      %cst_68 = arith.constant 3.200000e+01 : f32
      %151 = vector.broadcast %cst_68 : f32 to vector<8x1xf32>
      %152 = arith.divf %150, %151 : vector<8x1xf32>
      %153 = vector.broadcast %152 : vector<8x1xf32> to vector<8x32xf32>
      %154 = arith.subf %142, %153 : vector<8x32xf32>
      %155 = arith.mulf %154, %154 : vector<8x32xf32>
      %cst_69 = arith.constant dense<0.000000e+00> : vector<8xf32>
      %156 = vector.multi_reduction <add>, %155, %cst_69 [1] : vector<8x32xf32> to vector<8xf32>
      %157 = vector.shape_cast %156 : vector<8xf32> to vector<8x1xf32>
      %cst_70 = arith.constant 3.200000e+01 : f32
      %158 = vector.broadcast %cst_70 : f32 to vector<8x1xf32>
      %159 = arith.divf %157, %158 : vector<8x1xf32>
      %160 = vector.broadcast %152 : vector<8x1xf32> to vector<8x32xf32>
      %161 = arith.subf %142, %160 : vector<8x32xf32>
      %cst_71 = arith.constant 9.99999974E-6 : f32
      %162 = vector.broadcast %cst_71 : f32 to vector<8x1xf32>
      %163 = arith.addf %159, %162 : vector<8x1xf32>
      %164 = math.rsqrt %163 : vector<8x1xf32>
      %165 = vector.broadcast %164 : vector<8x1xf32> to vector<8x32xf32>
      %166 = arith.mulf %161, %165 : vector<8x32xf32>
      %167 = vector.broadcast %145 : vector<1x32xf32> to vector<8x32xf32>
      %168 = arith.mulf %166, %167 : vector<8x32xf32>
      %169 = vector.broadcast %148 : vector<1x32xf32> to vector<8x32xf32>
      %170 = arith.addf %168, %169 : vector<8x32xf32>
      %171 = arith.truncf %170 : vector<8x32xf32> to vector<8x32xbf16>
      %172 = arith.index_cast %arg28 : i32 to index
      %c0_72 = arith.constant 0 : index
      %c0_73 = arith.constant 0 : index
      %173 = vector.load %arg10[%172, %c0_72, %c0_73] : memref<2x32x128xbf16, #tpu.memory_space<vmem>>, vector<1x32x128xbf16>
      %174 = vector.shape_cast %173 : vector<1x32x128xbf16> to vector<32x128xbf16>
      %cst_74 = arith.constant dense<0.000000e+00> : vector<8x128xf32>
      %175 = tpu.matmul %171, %174, %cst_74 {dimension_numbers = #tpu.dot_dimension_numbers<[1], [0], [0], [1], [0, 0, 1, 1], [], []>} : vector<8x32xbf16>, vector<32x128xbf16>, vector<8x128xf32> -> vector<8x128xf32>
      %176 = arith.index_cast %arg28 : i32 to index
      %c0_75 = arith.constant 0 : index
      %c0_76 = arith.constant 0 : index
      %177 = vector.load %arg11[%176, %c0_75, %c0_76] : memref<2x1x128xf32, #tpu.memory_space<vmem>>, vector<1x1x128xf32>
      %178 = vector.shape_cast %177 : vector<1x1x128xf32> to vector<1x128xf32>
      %179 = vector.broadcast %178 : vector<1x128xf32> to vector<8x128xf32>
      %180 = arith.addf %175, %179 : vector<8x128xf32>
      %cst_77 = arith.constant 0.000000e+00 : f32
      %181 = vector.broadcast %cst_77 : f32 to vector<8x128xf32>
      %182 = arith.maximumf %180, %181 : vector<8x128xf32>
      %183 = arith.truncf %182 : vector<8x128xf32> to vector<8x128xbf16>
      %184 = arith.index_cast %arg28 : i32 to index
      %c0_78 = arith.constant 0 : index
      %c0_79 = arith.constant 0 : index
      %185 = vector.load %arg12[%184, %c0_78, %c0_79] : memref<2x128x32xbf16, #tpu.memory_space<vmem>>, vector<1x128x32xbf16>
      %186 = vector.shape_cast %185 : vector<1x128x32xbf16> to vector<128x32xbf16>
      %cst_80 = arith.constant dense<0.000000e+00> : vector<8x32xf32>
      %187 = tpu.matmul %183, %186, %cst_80 {dimension_numbers = #tpu.dot_dimension_numbers<[1], [0], [0], [1], [0, 0, 1, 1], [], []>} : vector<8x128xbf16>, vector<128x32xbf16>, vector<8x32xf32> -> vector<8x32xf32>
      %188 = arith.index_cast %arg28 : i32 to index
      %c0_81 = arith.constant 0 : index
      %c0_82 = arith.constant 0 : index
      %189 = vector.load %arg13[%188, %c0_81, %c0_82] : memref<2x1x32xf32, #tpu.memory_space<vmem>>, vector<1x1x32xf32>
      %190 = vector.shape_cast %189 : vector<1x1x32xf32> to vector<1x32xf32>
      %191 = vector.broadcast %190 : vector<1x32xf32> to vector<8x32xf32>
      %192 = arith.addf %187, %191 : vector<8x32xf32>
      %193 = arith.addf %170, %192 : vector<8x32xf32>
      %194 = arith.index_cast %arg28 : i32 to index
      %c0_83 = arith.constant 0 : index
      %c0_84 = arith.constant 0 : index
      %195 = vector.load %arg14[%194, %c0_83, %c0_84] : memref<2x1x32xf32, #tpu.memory_space<vmem>>, vector<1x1x32xf32>
      %196 = vector.shape_cast %195 : vector<1x1x32xf32> to vector<1x32xf32>
      %197 = arith.index_cast %arg28 : i32 to index
      %c0_85 = arith.constant 0 : index
      %c0_86 = arith.constant 0 : index
      %198 = vector.load %arg15[%197, %c0_85, %c0_86] : memref<2x1x32xf32, #tpu.memory_space<vmem>>, vector<1x1x32xf32>
      %199 = vector.shape_cast %198 : vector<1x1x32xf32> to vector<1x32xf32>
      %cst_87 = arith.constant dense<0.000000e+00> : vector<8xf32>
      %200 = vector.multi_reduction <add>, %193, %cst_87 [1] : vector<8x32xf32> to vector<8xf32>
      %201 = vector.shape_cast %200 : vector<8xf32> to vector<8x1xf32>
      %cst_88 = arith.constant 3.200000e+01 : f32
      %202 = vector.broadcast %cst_88 : f32 to vector<8x1xf32>
      %203 = arith.divf %201, %202 : vector<8x1xf32>
      %204 = vector.broadcast %203 : vector<8x1xf32> to vector<8x32xf32>
      %205 = arith.subf %193, %204 : vector<8x32xf32>
      %206 = arith.mulf %205, %205 : vector<8x32xf32>
      %cst_89 = arith.constant dense<0.000000e+00> : vector<8xf32>
      %207 = vector.multi_reduction <add>, %206, %cst_89 [1] : vector<8x32xf32> to vector<8xf32>
      %208 = vector.shape_cast %207 : vector<8xf32> to vector<8x1xf32>
      %cst_90 = arith.constant 3.200000e+01 : f32
      %209 = vector.broadcast %cst_90 : f32 to vector<8x1xf32>
      %210 = arith.divf %208, %209 : vector<8x1xf32>
      %211 = vector.broadcast %203 : vector<8x1xf32> to vector<8x32xf32>
      %212 = arith.subf %193, %211 : vector<8x32xf32>
      %cst_91 = arith.constant 9.99999974E-6 : f32
      %213 = vector.broadcast %cst_91 : f32 to vector<8x1xf32>
      %214 = arith.addf %210, %213 : vector<8x1xf32>
      %215 = math.rsqrt %214 : vector<8x1xf32>
      %216 = vector.broadcast %215 : vector<8x1xf32> to vector<8x32xf32>
      %217 = arith.mulf %212, %216 : vector<8x32xf32>
      %218 = vector.broadcast %196 : vector<1x32xf32> to vector<8x32xf32>
      %219 = arith.mulf %217, %218 : vector<8x32xf32>
      %220 = vector.broadcast %199 : vector<1x32xf32> to vector<8x32xf32>
      %221 = arith.addf %219, %220 : vector<8x32xf32>
      scf.yield %221 : vector<8x32xf32>
    }
    %c2_i32_4 = arith.constant 2 : i32
    %c0_5 = arith.constant 0 : index
    %c0_6 = arith.constant 0 : index
    %c0_7 = arith.constant 0 : index
    %6 = vector.load %arg26[%c0_5, %c0_6, %c0_7] : memref<1x8x32xf32, #tpu.memory_space<vmem>>, vector<1x8x32xf32>
    %7 = vector.shape_cast %6 : vector<1x8x32xf32> to vector<8x32xf32>
    %8 = vector.shape_cast %5 : vector<8x32xf32> to vector<1x8x32xf32>
    tpu.vector_store %arg26[%c0_5, %c0_6, %c0_7], %8 {strides = array<i32>} : memref<1x8x32xf32, #tpu.memory_space<vmem>>, vector<1x8x32xf32>,
    %cst = arith.constant 0.000000e+00 : f32
    %9 = vector.broadcast %cst : f32 to vector<1x32xf32>
    %10 = vector.extract_strided_slice %5 {offsets = [0, 0], sizes = [7, 32], strides = [1, 1]} : vector<8x32xf32> to vector<7x32xf32>
    %11 = tpu.concatenate %9, %10 in 0 : vector<1x32xf32>, vector<7x32xf32> -> vector<8x32xf32>
    %cst_8 = arith.constant 0.000000e+00 : f32
    %12 = vector.broadcast %cst_8 : f32 to vector<1x32xf32>
    %13 = vector.extract_strided_slice %5 {offsets = [1, 0], sizes = [7, 32], strides = [1, 1]} : vector<8x32xf32> to vector<7x32xf32>
    %14 = tpu.concatenate %13, %12 in 0 : vector<7x32xf32>, vector<1x32xf32> -> vector<8x32xf32>
    %15 = tpu.concatenate %11, %5, %14 in 1 : vector<8x32xf32>, vector<8x32xf32>, vector<8x32xf32> -> vector<8x96xf32>
    %16 = arith.truncf %15 : vector<8x96xf32> to vector<8x96xbf16>
    %c0_9 = arith.constant 0 : index
    %c0_10 = arith.constant 0 : index
    %17 = vector.load %arg16[%c0_9, %c0_10] : memref<96x64xbf16, #tpu.memory_space<vmem>>, vector<96x64xbf16>
    %cst_11 = arith.constant dense<0.000000e+00> : vector<8x64xf32>
    %18 = tpu.matmul %16, %17, %cst_11 {dimension_numbers = #tpu.dot_dimension_numbers<[1], [0], [0], [1], [0, 0, 1, 1], [], []>} : vector<8x96xbf16>, vector<96x64xbf16>, vector<8x64xf32> -> vector<8x64xf32>
    %c0_12 = arith.constant 0 : index
    %c0_13 = arith.constant 0 : index
    %19 = vector.load %arg17[%c0_12, %c0_13] : memref<1x64xf32, #tpu.memory_space<vmem>>, vector<1x64xf32>
    %20 = vector.broadcast %19 : vector<1x64xf32> to vector<8x64xf32>
    %21 = arith.addf %18, %20 : vector<8x64xf32>
    %c0_14 = arith.constant 0 : index
    %c0_15 = arith.constant 0 : index
    %22 = vector.load %arg18[%c0_14, %c0_15] : memref<1x64xf32, #tpu.memory_space<vmem>>, vector<1x64xf32>
    %c0_16 = arith.constant 0 : index
    %c0_17 = arith.constant 0 : index
    %23 = vector.load %arg19[%c0_16, %c0_17] : memref<1x64xf32, #tpu.memory_space<vmem>>, vector<1x64xf32>
    %cst_18 = arith.constant dense<0.000000e+00> : vector<8xf32>
    %24 = vector.multi_reduction <add>, %21, %cst_18 [1] : vector<8x64xf32> to vector<8xf32>
    %25 = vector.shape_cast %24 : vector<8xf32> to vector<8x1xf32>
    %cst_19 = arith.constant 6.400000e+01 : f32
    %26 = vector.broadcast %cst_19 : f32 to vector<8x1xf32>
    %27 = arith.divf %25, %26 : vector<8x1xf32>
    %28 = vector.broadcast %27 : vector<8x1xf32> to vector<8x64xf32>
    %29 = arith.subf %21, %28 : vector<8x64xf32>
    %30 = arith.mulf %29, %29 : vector<8x64xf32>
    %cst_20 = arith.constant dense<0.000000e+00> : vector<8xf32>
    %31 = vector.multi_reduction <add>, %30, %cst_20 [1] : vector<8x64xf32> to vector<8xf32>
    %32 = vector.shape_cast %31 : vector<8xf32> to vector<8x1xf32>
    %cst_21 = arith.constant 6.400000e+01 : f32
    %33 = vector.broadcast %cst_21 : f32 to vector<8x1xf32>
    %34 = arith.divf %32, %33 : vector<8x1xf32>
    %35 = vector.broadcast %27 : vector<8x1xf32> to vector<8x64xf32>
    %36 = arith.subf %21, %35 : vector<8x64xf32>
    %cst_22 = arith.constant 9.99999974E-6 : f32
    %37 = vector.broadcast %cst_22 : f32 to vector<8x1xf32>
    %38 = arith.addf %34, %37 : vector<8x1xf32>
    %39 = math.rsqrt %38 : vector<8x1xf32>
    %40 = vector.broadcast %39 : vector<8x1xf32> to vector<8x64xf32>
    %41 = arith.mulf %36, %40 : vector<8x64xf32>
    %42 = vector.broadcast %22 : vector<1x64xf32> to vector<8x64xf32>
    %43 = arith.mulf %41, %42 : vector<8x64xf32>
    %44 = vector.broadcast %23 : vector<1x64xf32> to vector<8x64xf32>
    %45 = arith.addf %43, %44 : vector<8x64xf32>
    %cst_23 = arith.constant 0.000000e+00 : f32
    %46 = vector.broadcast %cst_23 : f32 to vector<8x64xf32>
    %47 = arith.maximumf %45, %46 : vector<8x64xf32>
    %cst_24 = arith.constant 0.000000e+00 : f32
    %48 = vector.broadcast %cst_24 : f32 to vector<1x64xf32>
    %49 = vector.extract_strided_slice %47 {offsets = [0, 0], sizes = [7, 64], strides = [1, 1]} : vector<8x64xf32> to vector<7x64xf32>
    %50 = tpu.concatenate %48, %49 in 0 : vector<1x64xf32>, vector<7x64xf32> -> vector<8x64xf32>
    %cst_25 = arith.constant 0.000000e+00 : f32
    %51 = vector.broadcast %cst_25 : f32 to vector<1x64xf32>
    %52 = vector.extract_strided_slice %47 {offsets = [1, 0], sizes = [7, 64], strides = [1, 1]} : vector<8x64xf32> to vector<7x64xf32>
    %53 = tpu.concatenate %52, %51 in 0 : vector<7x64xf32>, vector<1x64xf32> -> vector<8x64xf32>
    %54 = tpu.concatenate %50, %47, %53 in 1 : vector<8x64xf32>, vector<8x64xf32>, vector<8x64xf32> -> vector<8x192xf32>
    %55 = arith.truncf %54 : vector<8x192xf32> to vector<8x192xbf16>
    %c0_26 = arith.constant 0 : index
    %c0_27 = arith.constant 0 : index
    %56 = vector.load %arg20[%c0_26, %c0_27] : memref<192x64xbf16, #tpu.memory_space<vmem>>, vector<192x64xbf16>
    %cst_28 = arith.constant dense<0.000000e+00> : vector<8x64xf32>
    %57 = tpu.matmul %55, %56, %cst_28 {dimension_numbers = #tpu.dot_dimension_numbers<[1], [0], [0], [1], [0, 0, 1, 1], [], []>} : vector<8x192xbf16>, vector<192x64xbf16>, vector<8x64xf32> -> vector<8x64xf32>
    %c0_29 = arith.constant 0 : index
    %c0_30 = arith.constant 0 : index
    %58 = vector.load %arg21[%c0_29, %c0_30] : memref<1x64xf32, #tpu.memory_space<vmem>>, vector<1x64xf32>
    %59 = vector.broadcast %58 : vector<1x64xf32> to vector<8x64xf32>
    %60 = arith.addf %57, %59 : vector<8x64xf32>
    %c0_31 = arith.constant 0 : index
    %c0_32 = arith.constant 0 : index
    %61 = vector.load %arg22[%c0_31, %c0_32] : memref<1x64xf32, #tpu.memory_space<vmem>>, vector<1x64xf32>
    %c0_33 = arith.constant 0 : index
    %c0_34 = arith.constant 0 : index
    %62 = vector.load %arg23[%c0_33, %c0_34] : memref<1x64xf32, #tpu.memory_space<vmem>>, vector<1x64xf32>
    %cst_35 = arith.constant dense<0.000000e+00> : vector<8xf32>
    %63 = vector.multi_reduction <add>, %60, %cst_35 [1] : vector<8x64xf32> to vector<8xf32>
    %64 = vector.shape_cast %63 : vector<8xf32> to vector<8x1xf32>
    %cst_36 = arith.constant 6.400000e+01 : f32
    %65 = vector.broadcast %cst_36 : f32 to vector<8x1xf32>
    %66 = arith.divf %64, %65 : vector<8x1xf32>
    %67 = vector.broadcast %66 : vector<8x1xf32> to vector<8x64xf32>
    %68 = arith.subf %60, %67 : vector<8x64xf32>
    %69 = arith.mulf %68, %68 : vector<8x64xf32>
    %cst_37 = arith.constant dense<0.000000e+00> : vector<8xf32>
    %70 = vector.multi_reduction <add>, %69, %cst_37 [1] : vector<8x64xf32> to vector<8xf32>
    %71 = vector.shape_cast %70 : vector<8xf32> to vector<8x1xf32>
    %cst_38 = arith.constant 6.400000e+01 : f32
    %72 = vector.broadcast %cst_38 : f32 to vector<8x1xf32>
    %73 = arith.divf %71, %72 : vector<8x1xf32>
    %74 = vector.broadcast %66 : vector<8x1xf32> to vector<8x64xf32>
    %75 = arith.subf %60, %74 : vector<8x64xf32>
    %cst_39 = arith.constant 9.99999974E-6 : f32
    %76 = vector.broadcast %cst_39 : f32 to vector<8x1xf32>
    %77 = arith.addf %73, %76 : vector<8x1xf32>
    %78 = math.rsqrt %77 : vector<8x1xf32>
    %79 = vector.broadcast %78 : vector<8x1xf32> to vector<8x64xf32>
    %80 = arith.mulf %75, %79 : vector<8x64xf32>
    %81 = vector.broadcast %61 : vector<1x64xf32> to vector<8x64xf32>
    %82 = arith.mulf %80, %81 : vector<8x64xf32>
    %83 = vector.broadcast %62 : vector<1x64xf32> to vector<8x64xf32>
    %84 = arith.addf %82, %83 : vector<8x64xf32>
    %cst_40 = arith.constant 0.000000e+00 : f32
    %85 = vector.broadcast %cst_40 : f32 to vector<8x64xf32>
    %86 = arith.maximumf %84, %85 : vector<8x64xf32>
    %87 = arith.truncf %86 : vector<8x64xf32> to vector<8x64xbf16>
    %c0_41 = arith.constant 0 : index
    %c0_42 = arith.constant 0 : index
    %88 = vector.load %arg24[%c0_41, %c0_42] : memref<64x128xbf16, #tpu.memory_space<vmem>>, vector<64x128xbf16>
    %cst_43 = arith.constant dense<0.000000e+00> : vector<8x128xf32>
    %89 = tpu.matmul %87, %88, %cst_43 {dimension_numbers = #tpu.dot_dimension_numbers<[1], [0], [0], [1], [0, 0, 1, 1], [], []>} : vector<8x64xbf16>, vector<64x128xbf16>, vector<8x128xf32> -> vector<8x128xf32>
    %c0_44 = arith.constant 0 : index
    %c0_45 = arith.constant 0 : index
    %90 = vector.load %arg25[%c0_44, %c0_45] : memref<1x128xf32, #tpu.memory_space<vmem>>, vector<1x128xf32>
    %91 = vector.broadcast %90 : vector<1x128xf32> to vector<8x128xf32>
    %92 = arith.addf %89, %91 : vector<8x128xf32>
    %c0_46 = arith.constant 0 : index
    %c0_47 = arith.constant 0 : index
    %c0_48 = arith.constant 0 : index
    %93 = vector.load %arg27[%c0_46, %c0_47, %c0_48] : memref<1x8x128xf32, #tpu.memory_space<vmem>>, vector<1x8x128xf32>
    %94 = vector.shape_cast %93 : vector<1x8x128xf32> to vector<8x128xf32>
    %95 = vector.shape_cast %92 : vector<8x128xf32> to vector<1x8x128xf32>
    tpu.vector_store %arg27[%c0_46, %c0_47, %c0_48], %95 {strides = array<i32>} : memref<1x8x128xf32, #tpu.memory_space<vmem>>, vector<1x8x128xf32>,
    return
  }
  func.func @transform_0(%arg0: i32, %arg1: memref<1xi32, #tpu.memory_space<smem>>) -> (i32, i32, i32) {
    %c0_i32 = arith.constant 0 : i32
    %c0_i32_0 = arith.constant 0 : i32
    %c0_i32_1 = arith.constant 0 : i32
    return %arg0, %c0_i32, %c0_i32_0 : i32, i32, i32
  }
  func.func @transform_1(%arg0: i32, %arg1: memref<1xi32, #tpu.memory_space<smem>>) -> (i32, i32) {
    %c0_i32 = arith.constant 0 : i32
    %c0_i32_0 = arith.constant 0 : i32
    %c0_i32_1 = arith.constant 0 : i32
    return %c0_i32, %c0_i32_0 : i32, i32
  }
  func.func @transform_2(%arg0: i32, %arg1: memref<1xi32, #tpu.memory_space<smem>>) -> (i32, i32, i32) {
    %c0_i32 = arith.constant 0 : i32
    %c0_i32_0 = arith.constant 0 : i32
    %c0_i32_1 = arith.constant 0 : i32
    %c0_i32_2 = arith.constant 0 : i32
    return %c0_i32, %c0_i32_0, %c0_i32_1 : i32, i32, i32
  }
  func.func @transform_3(%arg0: i32, %arg1: memref<1xi32, #tpu.memory_space<smem>>) -> (i32, i32, i32) {
    %c0_i32 = arith.constant 0 : i32
    %c0_i32_0 = arith.constant 0 : i32
    %c0_i32_1 = arith.constant 0 : i32
    %c0_i32_2 = arith.constant 0 : i32
    return %c0_i32, %c0_i32_0, %c0_i32_1 : i32, i32, i32
  }
  func.func @transform_4(%arg0: i32, %arg1: memref<1xi32, #tpu.memory_space<smem>>) -> (i32, i32, i32) {
    %c0_i32 = arith.constant 0 : i32
    %c0_i32_0 = arith.constant 0 : i32
    %c0_i32_1 = arith.constant 0 : i32
    %c0_i32_2 = arith.constant 0 : i32
    return %c0_i32, %c0_i32_0, %c0_i32_1 : i32, i32, i32
  }
  func.func @transform_5(%arg0: i32, %arg1: memref<1xi32, #tpu.memory_space<smem>>) -> (i32, i32, i32) {
    %c0_i32 = arith.constant 0 : i32
    %c0_i32_0 = arith.constant 0 : i32
    %c0_i32_1 = arith.constant 0 : i32
    %c0_i32_2 = arith.constant 0 : i32
    return %c0_i32, %c0_i32_0, %c0_i32_1 : i32, i32, i32
  }
  func.func @transform_6(%arg0: i32, %arg1: memref<1xi32, #tpu.memory_space<smem>>) -> (i32, i32, i32) {
    %c0_i32 = arith.constant 0 : i32
    %c0_i32_0 = arith.constant 0 : i32
    %c0_i32_1 = arith.constant 0 : i32
    %c0_i32_2 = arith.constant 0 : i32
    return %c0_i32, %c0_i32_0, %c0_i32_1 : i32, i32, i32
  }
  func.func @transform_7(%arg0: i32, %arg1: memref<1xi32, #tpu.memory_space<smem>>) -> (i32, i32, i32) {
    %c0_i32 = arith.constant 0 : i32
    %c0_i32_0 = arith.constant 0 : i32
    %c0_i32_1 = arith.constant 0 : i32
    %c0_i32_2 = arith.constant 0 : i32
    return %c0_i32, %c0_i32_0, %c0_i32_1 : i32, i32, i32
  }
  func.func @transform_8(%arg0: i32, %arg1: memref<1xi32, #tpu.memory_space<smem>>) -> (i32, i32, i32) {
    %c0_i32 = arith.constant 0 : i32
    %c0_i32_0 = arith.constant 0 : i32
    %c0_i32_1 = arith.constant 0 : i32
    %c0_i32_2 = arith.constant 0 : i32
    return %c0_i32, %c0_i32_0, %c0_i32_1 : i32, i32, i32
  }
  func.func @transform_9(%arg0: i32, %arg1: memref<1xi32, #tpu.memory_space<smem>>) -> (i32, i32, i32) {
    %c0_i32 = arith.constant 0 : i32
    %c0_i32_0 = arith.constant 0 : i32
    %c0_i32_1 = arith.constant 0 : i32
    %c0_i32_2 = arith.constant 0 : i32
    return %c0_i32, %c0_i32_0, %c0_i32_1 : i32, i32, i32
  }
  func.func @transform_10(%arg0: i32, %arg1: memref<1xi32, #tpu.memory_space<smem>>) -> (i32, i32, i32) {
    %c0_i32 = arith.constant 0 : i32
    %c0_i32_0 = arith.constant 0 : i32
    %c0_i32_1 = arith.constant 0 : i32
    %c0_i32_2 = arith.constant 0 : i32
    return %c0_i32, %c0_i32_0, %c0_i32_1 : i32, i32, i32
  }
  func.func @transform_11(%arg0: i32, %arg1: memref<1xi32, #tpu.memory_space<smem>>) -> (i32, i32, i32) {
    %c0_i32 = arith.constant 0 : i32
    %c0_i32_0 = arith.constant 0 : i32
    %c0_i32_1 = arith.constant 0 : i32
    %c0_i32_2 = arith.constant 0 : i32
    return %c0_i32, %c0_i32_0, %c0_i32_1 : i32, i32, i32
  }
  func.func @transform_12(%arg0: i32, %arg1: memref<1xi32, #tpu.memory_space<smem>>) -> (i32, i32, i32) {
    %c0_i32 = arith.constant 0 : i32
    %c0_i32_0 = arith.constant 0 : i32
    %c0_i32_1 = arith.constant 0 : i32
    %c0_i32_2 = arith.constant 0 : i32
    return %c0_i32, %c0_i32_0, %c0_i32_1 : i32, i32, i32
  }
  func.func @transform_13(%arg0: i32, %arg1: memref<1xi32, #tpu.memory_space<smem>>) -> (i32, i32, i32) {
    %c0_i32 = arith.constant 0 : i32
    %c0_i32_0 = arith.constant 0 : i32
    %c0_i32_1 = arith.constant 0 : i32
    %c0_i32_2 = arith.constant 0 : i32
    return %c0_i32, %c0_i32_0, %c0_i32_1 : i32, i32, i32
  }
  func.func @transform_14(%arg0: i32, %arg1: memref<1xi32, #tpu.memory_space<smem>>) -> (i32, i32) {
    %c0_i32 = arith.constant 0 : i32
    %c0_i32_0 = arith.constant 0 : i32
    %c0_i32_1 = arith.constant 0 : i32
    return %c0_i32, %c0_i32_0 : i32, i32
  }
  func.func @transform_15(%arg0: i32, %arg1: memref<1xi32, #tpu.memory_space<smem>>) -> (i32, i32) {
    %c0_i32 = arith.constant 0 : i32
    %c0_i32_0 = arith.constant 0 : i32
    %c0_i32_1 = arith.constant 0 : i32
    return %c0_i32, %c0_i32_0 : i32, i32
  }
  func.func @transform_16(%arg0: i32, %arg1: memref<1xi32, #tpu.memory_space<smem>>) -> (i32, i32) {
    %c0_i32 = arith.constant 0 : i32
    %c0_i32_0 = arith.constant 0 : i32
    %c0_i32_1 = arith.constant 0 : i32
    return %c0_i32, %c0_i32_0 : i32, i32
  }
  func.func @transform_17(%arg0: i32, %arg1: memref<1xi32, #tpu.memory_space<smem>>) -> (i32, i32) {
    %c0_i32 = arith.constant 0 : i32
    %c0_i32_0 = arith.constant 0 : i32
    %c0_i32_1 = arith.constant 0 : i32
    return %c0_i32, %c0_i32_0 : i32, i32
  }
  func.func @transform_18(%arg0: i32, %arg1: memref<1xi32, #tpu.memory_space<smem>>) -> (i32, i32) {
    %c0_i32 = arith.constant 0 : i32
    %c0_i32_0 = arith.constant 0 : i32
    %c0_i32_1 = arith.constant 0 : i32
    return %c0_i32, %c0_i32_0 : i32, i32
  }
  func.func @transform_19(%arg0: i32, %arg1: memref<1xi32, #tpu.memory_space<smem>>) -> (i32, i32) {
    %c0_i32 = arith.constant 0 : i32
    %c0_i32_0 = arith.constant 0 : i32
    %c0_i32_1 = arith.constant 0 : i32
    return %c0_i32, %c0_i32_0 : i32, i32
  }
  func.func @transform_20(%arg0: i32, %arg1: memref<1xi32, #tpu.memory_space<smem>>) -> (i32, i32) {
    %c0_i32 = arith.constant 0 : i32
    %c0_i32_0 = arith.constant 0 : i32
    %c0_i32_1 = arith.constant 0 : i32
    return %c0_i32, %c0_i32_0 : i32, i32
  }
  func.func @transform_21(%arg0: i32, %arg1: memref<1xi32, #tpu.memory_space<smem>>) -> (i32, i32) {
    %c0_i32 = arith.constant 0 : i32
    %c0_i32_0 = arith.constant 0 : i32
    %c0_i32_1 = arith.constant 0 : i32
    return %c0_i32, %c0_i32_0 : i32, i32
  }
  func.func @transform_22(%arg0: i32, %arg1: memref<1xi32, #tpu.memory_space<smem>>) -> (i32, i32) {
    %c0_i32 = arith.constant 0 : i32
    %c0_i32_0 = arith.constant 0 : i32
    %c0_i32_1 = arith.constant 0 : i32
    return %c0_i32, %c0_i32_0 : i32, i32
  }
  func.func @transform_23(%arg0: i32, %arg1: memref<1xi32, #tpu.memory_space<smem>>) -> (i32, i32) {
    %c0_i32 = arith.constant 0 : i32
    %c0_i32_0 = arith.constant 0 : i32
    %c0_i32_1 = arith.constant 0 : i32
    return %c0_i32, %c0_i32_0 : i32, i32
  }
  func.func @transform_24(%arg0: i32, %arg1: memref<1xi32, #tpu.memory_space<smem>>) -> (i32, i32, i32) {
    %c0_i32 = arith.constant 0 : i32
    %c0_i32_0 = arith.constant 0 : i32
    %c0_i32_1 = arith.constant 0 : i32
    return %arg0, %c0_i32, %c0_i32_0 : i32, i32, i32
  }
  func.func @transform_25(%arg0: i32, %arg1: memref<1xi32, #tpu.memory_space<smem>>) -> (i32, i32, i32) {
    %c0_i32 = arith.constant 0 : i32
    %c0_i32_0 = arith.constant 0 : i32
    %c0_i32_1 = arith.constant 0 : i32
    return %arg0, %c0_i32, %c0_i32_0 : i32, i32, i32
  }
}

</mosaic_0001>

<llo_original>
// kernel: tpu_custom_call.1
$region0: #{tpu_custom_call.1}
  #allocation0 [shape = 'u32[]', space=smem, size = 0x4, offset = 0x4, fixed_abs, tag = 'smem constant byte address 0x4 - core index']
  #allocation1 [shape = 'u32[144,128]{1,0:T(1,128)}', space=vmem, size = 0x12000, scoped, tag = 'internal scratch']
  #allocation2 [shape = 's32[1]{0}', space=sflag, size = 0x4, scoped, tag = 'scoped memory for tpu_custom_call.1']
  #allocation3 [shape = 's32[1]{0:T(128)S(6)}', space=smem, size = 0x200, scoped, tag = 'prefetched SMEM operand 0']
  %s0 = inlined_call_operand.<no memory space> [shape: s32[1], index: 0, kind: input, shape index: {}]
  %s1 = inlined_call_operand.hbm [shape: f32[2,8,32], index: 1, kind: input, shape index: {}]
  %s2 = inlined_call_operand.hbm [shape: f32[8,32], index: 2, kind: input, shape index: {}]
  %s3 = inlined_call_operand.hbm [shape: bf16[2,32,96], index: 3, kind: input, shape index: {}]
  %s4 = inlined_call_operand.hbm [shape: f32[2,1,96], index: 4, kind: input, shape index: {}]
  %s5 = inlined_call_operand.hbm [shape: bf16[2,32,32], index: 5, kind: input, shape index: {}]
  %s6 = inlined_call_operand.hbm [shape: f32[2,1,32], index: 6, kind: input, shape index: {}]
  %s7 = inlined_call_operand.hbm [shape: f32[2,1,32], index: 7, kind: input, shape index: {}]
  %s8 = inlined_call_operand.hbm [shape: f32[2,1,32], index: 8, kind: input, shape index: {}]
  %s9 = inlined_call_operand.hbm [shape: bf16[2,32,128], index: 9, kind: input, shape index: {}]
  %s10 = inlined_call_operand.hbm [shape: f32[2,1,128], index: 10, kind: input, shape index: {}]
  %s11 = inlined_call_operand.hbm [shape: bf16[2,128,32], index: 11, kind: input, shape index: {}]
  %s12 = inlined_call_operand.hbm [shape: f32[2,1,32], index: 12, kind: input, shape index: {}]
  %s13 = inlined_call_operand.hbm [shape: f32[2,1,32], index: 13, kind: input, shape index: {}]
  %s14 = inlined_call_operand.hbm [shape: f32[2,1,32], index: 14, kind: input, shape index: {}]
  %s15 = inlined_call_operand.hbm [shape: bf16[96,64], index: 15, kind: input, shape index: {}]
  %s16 = inlined_call_operand.hbm [shape: f32[1,64], index: 16, kind: input, shape index: {}]
  %s17 = inlined_call_operand.hbm [shape: f32[1,64], index: 17, kind: input, shape index: {}]
  %s18 = inlined_call_operand.hbm [shape: f32[1,64], index: 18, kind: input, shape index: {}]
  %s19 = inlined_call_operand.hbm [shape: bf16[192,64], index: 19, kind: input, shape index: {}]
  %s20 = inlined_call_operand.hbm [shape: f32[1,64], index: 20, kind: input, shape index: {}]
  %s21 = inlined_call_operand.hbm [shape: f32[1,64], index: 21, kind: input, shape index: {}]
  %s22 = inlined_call_operand.hbm [shape: f32[1,64], index: 22, kind: input, shape index: {}]
  %s23 = inlined_call_operand.hbm [shape: bf16[64,128], index: 23, kind: input, shape index: {}]
  %s24 = inlined_call_operand.hbm [shape: f32[1,128], index: 24, kind: input, shape index: {}]
  %s25 = inlined_call_operand.hbm [shape: f32[2,8,32], index: 25, kind: output, shape index: {0}]
  %s26 = inlined_call_operand.hbm [shape: f32[2,8,128], index: 26, kind: output, shape index: {1}]
  %27 = xla_tuple %s25, %s26
  %s28 = sld [smem:[#allocation0]]
  $region240: #{tpu_custom_call.1} parent=0
    _
  %s30 = ssub.s32 1, %s28
  %s31 = scalar_select 0, %s30, %s28
  %32 = sst [smem:[#allocation3]] %s0
  $region1: #{tpu_custom_call.1} parent=0
    #allocation4 [shape = 'u8[8192]{0}', space=vmem, size = 0x2000, scoped, tag = 'input window, operand 1']
    #allocation5 [shape = 's32[2]{0}', space=sflag, size = 0x8, scoped, tag = 'scoped memory for tpu_custom_call.1']
    #allocation6 [shape = 's32[2]{0}', space=sflag, size = 0x8, scoped, tag = 'scoped memory for tpu_custom_call.1']
    #allocation7 [shape = 'u8[4096]{0}', space=vmem, size = 0x1000, scoped, tag = 'input window, operand 2, single buffered']
    #allocation8 [shape = 's32[1]{0}', space=sflag, size = 0x4, scoped, tag = 'scoped memory for tpu_custom_call.1']
    #allocation9 [shape = 'u8[16384]{0}', space=vmem, size = 0x4000, scoped, tag = 'input window, operand 3, single buffered']
    #allocation10 [shape = 'u8[1024]{0}', space=vmem, size = 0x400, scoped, tag = 'input window, operand 4, single buffered']
    #allocation11 [shape = 's32[1]{0}', space=sflag, size = 0x4, scoped, tag = 'scoped memory for tpu_custom_call.1']
    #allocation12 [shape = 'u8[16384]{0}', space=vmem, size = 0x4000, scoped, tag = 'input window, operand 5, single buffered']
    #allocation13 [shape = 'u8[1024]{0}', space=vmem, size = 0x400, scoped, tag = 'input window, operand 6, single buffered']
    #allocation14 [shape = 's32[1]{0}', space=sflag, size = 0x4, scoped, tag = 'scoped memory for tpu_custom_call.1']
    #allocation15 [shape = 'u8[1024]{0}', space=vmem, size = 0x400, scoped, tag = 'input window, operand 7, single buffered']
    #allocation16 [shape = 'u8[1024]{0}', space=vmem, size = 0x400, scoped, tag = 'input window, operand 8, single buffered']
    #allocation17 [shape = 's32[1]{0}', space=sflag, size = 0x4, scoped, tag = 'scoped memory for tpu_custom_call.1']
    #allocation18 [shape = 'u8[16384]{0}', space=vmem, size = 0x4000, scoped, tag = 'input window, operand 9, single buffered']
    #allocation19 [shape = 'u8[1024]{0}', space=vmem, size = 0x400, scoped, tag = 'input window, operand 10, single buffered']
    #allocation20 [shape = 's32[1]{0}', space=sflag, size = 0x4, scoped, tag = 'scoped memory for tpu_custom_call.1']
    #allocation21 [shape = 'u8[65536]{0}', space=vmem, size = 0x10000, scoped, tag = 'input window, operand 11, single buffered']
    #allocation22 [shape = 'u8[1024]{0}', space=vmem, size = 0x400, scoped, tag = 'input window, operand 12, single buffered']
    #allocation23 [shape = 's32[1]{0}', space=sflag, size = 0x4, scoped, tag = 'scoped memory for tpu_custom_call.1']
    #allocation24 [shape = 'u8[1024]{0}', space=vmem, size = 0x400, scoped, tag = 'input window, operand 13, single buffered']
    #allocation25 [shape = 'u8[1024]{0}', space=vmem, size = 0x400, scoped, tag = 'input window, operand 14, single buffered']
    #allocation26 [shape = 's32[1]{0}', space=sflag, size = 0x4, scoped, tag = 'scoped memory for tpu_custom_call.1']
    #allocation27 [shape = 'u8[24576]{0}', space=vmem, size = 0x6000, scoped, tag = 'input window, operand 15, single buffered']
    #allocation28 [shape = 'u8[512]{0}', space=vmem, size = 0x400, scoped, tag = 'input window, operand 16, single buffered']
    #allocation29 [shape = 's32[1]{0}', space=sflag, size = 0x4, scoped, tag = 'scoped memory for tpu_custom_call.1']
    #allocation30 [shape = 'u8[512]{0}', space=vmem, size = 0x400, scoped, tag = 'input window, operand 17, single buffered']
    #allocation31 [shape = 'u8[512]{0}', space=vmem, size = 0x400, scoped, tag = 'input window, operand 18, single buffered']
    #allocation32 [shape = 's32[1]{0}', space=sflag, size = 0x4, scoped, tag = 'scoped memory for tpu_custom_call.1']
    #allocation33 [shape = 'u8[49152]{0}', space=vmem, size = 0xc000, scoped, tag = 'input window, operand 19, single buffered']
    #allocation34 [shape = 'u8[512]{0}', space=vmem, size = 0x400, scoped, tag = 'input window, operand 20, single buffered']
    #allocation35 [shape = 's32[1]{0}', space=sflag, size = 0x4, scoped, tag = 'scoped memory for tpu_custom_call.1']
    #allocation36 [shape = 'u8[512]{0}', space=vmem, size = 0x400, scoped, tag = 'input window, operand 21, single buffered']
    #allocation37 [shape = 'u8[512]{0}', space=vmem, size = 0x400, scoped, tag = 'input window, operand 22, single buffered']
    #allocation38 [shape = 's32[1]{0}', space=sflag, size = 0x4, scoped, tag = 'scoped memory for tpu_custom_call.1']
    #allocation39 [shape = 'u8[16384]{0}', space=vmem, size = 0x4000, scoped, tag = 'input window, operand 23, single buffered']
    #allocation40 [shape = 'u8[512]{0}', space=vmem, size = 0x400, scoped, tag = 'input window, operand 24, single buffered']
    #allocation41 [shape = 's32[1]{0}', space=sflag, size = 0x4, scoped, tag = 'scoped memory for tpu_custom_call.1']
    #allocation42 [shape = 'u8[8192]{0}', space=vmem, size = 0x2000, scoped, tag = 'output window, operand 0']
    #allocation43 [shape = 'u8[8192]{0}', space=vmem, size = 0x2000, scoped, tag = 'output window, operand 1']
    #allocation44 [shape = 's32[2]{0}', space=sflag, size = 0x8, scoped, tag = 'scoped memory for tpu_custom_call.1']
    %33 = vsyncpa [#allocation5], 0
    %s34 = scalar_lea.sflag [#allocation5], 1
    %35 = vsyncpa %s34, 0
    %36 = vsyncpa [#allocation8], 0
    %37 = vsyncpa [#allocation11], 0
    %38 = vsyncpa [#allocation14], 0
    %39 = vsyncpa [#allocation17], 0
    %40 = vsyncpa [#allocation20], 0
    %41 = vsyncpa [#allocation23], 0
    %42 = vsyncpa [#allocation26], 0
    %43 = vsyncpa [#allocation29], 0
    %44 = vsyncpa [#allocation32], 0
    %45 = vsyncpa [#allocation35], 0
    %46 = vsyncpa [#allocation38], 0
    %47 = vsyncpa [#allocation41], 0
    %48 = vsyncpa [#allocation6], 0
    %s49 = scalar_lea.sflag [#allocation6], 1
    %50 = vsyncpa %s49, 0
    %51 = vsyncpa [#allocation44], 0
    %s52 = scalar_lea.sflag [#allocation44], 1
    %53 = vsyncpa %s52, 0
    loop: start=0, step=1, limit=4
    $region2: #{tpu_custom_call.1} parent=1 // loop_pre_header
      _
    $region3: #{tpu_custom_call.1} parent=1 // loop_header
      %s55 = sphi 0, %s59
      %p56 = scmp.ge.s32.totalorder %s55, 4
      %s65 = sphi 0, %s67
      %s68 = sphi 0, %s65
      %s69 = sphi 0, %s68
      %s85 = sphi 0, %s69
      %s89 = sphi 0, %s89
      %s91 = sphi 0, %s89
      %s92 = sphi 0, %s91
      %s106 = sphi 0, %s92
      %s110 = sphi 0, %s110
      %s112 = sphi 0, %s110
      %s113 = sphi 0, %s112
      %s127 = sphi 0, %s113
      %s131 = sphi 0, %s131
      %s133 = sphi 0, %s131
      %s134 = sphi 0, %s133
      %s148 = sphi 0, %s134
      %s152 = sphi 0, %s152
      %s154 = sphi 0, %s152
      %s155 = sphi 0, %s154
      %s169 = sphi 0, %s155
      %s173 = sphi 0, %s173
      %s175 = sphi 0, %s173
      %s176 = sphi 0, %s175
      %s190 = sphi 0, %s176
      %s194 = sphi 0, %s194
      %s196 = sphi 0, %s194
      %s197 = sphi 0, %s196
      %s211 = sphi 0, %s197
      %s215 = sphi 0, %s215
      %s217 = sphi 0, %s215
      %s218 = sphi 0, %s217
      %s232 = sphi 0, %s218
      %s236 = sphi 0, %s236
      %s238 = sphi 0, %s236
      %s239 = sphi 0, %s238
      %s253 = sphi 0, %s239
      %s257 = sphi 0, %s257
      %s259 = sphi 0, %s257
      %s260 = sphi 0, %s259
      %s274 = sphi 0, %s260
      %s278 = sphi 0, %s278
      %s280 = sphi 0, %s278
      %s281 = sphi 0, %s280
      %s295 = sphi 0, %s281
      %s299 = sphi 0, %s299
      %s301 = sphi 0, %s299
      %s302 = sphi 0, %s301
      %s316 = sphi 0, %s302
      %s320 = sphi 0, %s320
      %s322 = sphi 0, %s320
      %s323 = sphi 0, %s322
      %s337 = sphi 0, %s323
      %s341 = sphi 0, %s341
      %s343 = sphi 0, %s341
      %s344 = sphi 0, %s343
      %s358 = sphi 0, %s344
      %s362 = sphi 0, %s362
      %s364 = sphi 0, %s362
      %s365 = sphi 0, %s364
      %s379 = sphi 0, %s365
      %s383 = sphi 0, %s383
      %s385 = sphi 0, %s383
      %s386 = sphi 0, %s385
      %s400 = sphi 0, %s386
      %s404 = sphi 0, %s404
      %s406 = sphi 0, %s404
      %s407 = sphi 0, %s406
      %s421 = sphi 0, %s407
      %s425 = sphi 0, %s425
      %s427 = sphi 0, %s425
      %s428 = sphi 0, %s427
      %s442 = sphi 0, %s428
      %s446 = sphi 0, %s446
      %s448 = sphi 0, %s446
      %s449 = sphi 0, %s448
      %s463 = sphi 0, %s449
      %s467 = sphi 0, %s467
      %s469 = sphi 0, %s467
      %s470 = sphi 0, %s469
      %s484 = sphi 0, %s470
      %s488 = sphi 0, %s488
      %s490 = sphi 0, %s488
      %s491 = sphi 0, %s490
      %s505 = sphi 0, %s491
      %s509 = sphi 0, %s509
      %s511 = sphi 0, %s509
      %s512 = sphi 0, %s511
      %s526 = sphi 0, %s512
      %s530 = sphi 0, %s530
      %s532 = sphi 0, %s530
      %s533 = sphi 0, %s532
      %s547 = sphi 0, %s533
      %s551 = sphi 0, %s551
      %s553 = sphi 0, %s551
      %s554 = sphi 0, %s553
      %s568 = sphi 0, %s554
      %s574 = sphi 0, %s576
      %s577 = sphi 0, %s574
      %s578 = sphi 0, %s577
      %s594 = sphi 0, %s578
      %s600 = sphi 0, %s602
      %s603 = sphi 0, %s600
      %s604 = sphi 0, %s603
      %s620 = sphi 0, %s604
    $region4: #{tpu_custom_call.1} parent=1 // loop_header_branch
      %58 = sbr.rel (%p56) target = $region8
    $region5: #{tpu_custom_call.1} parent=1 // loop_body
      %s60 = ssub.s32 %s55, 1
      %s61 = ssub.s32 %s55, 2
      %s62 = sadd.s32 %s55, 1
      %s63 = ssub.s32 %s55, %s62
      %p64 = scmp.eq.s32.totalorder %s63, 0
      %s66 = sadd.s32 %s65, 1
      %s67 = scalar_select %p64, %s65, %s66
      %p70 = pneg %p64
      %p71 = scmp.eq.s32.totalorder %s55, 1
      %p72 = por %p70, %p71
      %p73 = scmp.ne.s32.totalorder %s65, %s68
      %p74 = scmp.eq.s32.totalorder %s55, 0
      %p75 = por %p73, %p74
      %p76 = scmp.ne.s32.totalorder %s65, %s68
      %p77 = scmp.eq.s32.totalorder %s60, 1
      %p78 = por %p76, %p77
      %p79 = scmp.ne.s32.totalorder %s68, %s69
      %p80 = scmp.eq.s32.totalorder %s60, 0
      %p81 = por %p79, %p80
      %p82 = scmp.ne.s32.totalorder %s68, %s69
      %p83 = scmp.eq.s32.totalorder %s61, 1
      %p84 = por %p82, %p83
      %p86 = scmp.ne.s32.totalorder %s69, %s85
      %p87 = scmp.eq.s32.totalorder %s61, 0
      %p88 = por %p86, %p87
      %s90 = sadd.s32 %s89, 1
      %p93 = scmp.eq.s32.totalorder %s55, 1
      %p94 = scmp.ne.s32.totalorder %s89, %s91
      %p95 = scmp.eq.s32.totalorder %s55, 0
      %p96 = por %p94, %p95
      %p97 = scmp.ne.s32.totalorder %s89, %s91
      %p98 = scmp.eq.s32.totalorder %s60, 1
      %p99 = por %p97, %p98
      %p100 = scmp.ne.s32.totalorder %s91, %s92
      %p101 = scmp.eq.s32.totalorder %s60, 0
      %p102 = por %p100, %p101
      %p103 = scmp.ne.s32.totalorder %s91, %s92
      %p104 = scmp.eq.s32.totalorder %s61, 1
      %p105 = por %p103, %p104
      %p107 = scmp.ne.s32.totalorder %s92, %s106
      %p108 = scmp.eq.s32.totalorder %s61, 0
      %p109 = por %p107, %p108
      %s111 = sadd.s32 %s110, 1
      %p114 = scmp.eq.s32.totalorder %s55, 1
      %p115 = scmp.ne.s32.totalorder %s110, %s112
      %p116 = scmp.eq.s32.totalorder %s55, 0
      %p117 = por %p115, %p116
      %p118 = scmp.ne.s32.totalorder %s110, %s112
      %p119 = scmp.eq.s32.totalorder %s60, 1
      %p120 = por %p118, %p119
      %p121 = scmp.ne.s32.totalorder %s112, %s113
      %p122 = scmp.eq.s32.totalorder %s60, 0
      %p123 = por %p121, %p122
      %p124 = scmp.ne.s32.totalorder %s112, %s113
      %p125 = scmp.eq.s32.totalorder %s61, 1
      %p126 = por %p124, %p125
      %p128 = scmp.ne.s32.totalorder %s113, %s127
      %p129 = scmp.eq.s32.totalorder %s61, 0
      %p130 = por %p128, %p129
      %s132 = sadd.s32 %s131, 1
      %p135 = scmp.eq.s32.totalorder %s55, 1
      %p136 = scmp.ne.s32.totalorder %s131, %s133
      %p137 = scmp.eq.s32.totalorder %s55, 0
      %p138 = por %p136, %p137
      %p139 = scmp.ne.s32.totalorder %s131, %s133
      %p140 = scmp.eq.s32.totalorder %s60, 1
      %p141 = por %p139, %p140
      %p142 = scmp.ne.s32.totalorder %s133, %s134
      %p143 = scmp.eq.s32.totalorder %s60, 0
      %p144 = por %p142, %p143
      %p145 = scmp.ne.s32.totalorder %s133, %s134
      %p146 = scmp.eq.s32.totalorder %s61, 1
      %p147 = por %p145, %p146
      %p149 = scmp.ne.s32.totalorder %s134, %s148
      %p150 = scmp.eq.s32.totalorder %s61, 0
      %p151 = por %p149, %p150
      %s153 = sadd.s32 %s152, 1
      %p156 = scmp.eq.s32.totalorder %s55, 1
      %p157 = scmp.ne.s32.totalorder %s152, %s154
      %p158 = scmp.eq.s32.totalorder %s55, 0
      %p159 = por %p157, %p158
      %p160 = scmp.ne.s32.totalorder %s152, %s154
      %p161 = scmp.eq.s32.totalorder %s60, 1
      %p162 = por %p160, %p161
      %p163 = scmp.ne.s32.totalorder %s154, %s155
      %p164 = scmp.eq.s32.totalorder %s60, 0
      %p165 = por %p163, %p164
      %p166 = scmp.ne.s32.totalorder %s154, %s155
      %p167 = scmp.eq.s32.totalorder %s61, 1
      %p168 = por %p166, %p167
      %p170 = scmp.ne.s32.totalorder %s155, %s169
      %p171 = scmp.eq.s32.totalorder %s61, 0
      %p172 = por %p170, %p171
      %s174 = sadd.s32 %s173, 1
      %p177 = scmp.eq.s32.totalorder %s55, 1
      %p178 = scmp.ne.s32.totalorder %s173, %s175
      %p179 = scmp.eq.s32.totalorder %s55, 0
      %p180 = por %p178, %p179
      %p181 = scmp.ne.s32.totalorder %s173, %s175
      %p182 = scmp.eq.s32.totalorder %s60, 1
      %p183 = por %p181, %p182
      %p184 = scmp.ne.s32.totalorder %s175, %s176
      %p185 = scmp.eq.s32.totalorder %s60, 0
      %p186 = por %p184, %p185
      %p187 = scmp.ne.s32.totalorder %s175, %s176
      %p188 = scmp.eq.s32.totalorder %s61, 1
      %p189 = por %p187, %p188
      %p191 = scmp.ne.s32.totalorder %s176, %s190
      %p192 = scmp.eq.s32.totalorder %s61, 0
      %p193 = por %p191, %p192
      %s195 = sadd.s32 %s194, 1
      %p198 = scmp.eq.s32.totalorder %s55, 1
      %p199 = scmp.ne.s32.totalorder %s194, %s196
      %p200 = scmp.eq.s32.totalorder %s55, 0
      %p201 = por %p199, %p200
      %p202 = scmp.ne.s32.totalorder %s194, %s196
      %p203 = scmp.eq.s32.totalorder %s60, 1
      %p204 = por %p202, %p203
      %p205 = scmp.ne.s32.totalorder %s196, %s197
      %p206 = scmp.eq.s32.totalorder %s60, 0
      %p207 = por %p205, %p206
      %p208 = scmp.ne.s32.totalorder %s196, %s197
      %p209 = scmp.eq.s32.totalorder %s61, 1
      %p210 = por %p208, %p209
      %p212 = scmp.ne.s32.totalorder %s197, %s211
      %p213 = scmp.eq.s32.totalorder %s61, 0
      %p214 = por %p212, %p213
      %s216 = sadd.s32 %s215, 1
      %p219 = scmp.eq.s32.totalorder %s55, 1
      %p220 = scmp.ne.s32.totalorder %s215, %s217
      %p221 = scmp.eq.s32.totalorder %s55, 0
      %p222 = por %p220, %p221
      %p223 = scmp.ne.s32.totalorder %s215, %s217
      %p224 = scmp.eq.s32.totalorder %s60, 1
      %p225 = por %p223, %p224
      %p226 = scmp.ne.s32.totalorder %s217, %s218
      %p227 = scmp.eq.s32.totalorder %s60, 0
      %p228 = por %p226, %p227
      %p229 = scmp.ne.s32.totalorder %s217, %s218
      %p230 = scmp.eq.s32.totalorder %s61, 1
      %p231 = por %p229, %p230
      %p233 = scmp.ne.s32.totalorder %s218, %s232
      %p234 = scmp.eq.s32.totalorder %s61, 0
      %p235 = por %p233, %p234
      %s237 = sadd.s32 %s236, 1
      %p240 = scmp.eq.s32.totalorder %s55, 1
      %p241 = scmp.ne.s32.totalorder %s236, %s238
      %p242 = scmp.eq.s32.totalorder %s55, 0
      %p243 = por %p241, %p242
      %p244 = scmp.ne.s32.totalorder %s236, %s238
      %p245 = scmp.eq.s32.totalorder %s60, 1
      %p246 = por %p244, %p245
      %p247 = scmp.ne.s32.totalorder %s238, %s239
      %p248 = scmp.eq.s32.totalorder %s60, 0
      %p249 = por %p247, %p248
      %p250 = scmp.ne.s32.totalorder %s238, %s239
      %p251 = scmp.eq.s32.totalorder %s61, 1
      %p252 = por %p250, %p251
      %p254 = scmp.ne.s32.totalorder %s239, %s253
      %p255 = scmp.eq.s32.totalorder %s61, 0
      %p256 = por %p254, %p255
      %s258 = sadd.s32 %s257, 1
      %p261 = scmp.eq.s32.totalorder %s55, 1
      %p262 = scmp.ne.s32.totalorder %s257, %s259
      %p263 = scmp.eq.s32.totalorder %s55, 0
      %p264 = por %p262, %p263
      %p265 = scmp.ne.s32.totalorder %s257, %s259
      %p266 = scmp.eq.s32.totalorder %s60, 1
      %p267 = por %p265, %p266
      %p268 = scmp.ne.s32.totalorder %s259, %s260
      %p269 = scmp.eq.s32.totalorder %s60, 0
      %p270 = por %p268, %p269
      %p271 = scmp.ne.s32.totalorder %s259, %s260
      %p272 = scmp.eq.s32.totalorder %s61, 1
      %p273 = por %p271, %p272
      %p275 = scmp.ne.s32.totalorder %s260, %s274
      %p276 = scmp.eq.s32.totalorder %s61, 0
      %p277 = por %p275, %p276
      %s279 = sadd.s32 %s278, 1
      %p282 = scmp.eq.s32.totalorder %s55, 1
      %p283 = scmp.ne.s32.totalorder %s278, %s280
      %p284 = scmp.eq.s32.totalorder %s55, 0
      %p285 = por %p283, %p284
      %p286 = scmp.ne.s32.totalorder %s278, %s280
      %p287 = scmp.eq.s32.totalorder %s60, 1
      %p288 = por %p286, %p287
      %p289 = scmp.ne.s32.totalorder %s280, %s281
      %p290 = scmp.eq.s32.totalorder %s60, 0
      %p291 = por %p289, %p290
      %p292 = scmp.ne.s32.totalorder %s280, %s281
      %p293 = scmp.eq.s32.totalorder %s61, 1
      %p294 = por %p292, %p293
      %p296 = scmp.ne.s32.totalorder %s281, %s295
      %p297 = scmp.eq.s32.totalorder %s61, 0
      %p298 = por %p296, %p297
      %s300 = sadd.s32 %s299, 1
      %p303 = scmp.eq.s32.totalorder %s55, 1
      %p304 = scmp.ne.s32.totalorder %s299, %s301
      %p305 = scmp.eq.s32.totalorder %s55, 0
      %p306 = por %p304, %p305
      %p307 = scmp.ne.s32.totalorder %s299, %s301
      %p308 = scmp.eq.s32.totalorder %s60, 1
      %p309 = por %p307, %p308
      %p310 = scmp.ne.s32.totalorder %s301, %s302
      %p311 = scmp.eq.s32.totalorder %s60, 0
      %p312 = por %p310, %p311
      %p313 = scmp.ne.s32.totalorder %s301, %s302
      %p314 = scmp.eq.s32.totalorder %s61, 1
      %p315 = por %p313, %p314
      %p317 = scmp.ne.s32.totalorder %s302, %s316
      %p318 = scmp.eq.s32.totalorder %s61, 0
      %p319 = por %p317, %p318
      %s321 = sadd.s32 %s320, 1
      %p324 = scmp.eq.s32.totalorder %s55, 1
      %p325 = scmp.ne.s32.totalorder %s320, %s322
      %p326 = scmp.eq.s32.totalorder %s55, 0
      %p327 = por %p325, %p326
      %p328 = scmp.ne.s32.totalorder %s320, %s322
      %p329 = scmp.eq.s32.totalorder %s60, 1
      %p330 = por %p328, %p329
      %p331 = scmp.ne.s32.totalorder %s322, %s323
      %p332 = scmp.eq.s32.totalorder %s60, 0
      %p333 = por %p331, %p332
      %p334 = scmp.ne.s32.totalorder %s322, %s323
      %p335 = scmp.eq.s32.totalorder %s61, 1
      %p336 = por %p334, %p335
      %p338 = scmp.ne.s32.totalorder %s323, %s337
      %p339 = scmp.eq.s32.totalorder %s61, 0
      %p340 = por %p338, %p339
      %s342 = sadd.s32 %s341, 1
      %p345 = scmp.eq.s32.totalorder %s55, 1
      %p346 = scmp.ne.s32.totalorder %s341, %s343
      %p347 = scmp.eq.s32.totalorder %s55, 0
      %p348 = por %p346, %p347
      %p349 = scmp.ne.s32.totalorder %s341, %s343
      %p350 = scmp.eq.s32.totalorder %s60, 1
      %p351 = por %p349, %p350
      %p352 = scmp.ne.s32.totalorder %s343, %s344
      %p353 = scmp.eq.s32.totalorder %s60, 0
      %p354 = por %p352, %p353
      %p355 = scmp.ne.s32.totalorder %s343, %s344
      %p356 = scmp.eq.s32.totalorder %s61, 1
      %p357 = por %p355, %p356
      %p359 = scmp.ne.s32.totalorder %s344, %s358
      %p360 = scmp.eq.s32.totalorder %s61, 0
      %p361 = por %p359, %p360
      %s363 = sadd.s32 %s362, 1
      %p366 = scmp.eq.s32.totalorder %s55, 1
      %p367 = scmp.ne.s32.totalorder %s362, %s364
      %p368 = scmp.eq.s32.totalorder %s55, 0
      %p369 = por %p367, %p368
      %p370 = scmp.ne.s32.totalorder %s362, %s364
      %p371 = scmp.eq.s32.totalorder %s60, 1
      %p372 = por %p370, %p371
      %p373 = scmp.ne.s32.totalorder %s364, %s365
      %p374 = scmp.eq.s32.totalorder %s60, 0
      %p375 = por %p373, %p374
      %p376 = scmp.ne.s32.totalorder %s364, %s365
      %p377 = scmp.eq.s32.totalorder %s61, 1
      %p378 = por %p376, %p377
      %p380 = scmp.ne.s32.totalorder %s365, %s379
      %p381 = scmp.eq.s32.totalorder %s61, 0
      %p382 = por %p380, %p381
      %s384 = sadd.s32 %s383, 1
      %p387 = scmp.eq.s32.totalorder %s55, 1
      %p388 = scmp.ne.s32.totalorder %s383, %s385
      %p389 = scmp.eq.s32.totalorder %s55, 0
      %p390 = por %p388, %p389
      %p391 = scmp.ne.s32.totalorder %s383, %s385
      %p392 = scmp.eq.s32.totalorder %s60, 1
      %p393 = por %p391, %p392
      %p394 = scmp.ne.s32.totalorder %s385, %s386
      %p395 = scmp.eq.s32.totalorder %s60, 0
      %p396 = por %p394, %p395
      %p397 = scmp.ne.s32.totalorder %s385, %s386
      %p398 = scmp.eq.s32.totalorder %s61, 1
      %p399 = por %p397, %p398
      %p401 = scmp.ne.s32.totalorder %s386, %s400
      %p402 = scmp.eq.s32.totalorder %s61, 0
      %p403 = por %p401, %p402
      %s405 = sadd.s32 %s404, 1
      %p408 = scmp.eq.s32.totalorder %s55, 1
      %p409 = scmp.ne.s32.totalorder %s404, %s406
      %p410 = scmp.eq.s32.totalorder %s55, 0
      %p411 = por %p409, %p410
      %p412 = scmp.ne.s32.totalorder %s404, %s406
      %p413 = scmp.eq.s32.totalorder %s60, 1
      %p414 = por %p412, %p413
      %p415 = scmp.ne.s32.totalorder %s406, %s407
      %p416 = scmp.eq.s32.totalorder %s60, 0
      %p417 = por %p415, %p416
      %p418 = scmp.ne.s32.totalorder %s406, %s407
      %p419 = scmp.eq.s32.totalorder %s61, 1
      %p420 = por %p418, %p419
      %p422 = scmp.ne.s32.totalorder %s407, %s421
      %p423 = scmp.eq.s32.totalorder %s61, 0
      %p424 = por %p422, %p423
      %s426 = sadd.s32 %s425, 1
      %p429 = scmp.eq.s32.totalorder %s55, 1
      %p430 = scmp.ne.s32.totalorder %s425, %s427
      %p431 = scmp.eq.s32.totalorder %s55, 0
      %p432 = por %p430, %p431
      %p433 = scmp.ne.s32.totalorder %s425, %s427
      %p434 = scmp.eq.s32.totalorder %s60, 1
      %p435 = por %p433, %p434
      %p436 = scmp.ne.s32.totalorder %s427, %s428
      %p437 = scmp.eq.s32.totalorder %s60, 0
      %p438 = por %p436, %p437
      %p439 = scmp.ne.s32.totalorder %s427, %s428
      %p440 = scmp.eq.s32.totalorder %s61, 1
      %p441 = por %p439, %p440
      %p443 = scmp.ne.s32.totalorder %s428, %s442
      %p444 = scmp.eq.s32.totalorder %s61, 0
      %p445 = por %p443, %p444
      %s447 = sadd.s32 %s446, 1
      %p450 = scmp.eq.s32.totalorder %s55, 1
      %p451 = scmp.ne.s32.totalorder %s446, %s448
      %p452 = scmp.eq.s32.totalorder %s55, 0
      %p453 = por %p451, %p452
      %p454 = scmp.ne.s32.totalorder %s446, %s448
      %p455 = scmp.eq.s32.totalorder %s60, 1
      %p456 = por %p454, %p455
      %p457 = scmp.ne.s32.totalorder %s448, %s449
      %p458 = scmp.eq.s32.totalorder %s60, 0
      %p459 = por %p457, %p458
      %p460 = scmp.ne.s32.totalorder %s448, %s449
      %p461 = scmp.eq.s32.totalorder %s61, 1
      %p462 = por %p460, %p461
      %p464 = scmp.ne.s32.totalorder %s449, %s463
      %p465 = scmp.eq.s32.totalorder %s61, 0
      %p466 = por %p464, %p465
      %s468 = sadd.s32 %s467, 1
      %p471 = scmp.eq.s32.totalorder %s55, 1
      %p472 = scmp.ne.s32.totalorder %s467, %s469
      %p473 = scmp.eq.s32.totalorder %s55, 0
      %p474 = por %p472, %p473
      %p475 = scmp.ne.s32.totalorder %s467, %s469
      %p476 = scmp.eq.s32.totalorder %s60, 1
      %p477 = por %p475, %p476
      %p478 = scmp.ne.s32.totalorder %s469, %s470
      %p479 = scmp.eq.s32.totalorder %s60, 0
      %p480 = por %p478, %p479
      %p481 = scmp.ne.s32.totalorder %s469, %s470
      %p482 = scmp.eq.s32.totalorder %s61, 1
      %p483 = por %p481, %p482
      %p485 = scmp.ne.s32.totalorder %s470, %s484
      %p486 = scmp.eq.s32.totalorder %s61, 0
      %p487 = por %p485, %p486
      %s489 = sadd.s32 %s488, 1
      %p492 = scmp.eq.s32.totalorder %s55, 1
      %p493 = scmp.ne.s32.totalorder %s488, %s490
      %p494 = scmp.eq.s32.totalorder %s55, 0
      %p495 = por %p493, %p494
      %p496 = scmp.ne.s32.totalorder %s488, %s490
      %p497 = scmp.eq.s32.totalorder %s60, 1
      %p498 = por %p496, %p497
      %p499 = scmp.ne.s32.totalorder %s490, %s491
      %p500 = scmp.eq.s32.totalorder %s60, 0
      %p501 = por %p499, %p500
      %p502 = scmp.ne.s32.totalorder %s490, %s491
      %p503 = scmp.eq.s32.totalorder %s61, 1
      %p504 = por %p502, %p503
      %p506 = scmp.ne.s32.totalorder %s491, %s505
      %p507 = scmp.eq.s32.totalorder %s61, 0
      %p508 = por %p506, %p507
      %s510 = sadd.s32 %s509, 1
      %p513 = scmp.eq.s32.totalorder %s55, 1
      %p514 = scmp.ne.s32.totalorder %s509, %s511
      %p515 = scmp.eq.s32.totalorder %s55, 0
      %p516 = por %p514, %p515
      %p517 = scmp.ne.s32.totalorder %s509, %s511
      %p518 = scmp.eq.s32.totalorder %s60, 1
      %p519 = por %p517, %p518
      %p520 = scmp.ne.s32.totalorder %s511, %s512
      %p521 = scmp.eq.s32.totalorder %s60, 0
      %p522 = por %p520, %p521
      %p523 = scmp.ne.s32.totalorder %s511, %s512
      %p524 = scmp.eq.s32.totalorder %s61, 1
      %p525 = por %p523, %p524
      %p527 = scmp.ne.s32.totalorder %s512, %s526
      %p528 = scmp.eq.s32.totalorder %s61, 0
      %p529 = por %p527, %p528
      %s531 = sadd.s32 %s530, 1
      %p534 = scmp.eq.s32.totalorder %s55, 1
      %p535 = scmp.ne.s32.totalorder %s530, %s532
      %p536 = scmp.eq.s32.totalorder %s55, 0
      %p537 = por %p535, %p536
      %p538 = scmp.ne.s32.totalorder %s530, %s532
      %p539 = scmp.eq.s32.totalorder %s60, 1
      %p540 = por %p538, %p539
      %p541 = scmp.ne.s32.totalorder %s532, %s533
      %p542 = scmp.eq.s32.totalorder %s60, 0
      %p543 = por %p541, %p542
      %p544 = scmp.ne.s32.totalorder %s532, %s533
      %p545 = scmp.eq.s32.totalorder %s61, 1
      %p546 = por %p544, %p545
      %p548 = scmp.ne.s32.totalorder %s533, %s547
      %p549 = scmp.eq.s32.totalorder %s61, 0
      %p550 = por %p548, %p549
      %s552 = sadd.s32 %s551, 1
      %p555 = scmp.eq.s32.totalorder %s55, 1
      %p556 = scmp.ne.s32.totalorder %s551, %s553
      %p557 = scmp.eq.s32.totalorder %s55, 0
      %p558 = por %p556, %p557
      %p559 = scmp.ne.s32.totalorder %s551, %s553
      %p560 = scmp.eq.s32.totalorder %s60, 1
      %p561 = por %p559, %p560
      %p562 = scmp.ne.s32.totalorder %s553, %s554
      %p563 = scmp.eq.s32.totalorder %s60, 0
      %p564 = por %p562, %p563
      %p565 = scmp.ne.s32.totalorder %s553, %s554
      %p566 = scmp.eq.s32.totalorder %s61, 1
      %p567 = por %p565, %p566
      %p569 = scmp.ne.s32.totalorder %s554, %s568
      %p570 = scmp.eq.s32.totalorder %s61, 0
      %p571 = por %p569, %p570
      %s572 = ssub.s32 %s55, %s62
      %p573 = scmp.eq.s32.totalorder %s572, 0
      %s575 = sadd.s32 %s574, 1
      %s576 = scalar_select %p573, %s574, %s575
      %p579 = pneg %p573
      %p580 = scmp.eq.s32.totalorder %s55, 1
      %p581 = por %p579, %p580
      %p582 = scmp.ne.s32.totalorder %s574, %s577
      %p583 = scmp.eq.s32.totalorder %s55, 0
      %p584 = por %p582, %p583
      %p585 = scmp.ne.s32.totalorder %s574, %s577
      %p586 = scmp.eq.s32.totalorder %s60, 1
      %p587 = por %p585, %p586
      %p588 = scmp.ne.s32.totalorder %s577, %s578
      %p589 = scmp.eq.s32.totalorder %s60, 0
      %p590 = por %p588, %p589
      %p591 = scmp.ne.s32.totalorder %s577, %s578
      %p592 = scmp.eq.s32.totalorder %s61, 1
      %p593 = por %p591, %p592
      %p595 = scmp.ne.s32.totalorder %s578, %s594
      %p596 = scmp.eq.s32.totalorder %s61, 0
      %p597 = por %p595, %p596
      %s598 = ssub.s32 %s55, %s62
      %p599 = scmp.eq.s32.totalorder %s598, 0
      %s601 = sadd.s32 %s600, 1
      %s602 = scalar_select %p599, %s600, %s601
      %p605 = pneg %p599
      %p606 = scmp.eq.s32.totalorder %s55, 1
      %p607 = por %p605, %p606
      %p608 = scmp.ne.s32.totalorder %s600, %s603
      %p609 = scmp.eq.s32.totalorder %s55, 0
      %p610 = por %p608, %p609
      %p611 = scmp.ne.s32.totalorder %s600, %s603
      %p612 = scmp.eq.s32.totalorder %s60, 1
      %p613 = por %p611, %p612
      %p614 = scmp.ne.s32.totalorder %s603, %s604
      %p615 = scmp.eq.s32.totalorder %s60, 0
      %p616 = por %p614, %p615
      %p617 = scmp.ne.s32.totalorder %s603, %s604
      %p618 = scmp.eq.s32.totalorder %s61, 1
      %p619 = por %p617, %p618
      %p621 = scmp.ne.s32.totalorder %s604, %s620
      %p622 = scmp.eq.s32.totalorder %s61, 0
      %p623 = por %p621, %p622
      %p624 = scmp.le.s32.totalorder 1, %s55
      %p625 = scmp.lt.s32.totalorder %s55, 3
      %p626 = pnand %p624, %p625
      %p627 = pneg %p626
      // Predicated region
      $region9: #{tpu_custom_call.1} parent=5 // pred_check
        _
      $region10: #{tpu_custom_call.1} parent=5 // pred_check_branch
        %629 = sbr.rel (%p626) target = $region12
      $region11: #{tpu_custom_call.1} parent=5 // pred_region
        %s630 = ssub.s32 %s55, 1
        // Predicated region
        $region13: #{tpu_custom_call.1} parent=11 // pred_check
          %p631 = pneg %p102
        $region14: #{tpu_custom_call.1} parent=11 // pred_check_branch
          %633 = sbr.rel (%p631) target = $region16
        $region15: #{tpu_custom_call.1} parent=11 // pred_region
          %s635 = ssub.s32 128, 128
          %636 = vsyncadd [#allocation8], %s635
          %s638 = sshll.u32 [#allocation7], 4
          %s639 = int_to_ptr.vmem [resolvable:$true] %s638
          %641 = dma.hbm_to_vmem [thread:$0]  %s2, 128, %s639, [#allocation8]
        $region16: #{tpu_custom_call.1} parent=11 // pred_fallthru
          _
        // Predicated region
        $region17: #{tpu_custom_call.1} parent=11 // pred_check
          %p642 = pneg %p123
        $region18: #{tpu_custom_call.1} parent=11 // pred_check_branch
          %644 = sbr.rel (%p642) target = $region20
        $region19: #{tpu_custom_call.1} parent=11 // pred_region
          %s646 = ssub.s32 512, 512
          %647 = vsyncadd [#allocation8], %s646
          %s648 = sshll.u32 [#allocation9], 4
          %s649 = int_to_ptr.vmem [resolvable:$true] %s648
          %654 = dma.hbm_to_vmem [thread:$0]  %s3, 512, %s649, [#allocation8], 64, 64, 4
        $region20: #{tpu_custom_call.1} parent=11 // pred_fallthru
          _
        // Predicated region
        $region21: #{tpu_custom_call.1} parent=11 // pred_check
          %p655 = pneg %p144
        $region22: #{tpu_custom_call.1} parent=11 // pred_check_branch
          %657 = sbr.rel (%p655) target = $region24
        $region23: #{tpu_custom_call.1} parent=11 // pred_region
          %s659 = ssub.s32 32, 32
          %660 = vsyncadd [#allocation11], %s659
          %s661 = sshll.u32 [#allocation10], 4
          %s662 = int_to_ptr.vmem [resolvable:$true] %s661
          %667 = dma.hbm_to_vmem [thread:$0]  %s4, 32, %s662, [#allocation11], 16, 16, 1
        $region24: #{tpu_custom_call.1} parent=11 // pred_fallthru
          _
        // Predicated region
        $region25: #{tpu_custom_call.1} parent=11 // pred_check
          %p668 = pneg %p165
        $region26: #{tpu_custom_call.1} parent=11 // pred_check_branch
          %670 = sbr.rel (%p668) target = $region28
        $region27: #{tpu_custom_call.1} parent=11 // pred_region
          %s672 = ssub.s32 512, 512
          %673 = vsyncadd [#allocation11], %s672
          %s674 = sshll.u32 [#allocation12], 4
          %s675 = int_to_ptr.vmem [resolvable:$true] %s674
          %680 = dma.hbm_to_vmem [thread:$0]  %s5, 512, %s675, [#allocation11], 64, 64, 4
        $region28: #{tpu_custom_call.1} parent=11 // pred_fallthru
          _
        // Predicated region
        $region29: #{tpu_custom_call.1} parent=11 // pred_check
          %p681 = pneg %p186
        $region30: #{tpu_custom_call.1} parent=11 // pred_check_branch
          %683 = sbr.rel (%p681) target = $region32
        $region31: #{tpu_custom_call.1} parent=11 // pred_region
          %s685 = ssub.s32 32, 32
          %686 = vsyncadd [#allocation14], %s685
          %s687 = sshll.u32 [#allocation13], 4
          %s688 = int_to_ptr.vmem [resolvable:$true] %s687
          %693 = dma.hbm_to_vmem [thread:$0]  %s6, 32, %s688, [#allocation14], 16, 16, 1
        $region32: #{tpu_custom_call.1} parent=11 // pred_fallthru
          _
        // Predicated region
        $region33: #{tpu_custom_call.1} parent=11 // pred_check
          %p694 = pneg %p207
        $region34: #{tpu_custom_call.1} parent=11 // pred_check_branch
          %696 = sbr.rel (%p694) target = $region36
        $region35: #{tpu_custom_call.1} parent=11 // pred_region
          %s698 = ssub.s32 32, 32
          %699 = vsyncadd [#allocation14], %s698
          %s700 = sshll.u32 [#allocation15], 4
          %s701 = int_to_ptr.vmem [resolvable:$true] %s700
          %706 = dma.hbm_to_vmem [thread:$0]  %s7, 32, %s701, [#allocation14], 16, 16, 1
        $region36: #{tpu_custom_call.1} parent=11 // pred_fallthru
          _
        // Predicated region
        $region37: #{tpu_custom_call.1} parent=11 // pred_check
          %p707 = pneg %p228
        $region38: #{tpu_custom_call.1} parent=11 // pred_check_branch
          %709 = sbr.rel (%p707) target = $region40
        $region39: #{tpu_custom_call.1} parent=11 // pred_region
          %s711 = ssub.s32 32, 32
          %712 = vsyncadd [#allocation17], %s711
          %s713 = sshll.u32 [#allocation16], 4
          %s714 = int_to_ptr.vmem [resolvable:$true] %s713
          %719 = dma.hbm_to_vmem [thread:$0]  %s8, 32, %s714, [#allocation17], 16, 16, 1
        $region40: #{tpu_custom_call.1} parent=11 // pred_fallthru
          _
        // Predicated region
        $region41: #{tpu_custom_call.1} parent=11 // pred_check
          %p720 = pneg %p249
        $region42: #{tpu_custom_call.1} parent=11 // pred_check_branch
          %722 = sbr.rel (%p720) target = $region44
        $region43: #{tpu_custom_call.1} parent=11 // pred_region
          %s724 = ssub.s32 512, 512
          %725 = vsyncadd [#allocation17], %s724
          %s726 = sshll.u32 [#allocation18], 4
          %s727 = int_to_ptr.vmem [resolvable:$true] %s726
          %732 = dma.hbm_to_vmem [thread:$0]  %s9, 512, %s727, [#allocation17], 64, 64, 4
        $region44: #{tpu_custom_call.1} parent=11 // pred_fallthru
          _
        // Predicated region
        $region45: #{tpu_custom_call.1} parent=11 // pred_check
          %p733 = pneg %p270
        $region46: #{tpu_custom_call.1} parent=11 // pred_check_branch
          %735 = sbr.rel (%p733) target = $region48
        $region47: #{tpu_custom_call.1} parent=11 // pred_region
          %s737 = ssub.s32 32, 32
          %738 = vsyncadd [#allocation20], %s737
          %s739 = sshll.u32 [#allocation19], 4
          %s740 = int_to_ptr.vmem [resolvable:$true] %s739
          %745 = dma.hbm_to_vmem [thread:$0]  %s10, 32, %s740, [#allocation20], 16, 16, 1
        $region48: #{tpu_custom_call.1} parent=11 // pred_fallthru
          _
        // Predicated region
        $region49: #{tpu_custom_call.1} parent=11 // pred_check
          %p746 = pneg %p291
        $region50: #{tpu_custom_call.1} parent=11 // pred_check_branch
          %748 = sbr.rel (%p746) target = $region52
        $region51: #{tpu_custom_call.1} parent=11 // pred_region
          %s750 = ssub.s32 2048, 2048
          %751 = vsyncadd [#allocation20], %s750
          %s752 = sshll.u32 [#allocation21], 4
          %s753 = int_to_ptr.vmem [resolvable:$true] %s752
          %758 = dma.hbm_to_vmem [thread:$0]  %s11, 2048, %s753, [#allocation20], 64, 64, 4
        $region52: #{tpu_custom_call.1} parent=11 // pred_fallthru
          _
        // Predicated region
        $region53: #{tpu_custom_call.1} parent=11 // pred_check
          %p759 = pneg %p312
        $region54: #{tpu_custom_call.1} parent=11 // pred_check_branch
          %761 = sbr.rel (%p759) target = $region56
        $region55: #{tpu_custom_call.1} parent=11 // pred_region
          %s763 = ssub.s32 32, 32
          %764 = vsyncadd [#allocation23], %s763
          %s765 = sshll.u32 [#allocation22], 4
          %s766 = int_to_ptr.vmem [resolvable:$true] %s765
          %771 = dma.hbm_to_vmem [thread:$0]  %s12, 32, %s766, [#allocation23], 16, 16, 1
        $region56: #{tpu_custom_call.1} parent=11 // pred_fallthru
          _
        // Predicated region
        $region57: #{tpu_custom_call.1} parent=11 // pred_check
          %p772 = pneg %p333
        $region58: #{tpu_custom_call.1} parent=11 // pred_check_branch
          %774 = sbr.rel (%p772) target = $region60
        $region59: #{tpu_custom_call.1} parent=11 // pred_region
          %s776 = ssub.s32 32, 32
          %777 = vsyncadd [#allocation23], %s776
          %s778 = sshll.u32 [#allocation24], 4
          %s779 = int_to_ptr.vmem [resolvable:$true] %s778
          %784 = dma.hbm_to_vmem [thread:$0]  %s13, 32, %s779, [#allocation23], 16, 16, 1
        $region60: #{tpu_custom_call.1} parent=11 // pred_fallthru
          _
        // Predicated region
        $region61: #{tpu_custom_call.1} parent=11 // pred_check
          %p785 = pneg %p354
        $region62: #{tpu_custom_call.1} parent=11 // pred_check_branch
          %787 = sbr.rel (%p785) target = $region64
        $region63: #{tpu_custom_call.1} parent=11 // pred_region
          %s789 = ssub.s32 32, 32
          %790 = vsyncadd [#allocation26], %s789
          %s791 = sshll.u32 [#allocation25], 4
          %s792 = int_to_ptr.vmem [resolvable:$true] %s791
          %797 = dma.hbm_to_vmem [thread:$0]  %s14, 32, %s792, [#allocation26], 16, 16, 1
        $region64: #{tpu_custom_call.1} parent=11 // pred_fallthru
          _
        // Predicated region
        $region65: #{tpu_custom_call.1} parent=11 // pred_check
          %p798 = pneg %p375
        $region66: #{tpu_custom_call.1} parent=11 // pred_check_branch
          %800 = sbr.rel (%p798) target = $region68
        $region67: #{tpu_custom_call.1} parent=11 // pred_region
          %s802 = ssub.s32 768, 768
          %803 = vsyncadd [#allocation26], %s802
          %s804 = sshll.u32 [#allocation27], 4
          %s805 = int_to_ptr.vmem [resolvable:$true] %s804
          %810 = dma.hbm_to_vmem [thread:$0]  %s15, 768, %s805, [#allocation26], 64, 64, 4
        $region68: #{tpu_custom_call.1} parent=11 // pred_fallthru
          _
        // Predicated region
        $region69: #{tpu_custom_call.1} parent=11 // pred_check
          %p811 = pneg %p396
        $region70: #{tpu_custom_call.1} parent=11 // pred_check_branch
          %813 = sbr.rel (%p811) target = $region72
        $region71: #{tpu_custom_call.1} parent=11 // pred_region
          %s815 = ssub.s32 16, 16
          %816 = vsyncadd [#allocation29], %s815
          %s818 = sshll.u32 [#allocation28], 4
          %s819 = int_to_ptr.vmem [resolvable:$true] %s818
          %821 = dma.hbm_to_vmem [thread:$0]  %s16, 16, %s819, [#allocation29]
        $region72: #{tpu_custom_call.1} parent=11 // pred_fallthru
          _
        // Predicated region
        $region73: #{tpu_custom_call.1} parent=11 // pred_check
          %p822 = pneg %p417
        $region74: #{tpu_custom_call.1} parent=11 // pred_check_branch
          %824 = sbr.rel (%p822) target = $region76
        $region75: #{tpu_custom_call.1} parent=11 // pred_region
          %s826 = ssub.s32 16, 16
          %827 = vsyncadd [#allocation29], %s826
          %s829 = sshll.u32 [#allocation30], 4
          %s830 = int_to_ptr.vmem [resolvable:$true] %s829
          %832 = dma.hbm_to_vmem [thread:$0]  %s17, 16, %s830, [#allocation29]
        $region76: #{tpu_custom_call.1} parent=11 // pred_fallthru
          _
        // Predicated region
        $region77: #{tpu_custom_call.1} parent=11 // pred_check
          %p833 = pneg %p438
        $region78: #{tpu_custom_call.1} parent=11 // pred_check_branch
          %835 = sbr.rel (%p833) target = $region80
        $region79: #{tpu_custom_call.1} parent=11 // pred_region
          %s837 = ssub.s32 16, 16
          %838 = vsyncadd [#allocation32], %s837
          %s840 = sshll.u32 [#allocation31], 4
          %s841 = int_to_ptr.vmem [resolvable:$true] %s840
          %843 = dma.hbm_to_vmem [thread:$0]  %s18, 16, %s841, [#allocation32]
        $region80: #{tpu_custom_call.1} parent=11 // pred_fallthru
          _
        // Predicated region
        $region81: #{tpu_custom_call.1} parent=11 // pred_check
          %p844 = pneg %p459
        $region82: #{tpu_custom_call.1} parent=11 // pred_check_branch
          %846 = sbr.rel (%p844) target = $region84
        $region83: #{tpu_custom_call.1} parent=11 // pred_region
          %s848 = ssub.s32 1536, 1536
          %849 = vsyncadd [#allocation32], %s848
          %s850 = sshll.u32 [#allocation33], 4
          %s851 = int_to_ptr.vmem [resolvable:$true] %s850
          %856 = dma.hbm_to_vmem [thread:$0]  %s19, 1536, %s851, [#allocation32], 64, 64, 4
        $region84: #{tpu_custom_call.1} parent=11 // pred_fallthru
          _
        // Predicated region
        $region85: #{tpu_custom_call.1} parent=11 // pred_check
          %p857 = pneg %p480
        $region86: #{tpu_custom_call.1} parent=11 // pred_check_branch
          %859 = sbr.rel (%p857) target = $region88
        $region87: #{tpu_custom_call.1} parent=11 // pred_region
          %s861 = ssub.s32 16, 16
          %862 = vsyncadd [#allocation35], %s861
          %s864 = sshll.u32 [#allocation34], 4
          %s865 = int_to_ptr.vmem [resolvable:$true] %s864
          %867 = dma.hbm_to_vmem [thread:$0]  %s20, 16, %s865, [#allocation35]
        $region88: #{tpu_custom_call.1} parent=11 // pred_fallthru
          _
        // Predicated region
        $region89: #{tpu_custom_call.1} parent=11 // pred_check
          %p868 = pneg %p501
        $region90: #{tpu_custom_call.1} parent=11 // pred_check_branch
          %870 = sbr.rel (%p868) target = $region92
        $region91: #{tpu_custom_call.1} parent=11 // pred_region
          %s872 = ssub.s32 16, 16
          %873 = vsyncadd [#allocation35], %s872
          %s875 = sshll.u32 [#allocation36], 4
          %s876 = int_to_ptr.vmem [resolvable:$true] %s875
          %878 = dma.hbm_to_vmem [thread:$0]  %s21, 16, %s876, [#allocation35]
        $region92: #{tpu_custom_call.1} parent=11 // pred_fallthru
          _
        // Predicated region
        $region93: #{tpu_custom_call.1} parent=11 // pred_check
          %p879 = pneg %p522
        $region94: #{tpu_custom_call.1} parent=11 // pred_check_branch
          %881 = sbr.rel (%p879) target = $region96
        $region95: #{tpu_custom_call.1} parent=11 // pred_region
          %s883 = ssub.s32 16, 16
          %884 = vsyncadd [#allocation38], %s883
          %s886 = sshll.u32 [#allocation37], 4
          %s887 = int_to_ptr.vmem [resolvable:$true] %s886
          %889 = dma.hbm_to_vmem [thread:$0]  %s22, 16, %s887, [#allocation38]
        $region96: #{tpu_custom_call.1} parent=11 // pred_fallthru
          _
        // Predicated region
        $region97: #{tpu_custom_call.1} parent=11 // pred_check
          %p890 = pneg %p543
        $region98: #{tpu_custom_call.1} parent=11 // pred_check_branch
          %892 = sbr.rel (%p890) target = $region100
        $region99: #{tpu_custom_call.1} parent=11 // pred_region
          %s894 = ssub.s32 512, 512
          %895 = vsyncadd [#allocation38], %s894
          %s896 = sshll.u32 [#allocation39], 4
          %s897 = int_to_ptr.vmem [resolvable:$true] %s896
          %902 = dma.hbm_to_vmem [thread:$0]  %s23, 512, %s897, [#allocation38], 64, 64, 4
        $region100: #{tpu_custom_call.1} parent=11 // pred_fallthru
          _
        // Predicated region
        $region101: #{tpu_custom_call.1} parent=11 // pred_check
          %p903 = pneg %p564
        $region102: #{tpu_custom_call.1} parent=11 // pred_check_branch
          %905 = sbr.rel (%p903) target = $region104
        $region103: #{tpu_custom_call.1} parent=11 // pred_region
          %s907 = ssub.s32 16, 16
          %908 = vsyncadd [#allocation41], %s907
          %s910 = sshll.u32 [#allocation40], 4
          %s911 = int_to_ptr.vmem [resolvable:$true] %s910
          %913 = dma.hbm_to_vmem [thread:$0]  %s24, 16, %s911, [#allocation41]
        $region104: #{tpu_custom_call.1} parent=11 // pred_fallthru
          _
      $region12: #{tpu_custom_call.1} parent=5 // pred_fallthru
        _
      %p914 = scmp.lt.s32.totalorder %s55, 2
      // Predicated region
      $region105: #{tpu_custom_call.1} parent=5 // pred_check
        %p915 = pneg %p914
      $region106: #{tpu_custom_call.1} parent=5 // pred_check_branch
        %917 = sbr.rel (%p915) target = $region108
      $region107: #{tpu_custom_call.1} parent=5 // pred_region
        // Predicated region
        $region109: #{tpu_custom_call.1} parent=107 // pred_check
          %p918 = pneg %p75
        $region110: #{tpu_custom_call.1} parent=107 // pred_check_branch
          %920 = sbr.rel (%p918) target = $region112
        $region111: #{tpu_custom_call.1} parent=107 // pred_region
          %s921 = sand.u32 %s65, 1
          %s922 = scalar_lea.sflag [#allocation5], %s921
          %s923 = sand.u32 %s65, 1
          %s924 = smul.addr %s923, 8
          %s925 = scalar_lea.vmem [#allocation4], %s924
          %s927 = ssub.s32 128, 128
          %928 = vsyncadd %s922, %s927
          %s929 = smul.addr %s55, 128
          %s930 = scalar_lea.hbm %s1, %s929
          %s932 = sshll.u32 %s925, 4
          %s933 = int_to_ptr.vmem [resolvable:$true] %s932
          %935 = dma.hbm_to_vmem [thread:$0]  %s930, 128, %s933, %s922
        $region112: #{tpu_custom_call.1} parent=107 // pred_fallthru
          _
      $region108: #{tpu_custom_call.1} parent=5 // pred_fallthru
        _
      %p936 = scmp.le.s32.totalorder 1, %s55
      %p937 = scmp.lt.s32.totalorder %s55, 3
      %p938 = pnand %p936, %p937
      %p939 = pneg %p938
      // Predicated region
      $region113: #{tpu_custom_call.1} parent=5 // pred_check
        _
      $region114: #{tpu_custom_call.1} parent=5 // pred_check_branch
        %941 = sbr.rel (%p938) target = $region116
      $region115: #{tpu_custom_call.1} parent=5 // pred_region
        %s942 = ssub.s32 %s55, 1
        %s943 = sand.u32 %s68, 1
        %s944 = scalar_lea.sflag [#allocation5], %s943
        %s945 = sand.u32 %s68, 1
        %s946 = smul.addr %s945, 8
        %s947 = scalar_lea.vmem [#allocation4], %s946
        // Predicated region
        $region117: #{tpu_custom_call.1} parent=115 // pred_check
          %p948 = pneg %p81
        $region118: #{tpu_custom_call.1} parent=115 // pred_check_branch
          %950 = sbr.rel (%p948) target = $region120
        $region119: #{tpu_custom_call.1} parent=115 // pred_region
          %951 = dma.done %s944, 128
        $region120: #{tpu_custom_call.1} parent=115 // pred_fallthru
          _
        // Predicated region
        $region121: #{tpu_custom_call.1} parent=115 // pred_check
          %p952 = pneg %p102
        $region122: #{tpu_custom_call.1} parent=115 // pred_check_branch
          %954 = sbr.rel (%p952) target = $region124
        $region123: #{tpu_custom_call.1} parent=115 // pred_region
          %955 = dma.done [#allocation8], 128
        $region124: #{tpu_custom_call.1} parent=115 // pred_fallthru
          _
        // Predicated region
        $region125: #{tpu_custom_call.1} parent=115 // pred_check
          %p956 = pneg %p123
        $region126: #{tpu_custom_call.1} parent=115 // pred_check_branch
          %958 = sbr.rel (%p956) target = $region128
        $region127: #{tpu_custom_call.1} parent=115 // pred_region
          %959 = dma.done [#allocation8], 512
        $region128: #{tpu_custom_call.1} parent=115 // pred_fallthru
          _
        // Predicated region
        $region129: #{tpu_custom_call.1} parent=115 // pred_check
          %p960 = pneg %p144
        $region130: #{tpu_custom_call.1} parent=115 // pred_check_branch
          %962 = sbr.rel (%p960) target = $region132
        $region131: #{tpu_custom_call.1} parent=115 // pred_region
          %963 = dma.done [#allocation11], 32
        $region132: #{tpu_custom_call.1} parent=115 // pred_fallthru
          _
        // Predicated region
        $region133: #{tpu_custom_call.1} parent=115 // pred_check
          %p964 = pneg %p165
        $region134: #{tpu_custom_call.1} parent=115 // pred_check_branch
          %966 = sbr.rel (%p964) target = $region136
        $region135: #{tpu_custom_call.1} parent=115 // pred_region
          %967 = dma.done [#allocation11], 512
        $region136: #{tpu_custom_call.1} parent=115 // pred_fallthru
          _
        // Predicated region
        $region137: #{tpu_custom_call.1} parent=115 // pred_check
          %p968 = pneg %p186
        $region138: #{tpu_custom_call.1} parent=115 // pred_check_branch
          %970 = sbr.rel (%p968) target = $region140
        $region139: #{tpu_custom_call.1} parent=115 // pred_region
          %971 = dma.done [#allocation14], 32
        $region140: #{tpu_custom_call.1} parent=115 // pred_fallthru
          _
        // Predicated region
        $region141: #{tpu_custom_call.1} parent=115 // pred_check
          %p972 = pneg %p207
        $region142: #{tpu_custom_call.1} parent=115 // pred_check_branch
          %974 = sbr.rel (%p972) target = $region144
        $region143: #{tpu_custom_call.1} parent=115 // pred_region
          %975 = dma.done [#allocation14], 32
        $region144: #{tpu_custom_call.1} parent=115 // pred_fallthru
          _
        // Predicated region
        $region145: #{tpu_custom_call.1} parent=115 // pred_check
          %p976 = pneg %p228
        $region146: #{tpu_custom_call.1} parent=115 // pred_check_branch
          %978 = sbr.rel (%p976) target = $region148
        $region147: #{tpu_custom_call.1} parent=115 // pred_region
          %979 = dma.done [#allocation17], 32
        $region148: #{tpu_custom_call.1} parent=115 // pred_fallthru
          _
        // Predicated region
        $region149: #{tpu_custom_call.1} parent=115 // pred_check
          %p980 = pneg %p249
        $region150: #{tpu_custom_call.1} parent=115 // pred_check_branch
          %982 = sbr.rel (%p980) target = $region152
        $region151: #{tpu_custom_call.1} parent=115 // pred_region
          %983 = dma.done [#allocation17], 512
        $region152: #{tpu_custom_call.1} parent=115 // pred_fallthru
          _
        // Predicated region
        $region153: #{tpu_custom_call.1} parent=115 // pred_check
          %p984 = pneg %p270
        $region154: #{tpu_custom_call.1} parent=115 // pred_check_branch
          %986 = sbr.rel (%p984) target = $region156
        $region155: #{tpu_custom_call.1} parent=115 // pred_region
          %987 = dma.done [#allocation20], 32
        $region156: #{tpu_custom_call.1} parent=115 // pred_fallthru
          _
        // Predicated region
        $region157: #{tpu_custom_call.1} parent=115 // pred_check
          %p988 = pneg %p291
        $region158: #{tpu_custom_call.1} parent=115 // pred_check_branch
          %990 = sbr.rel (%p988) target = $region160
        $region159: #{tpu_custom_call.1} parent=115 // pred_region
          %991 = dma.done [#allocation20], 2048
        $region160: #{tpu_custom_call.1} parent=115 // pred_fallthru
          _
        // Predicated region
        $region161: #{tpu_custom_call.1} parent=115 // pred_check
          %p992 = pneg %p312
        $region162: #{tpu_custom_call.1} parent=115 // pred_check_branch
          %994 = sbr.rel (%p992) target = $region164
        $region163: #{tpu_custom_call.1} parent=115 // pred_region
          %995 = dma.done [#allocation23], 32
        $region164: #{tpu_custom_call.1} parent=115 // pred_fallthru
          _
        // Predicated region
        $region165: #{tpu_custom_call.1} parent=115 // pred_check
          %p996 = pneg %p333
        $region166: #{tpu_custom_call.1} parent=115 // pred_check_branch
          %998 = sbr.rel (%p996) target = $region168
        $region167: #{tpu_custom_call.1} parent=115 // pred_region
          %999 = dma.done [#allocation23], 32
        $region168: #{tpu_custom_call.1} parent=115 // pred_fallthru
          _
        // Predicated region
        $region169: #{tpu_custom_call.1} parent=115 // pred_check
          %p1000 = pneg %p354
        $region170: #{tpu_custom_call.1} parent=115 // pred_check_branch
          %1002 = sbr.rel (%p1000) target = $region172
        $region171: #{tpu_custom_call.1} parent=115 // pred_region
          %1003 = dma.done [#allocation26], 32
        $region172: #{tpu_custom_call.1} parent=115 // pred_fallthru
          _
        // Predicated region
        $region173: #{tpu_custom_call.1} parent=115 // pred_check
          %p1004 = pneg %p375
        $region174: #{tpu_custom_call.1} parent=115 // pred_check_branch
          %1006 = sbr.rel (%p1004) target = $region176
        $region175: #{tpu_custom_call.1} parent=115 // pred_region
          %1007 = dma.done [#allocation26], 768
        $region176: #{tpu_custom_call.1} parent=115 // pred_fallthru
          _
        // Predicated region
        $region177: #{tpu_custom_call.1} parent=115 // pred_check
          %p1008 = pneg %p396
        $region178: #{tpu_custom_call.1} parent=115 // pred_check_branch
          %1010 = sbr.rel (%p1008) target = $region180
        $region179: #{tpu_custom_call.1} parent=115 // pred_region
          %1011 = dma.done [#allocation29], 16
        $region180: #{tpu_custom_call.1} parent=115 // pred_fallthru
          _
        // Predicated region
        $region181: #{tpu_custom_call.1} parent=115 // pred_check
          %p1012 = pneg %p417
        $region182: #{tpu_custom_call.1} parent=115 // pred_check_branch
          %1014 = sbr.rel (%p1012) target = $region184
        $region183: #{tpu_custom_call.1} parent=115 // pred_region
          %1015 = dma.done [#allocation29], 16
        $region184: #{tpu_custom_call.1} parent=115 // pred_fallthru
          _
        // Predicated region
        $region185: #{tpu_custom_call.1} parent=115 // pred_check
          %p1016 = pneg %p438
        $region186: #{tpu_custom_call.1} parent=115 // pred_check_branch
          %1018 = sbr.rel (%p1016) target = $region188
        $region187: #{tpu_custom_call.1} parent=115 // pred_region
          %1019 = dma.done [#allocation32], 16
        $region188: #{tpu_custom_call.1} parent=115 // pred_fallthru
          _
        // Predicated region
        $region189: #{tpu_custom_call.1} parent=115 // pred_check
          %p1020 = pneg %p459
        $region190: #{tpu_custom_call.1} parent=115 // pred_check_branch
          %1022 = sbr.rel (%p1020) target = $region192
        $region191: #{tpu_custom_call.1} parent=115 // pred_region
          %1023 = dma.done [#allocation32], 1536
        $region192: #{tpu_custom_call.1} parent=115 // pred_fallthru
          _
        // Predicated region
        $region193: #{tpu_custom_call.1} parent=115 // pred_check
          %p1024 = pneg %p480
        $region194: #{tpu_custom_call.1} parent=115 // pred_check_branch
          %1026 = sbr.rel (%p1024) target = $region196
        $region195: #{tpu_custom_call.1} parent=115 // pred_region
          %1027 = dma.done [#allocation35], 16
        $region196: #{tpu_custom_call.1} parent=115 // pred_fallthru
          _
        // Predicated region
        $region197: #{tpu_custom_call.1} parent=115 // pred_check
          %p1028 = pneg %p501
        $region198: #{tpu_custom_call.1} parent=115 // pred_check_branch
          %1030 = sbr.rel (%p1028) target = $region200
        $region199: #{tpu_custom_call.1} parent=115 // pred_region
          %1031 = dma.done [#allocation35], 16
        $region200: #{tpu_custom_call.1} parent=115 // pred_fallthru
          _
        // Predicated region
        $region201: #{tpu_custom_call.1} parent=115 // pred_check
          %p1032 = pneg %p522
        $region202: #{tpu_custom_call.1} parent=115 // pred_check_branch
          %1034 = sbr.rel (%p1032) target = $region204
        $region203: #{tpu_custom_call.1} parent=115 // pred_region
          %1035 = dma.done [#allocation38], 16
        $region204: #{tpu_custom_call.1} parent=115 // pred_fallthru
          _
        // Predicated region
        $region205: #{tpu_custom_call.1} parent=115 // pred_check
          %p1036 = pneg %p543
        $region206: #{tpu_custom_call.1} parent=115 // pred_check_branch
          %1038 = sbr.rel (%p1036) target = $region208
        $region207: #{tpu_custom_call.1} parent=115 // pred_region
          %1039 = dma.done [#allocation38], 512
        $region208: #{tpu_custom_call.1} parent=115 // pred_fallthru
          _
        // Predicated region
        $region209: #{tpu_custom_call.1} parent=115 // pred_check
          %p1040 = pneg %p564
        $region210: #{tpu_custom_call.1} parent=115 // pred_check_branch
          %1042 = sbr.rel (%p1040) target = $region212
        $region211: #{tpu_custom_call.1} parent=115 // pred_region
          %1043 = dma.done [#allocation41], 16
        $region212: #{tpu_custom_call.1} parent=115 // pred_fallthru
          _
        %s1044 = sand.u32 %s68, 1
        %s1045 = scalar_lea.sflag [#allocation5], %s1044
        %s1046 = sand.u32 %s68, 1
        %s1047 = smul.addr %s1046, 8
        %s1048 = scalar_lea.vmem [#allocation4], %s1047
        %p1049 = pneg %p81
        %p1050 = pneg %p78
        %p1051 = pneg %p102
        %p1052 = pneg %p99
        %p1053 = pneg %p123
        %p1054 = pneg %p120
        %p1055 = pneg %p144
        %p1056 = pneg %p141
        %p1057 = pneg %p165
        %p1058 = pneg %p162
        %p1059 = pneg %p186
        %p1060 = pneg %p183
        %p1061 = pneg %p207
        %p1062 = pneg %p204
        %p1063 = pneg %p228
        %p1064 = pneg %p225
        %p1065 = pneg %p249
        %p1066 = pneg %p246
        %p1067 = pneg %p270
        %p1068 = pneg %p267
        %p1069 = pneg %p291
        %p1070 = pneg %p288
        %p1071 = pneg %p312
        %p1072 = pneg %p309
        %p1073 = pneg %p333
        %p1074 = pneg %p330
        %p1075 = pneg %p354
        %p1076 = pneg %p351
        %p1077 = pneg %p375
        %p1078 = pneg %p372
        %p1079 = pneg %p396
        %p1080 = pneg %p393
        %p1081 = pneg %p417
        %p1082 = pneg %p414
        %p1083 = pneg %p438
        %p1084 = pneg %p435
        %p1085 = pneg %p459
        %p1086 = pneg %p456
        %p1087 = pneg %p480
        %p1088 = pneg %p477
        %p1089 = pneg %p501
        %p1090 = pneg %p498
        %p1091 = pneg %p522
        %p1092 = pneg %p519
        %p1093 = pneg %p543
        %p1094 = pneg %p540
        %p1095 = pneg %p564
        %p1096 = pneg %p561
        %p1097 = pneg %p590
        %p1098 = pneg %p587
        %s1099 = sand.u32 %s577, 1
        %s1100 = scalar_lea.sflag [#allocation6], %s1099
        %s1101 = sand.u32 %s577, 1
        %s1102 = smul.addr %s1101, 8
        %s1103 = scalar_lea.vmem [#allocation42], %s1102
        %p1104 = pneg %p616
        %p1105 = pneg %p613
        %s1106 = sand.u32 %s603, 1
        %s1107 = scalar_lea.sflag [#allocation44], %s1106
        %s1108 = sand.u32 %s603, 1
        %s1109 = smul.addr %s1108, 8
        %s1110 = scalar_lea.vmem [#allocation43], %s1109
        %v1112 = vld [vmem:[%s947] sm:$0xff]
        %v1113 = vld [vmem:[#allocation7] sm:$0xff]
        %v1114 = vadd.f32 %v1112, %v1113
        loop: start=0, step=1, limit=2
        $region213: #{tpu_custom_call.1} parent=115 // loop_pre_header
          _
        $region214: #{tpu_custom_call.1} parent=115 // loop_header
          %s1116 = sphi 0, %s1120
          %p1117 = scmp.ge.s32.totalorder %s1116, 2
          %v1121 = vphi %v1114, %v2217
        $region215: #{tpu_custom_call.1} parent=115 // loop_header_branch
          %1119 = sbr.rel (%p1117) target = $region219
        $region216: #{tpu_custom_call.1} parent=115 // loop_body
          %v1122 = vpack.c.bf16 %v1121, %v1121
          %s1123 = smul.u32 %s1116, 4
          %s1124 = smul.addr %s1123, 4
          %s1125 = scalar_lea.vmem [#allocation9], %s1124
          %v1126 = vld [vmem:[%s1125] sm:$0xf]
          %v1127 = vld [vmem:[%s1125 + $0x4] sm:$0xf]
          %v1128 = vld [vmem:[%s1125 + $0x8] sm:$0xf]
          %v1129 = vld [vmem:[%s1125 + $0xc] sm:$0xf]
          %s1130 = scalar_lea.vmem [#allocation10], %s1116
          %v1131 = vld [vmem:[%s1130] sm:$0x1]
          %v1133 = vlaneseq
          %v1134 = vshrl.u32 %v1133, 7
          %v1135 = vsub.s32 0, %v1134
          %v1136 = vrot.slane %v1131, %v1135
          %v1142 = vunpack.c.l.b16 %v1126
          %v1143 = vunpack.c.l.b16 %v1127
          %v1144 = vunpack.c.l.b16 %v1128
          %v1145 = vunpack.c.l.b16 %v1129
          %v1146 = vpack.c.b16 %v1143, %v1142
          %v1147 = vpack.c.b16 %v1145, %v1144
          %vm1150 = vcmask 261120
          %v1152 = vsel %vm1150, %v1122, 0
          %1154 = vmatprep.subr.bf16.mxu0 0
          %1155 = vmatpush1.bf16.msra.mxu0 %v1146
          %1156 = vmatprep.subr.bf16.mxu0 0
          %1157 = vmatpush1.bf16.msra.mxu0 %v1147
          %1158 = vmatprep.subr.bf16.mxu0 0
          %1159 = vmatpush1.bf16.msra.mxu0 0
          %1160 = vmatprep.subr.bf16.mxu0 0
          %1161 = vmatpush1.bf16.msra.mxu0 0
          %1162 = vmatprep.subr.bf16.mxu0 0
          %1163 = vmatpush1.bf16.msra.mxu0 0
          %1164 = vmatprep.subr.bf16.mxu0 0
          %1165 = vmatpush1.bf16.msra.mxu0 0
          %1166 = vmatprep.subr.bf16.mxu0 0
          %1167 = vmatpush1.bf16.msra.mxu0 0
          %1168 = vmatprep.subr.bf16.mxu0 0
          %1169 = vmatpush1.bf16.msra.mxu0 0
          %1170 = vmatprep.subr.bf16.mxu0 0
          %1171 = vmatpush1.bf16.msra.mxu0 0
          %1172 = vmatprep.subr.bf16.mxu0 0
          %1173 = vmatpush1.bf16.msra.mxu0 0
          %1174 = vmatprep.subr.bf16.mxu0 0
          %1175 = vmatpush1.bf16.msra.mxu0 0
          %1176 = vmatprep.subr.bf16.mxu0 0
          %1177 = vmatpush1.bf16.msra.mxu0 0
          %1178 = vmatprep.subr.bf16.mxu0 0
          %1179 = vmatpush1.bf16.msra.mxu0 0
          %1180 = vmatprep.subr.bf16.mxu0 0
          %1181 = vmatpush1.bf16.msra.mxu0 0
          %1182 = vmatprep.subr.bf16.mxu0 0
          %1183 = vmatpush1.bf16.msra.mxu0 0
          %1184 = vmatprep.subr.bf16.mxu0 0
          %1185 = vmatpush1.bf16.msra.mxu0 0
          %1186 = vmatprep.mubr.bf16.mxu0 0
          %1187 = vmatmul.mubr.bf16.gmra.mrb[0].mxu0 %v1152
          %v1188 = vpop.f32.mrb[0].mxu0
          %v1189 = vadd.f32 %v1136, %v1188
          %v1190 = vpop.f32.mrb[0].mxu0
          %v1191 = vpop.f32.mrb[0].mxu0
          %v1192 = vpop.f32.mrb[0].mxu0
          %1193 = vdwg.mxu0
          %1195 = vrot.lane.b32.xlu0 %v1189, 112
          %v1196 = vpop.permute.xlu0 %1195
          %v1198 = vcombine.high %v1189, 0.0
          %v1200 = vunpack.c.l.s4 1983009808
          %v1201 = vunpack.c.0.s8 %v1200
          %v1202 = vlaneseq
          %v1203 = vshrl.u32 %v1202, 7
          %v1204 = vsub.s32 %v1201, %v1203
          %v1205 = vrot.slane %v1189, %v1204
          %v1207 = vunpack.c.l.s4 1983009808
          %v1208 = vunpack.c.0.s8 %v1207
          %v1209 = vlaneseq
          %v1210 = vshrl.u32 %v1209, 7
          %v1211 = vsub.s32 %v1208, %v1210
          %v1212 = vrot.slane %v1198, %v1211
          %v1213 = vcombine.high %v1196, 0.0
          %v1215 = vunpack.c.l.s4 1983009808
          %v1216 = vunpack.c.0.s8 %v1215
          %v1217 = vlaneseq
          %v1218 = vshrl.u32 %v1217, 7
          %v1219 = vsub.s32 %v1216, %v1218
          %v1220 = vrot.slane %v1196, %v1219
          %v1222 = vunpack.c.l.s4 1983009808
          %v1223 = vunpack.c.0.s8 %v1222
          %v1224 = vlaneseq
          %v1225 = vshrl.u32 %v1224, 7
          %v1226 = vsub.s32 %v1223, %v1225
          %v1227 = vrot.slane %v1213, %v1226
          %v1228 = vcombine.low %v1205, %v1220
          %v1229 = vcombine.high %v1205, %v1220
          %v1231 = vunpack.c.l.s4 1934713408
          %v1232 = vunpack.c.0.s8 %v1231
          %v1233 = vlaneseq
          %v1234 = vshrl.u32 %v1233, 7
          %v1235 = vsub.s32 %v1232, %v1234
          %v1236 = vrot.slane %v1228, %v1235
          %v1238 = vunpack.c.l.s4 1934713408
          %v1239 = vunpack.c.0.s8 %v1238
          %v1240 = vlaneseq
          %v1241 = vshrl.u32 %v1240, 7
          %v1242 = vsub.s32 %v1239, %v1241
          %v1243 = vrot.slane %v1229, %v1242
          %v1244 = vcombine.low %v1212, %v1227
          %v1245 = vcombine.high %v1212, %v1227
          %v1247 = vunpack.c.l.s4 1934713408
          %v1248 = vunpack.c.0.s8 %v1247
          %v1249 = vlaneseq
          %v1250 = vshrl.u32 %v1249, 7
          %v1251 = vsub.s32 %v1248, %v1250
          %v1252 = vrot.slane %v1244, %v1251
          %v1254 = vunpack.c.l.s4 1934713408
          %v1255 = vunpack.c.0.s8 %v1254
          %v1256 = vlaneseq
          %v1257 = vshrl.u32 %v1256, 7
          %v1258 = vsub.s32 %v1255, %v1257
          %v1259 = vrot.slane %v1245, %v1258
          %v1260 = vcombine.high %v1236, 0.0
          %v1261 = vcombine.high %v1243, 0.0
          %v1262 = vcombine.high %v1252, 0.0
          %v1263 = vcombine.high %v1259, 0.0
          %v1264 = vcombine.low %v1236, %v1243
          %v1266 = vunpack.c.l.s4 1983009808
          %v1267 = vunpack.c.0.s8 %v1266
          %v1268 = vlaneseq
          %v1269 = vshrl.u32 %v1268, 7
          %v1270 = vsub.s32 %v1267, %v1269
          %v1271 = vrot.slane %v1264, %v1270
          %v1272 = vcombine.low %v1260, %v1261
          %v1274 = vunpack.c.l.s4 1983009808
          %v1275 = vunpack.c.0.s8 %v1274
          %v1276 = vlaneseq
          %v1277 = vshrl.u32 %v1276, 7
          %v1278 = vsub.s32 %v1275, %v1277
          %v1279 = vrot.slane %v1272, %v1278
          %v1280 = vcombine.low %v1252, %v1259
          %v1282 = vunpack.c.l.s4 1983009808
          %v1283 = vunpack.c.0.s8 %v1282
          %v1284 = vlaneseq
          %v1285 = vshrl.u32 %v1284, 7
          %v1286 = vsub.s32 %v1283, %v1285
          %v1287 = vrot.slane %v1280, %v1286
          %v1288 = vcombine.low %v1262, %v1263
          %v1290 = vunpack.c.l.s4 1983009808
          %v1291 = vunpack.c.0.s8 %v1290
          %v1292 = vlaneseq
          %v1293 = vshrl.u32 %v1292, 7
          %v1294 = vsub.s32 %v1291, %v1293
          %v1295 = vrot.slane %v1288, %v1294
          %v1296 = vcombine.low %v1271, %v1279
          %v1298 = vunpack.c.l.s4 1934713408
          %v1299 = vunpack.c.0.s8 %v1298
          %v1300 = vlaneseq
          %v1301 = vshrl.u32 %v1300, 7
          %v1302 = vsub.s32 %v1299, %v1301
          %v1303 = vrot.slane %v1296, %v1302
          %v1304 = vcombine.low %v1287, %v1295
          %v1306 = vunpack.c.l.s4 1934713408
          %v1307 = vunpack.c.0.s8 %v1306
          %v1308 = vlaneseq
          %v1309 = vshrl.u32 %v1308, 7
          %v1310 = vsub.s32 %v1307, %v1309
          %v1311 = vrot.slane %v1304, %v1310
          %v1312 = vcombine.low %v1303, %v1311
          %v1313 = vcombine.high %v1303, %v1311
          %v1314 = vpack.c.bf16 %v1312, %v1312
          %v1315 = vpack.c.bf16 %v1313, %v1313
          %1316 = vrot.lane.b32.xlu0 %v1189, 96
          %v1317 = vpop.permute.xlu0 %1316
          %1318 = vrot.lane.b32.xlu0 %v1196, 96
          %v1319 = vpop.permute.xlu0 %1318
          %v1322 = vcombine.high %v1317, 0.0
          %v1324 = vunpack.c.l.s4 1983009808
          %v1325 = vunpack.c.0.s8 %v1324
          %v1326 = vlaneseq
          %v1327 = vshrl.u32 %v1326, 7
          %v1328 = vsub.s32 %v1325, %v1327
          %v1329 = vrot.slane %v1317, %v1328
          %v1331 = vunpack.c.l.s4 1983009808
          %v1332 = vunpack.c.0.s8 %v1331
          %v1333 = vlaneseq
          %v1334 = vshrl.u32 %v1333, 7
          %v1335 = vsub.s32 %v1332, %v1334
          %v1336 = vrot.slane %v1322, %v1335
          %v1337 = vcombine.high %v1319, 0.0
          %v1339 = vunpack.c.l.s4 1983009808
          %v1340 = vunpack.c.0.s8 %v1339
          %v1341 = vlaneseq
          %v1342 = vshrl.u32 %v1341, 7
          %v1343 = vsub.s32 %v1340, %v1342
          %v1344 = vrot.slane %v1319, %v1343
          %v1346 = vunpack.c.l.s4 1983009808
          %v1347 = vunpack.c.0.s8 %v1346
          %v1348 = vlaneseq
          %v1349 = vshrl.u32 %v1348, 7
          %v1350 = vsub.s32 %v1347, %v1349
          %v1351 = vrot.slane %v1337, %v1350
          %v1352 = vcombine.low %v1329, %v1344
          %v1353 = vcombine.high %v1329, %v1344
          %v1355 = vunpack.c.l.s4 1934713408
          %v1356 = vunpack.c.0.s8 %v1355
          %v1357 = vlaneseq
          %v1358 = vshrl.u32 %v1357, 7
          %v1359 = vsub.s32 %v1356, %v1358
          %v1360 = vrot.slane %v1352, %v1359
          %v1362 = vunpack.c.l.s4 1934713408
          %v1363 = vunpack.c.0.s8 %v1362
          %v1364 = vlaneseq
          %v1365 = vshrl.u32 %v1364, 7
          %v1366 = vsub.s32 %v1363, %v1365
          %v1367 = vrot.slane %v1353, %v1366
          %v1368 = vcombine.low %v1336, %v1351
          %v1369 = vcombine.high %v1336, %v1351
          %v1371 = vunpack.c.l.s4 1934713408
          %v1372 = vunpack.c.0.s8 %v1371
          %v1373 = vlaneseq
          %v1374 = vshrl.u32 %v1373, 7
          %v1375 = vsub.s32 %v1372, %v1374
          %v1376 = vrot.slane %v1368, %v1375
          %v1378 = vunpack.c.l.s4 1934713408
          %v1379 = vunpack.c.0.s8 %v1378
          %v1380 = vlaneseq
          %v1381 = vshrl.u32 %v1380, 7
          %v1382 = vsub.s32 %v1379, %v1381
          %v1383 = vrot.slane %v1369, %v1382
          %v1384 = vcombine.high %v1360, 0.0
          %v1385 = vcombine.high %v1367, 0.0
          %v1386 = vcombine.high %v1376, 0.0
          %v1387 = vcombine.high %v1383, 0.0
          %v1388 = vcombine.low %v1360, %v1367
          %v1390 = vunpack.c.l.s4 1983009808
          %v1391 = vunpack.c.0.s8 %v1390
          %v1392 = vlaneseq
          %v1393 = vshrl.u32 %v1392, 7
          %v1394 = vsub.s32 %v1391, %v1393
          %v1395 = vrot.slane %v1388, %v1394
          %v1396 = vcombine.low %v1384, %v1385
          %v1398 = vunpack.c.l.s4 1983009808
          %v1399 = vunpack.c.0.s8 %v1398
          %v1400 = vlaneseq
          %v1401 = vshrl.u32 %v1400, 7
          %v1402 = vsub.s32 %v1399, %v1401
          %v1403 = vrot.slane %v1396, %v1402
          %v1404 = vcombine.low %v1376, %v1383
          %v1406 = vunpack.c.l.s4 1983009808
          %v1407 = vunpack.c.0.s8 %v1406
          %v1408 = vlaneseq
          %v1409 = vshrl.u32 %v1408, 7
          %v1410 = vsub.s32 %v1407, %v1409
          %v1411 = vrot.slane %v1404, %v1410
          %v1412 = vcombine.low %v1386, %v1387
          %v1414 = vunpack.c.l.s4 1983009808
          %v1415 = vunpack.c.0.s8 %v1414
          %v1416 = vlaneseq
          %v1417 = vshrl.u32 %v1416, 7
          %v1418 = vsub.s32 %v1415, %v1417
          %v1419 = vrot.slane %v1412, %v1418
          %v1420 = vcombine.low %v1395, %v1403
          %v1422 = vunpack.c.l.s4 1934713408
          %v1423 = vunpack.c.0.s8 %v1422
          %v1424 = vlaneseq
          %v1425 = vshrl.u32 %v1424, 7
          %v1426 = vsub.s32 %v1423, %v1425
          %v1427 = vrot.slane %v1420, %v1426
          %v1428 = vcombine.low %v1411, %v1419
          %v1430 = vunpack.c.l.s4 1934713408
          %v1431 = vunpack.c.0.s8 %v1430
          %v1432 = vlaneseq
          %v1433 = vshrl.u32 %v1432, 7
          %v1434 = vsub.s32 %v1431, %v1433
          %v1435 = vrot.slane %v1428, %v1434
          %v1436 = vcombine.low %v1427, %v1435
          %v1437 = vcombine.high %v1427, %v1435
          %v1438 = vpack.c.bf16 %v1436, %v1436
          %v1439 = vpack.c.bf16 %v1437, %v1437
          %1440 = vrot.lane.b32.xlu0 %v1189, 64
          %v1441 = vpop.permute.xlu0 %1440
          %1442 = vrot.lane.b32.xlu0 %v1196, 64
          %v1443 = vpop.permute.xlu0 %1442
          %v1446 = vcombine.high %v1441, 0.0
          %v1448 = vunpack.c.l.s4 1983009808
          %v1449 = vunpack.c.0.s8 %v1448
          %v1450 = vlaneseq
          %v1451 = vshrl.u32 %v1450, 7
          %v1452 = vsub.s32 %v1449, %v1451
          %v1453 = vrot.slane %v1441, %v1452
          %v1455 = vunpack.c.l.s4 1983009808
          %v1456 = vunpack.c.0.s8 %v1455
          %v1457 = vlaneseq
          %v1458 = vshrl.u32 %v1457, 7
          %v1459 = vsub.s32 %v1456, %v1458
          %v1460 = vrot.slane %v1446, %v1459
          %v1461 = vcombine.high %v1443, 0.0
          %v1463 = vunpack.c.l.s4 1983009808
          %v1464 = vunpack.c.0.s8 %v1463
          %v1465 = vlaneseq
          %v1466 = vshrl.u32 %v1465, 7
          %v1467 = vsub.s32 %v1464, %v1466
          %v1468 = vrot.slane %v1443, %v1467
          %v1470 = vunpack.c.l.s4 1983009808
          %v1471 = vunpack.c.0.s8 %v1470
          %v1472 = vlaneseq
          %v1473 = vshrl.u32 %v1472, 7
          %v1474 = vsub.s32 %v1471, %v1473
          %v1475 = vrot.slane %v1461, %v1474
          %v1476 = vcombine.low %v1453, %v1468
          %v1477 = vcombine.high %v1453, %v1468
          %v1479 = vunpack.c.l.s4 1934713408
          %v1480 = vunpack.c.0.s8 %v1479
          %v1481 = vlaneseq
          %v1482 = vshrl.u32 %v1481, 7
          %v1483 = vsub.s32 %v1480, %v1482
          %v1484 = vrot.slane %v1476, %v1483
          %v1486 = vunpack.c.l.s4 1934713408
          %v1487 = vunpack.c.0.s8 %v1486
          %v1488 = vlaneseq
          %v1489 = vshrl.u32 %v1488, 7
          %v1490 = vsub.s32 %v1487, %v1489
          %v1491 = vrot.slane %v1477, %v1490
          %v1492 = vcombine.low %v1460, %v1475
          %v1493 = vcombine.high %v1460, %v1475
          %v1495 = vunpack.c.l.s4 1934713408
          %v1496 = vunpack.c.0.s8 %v1495
          %v1497 = vlaneseq
          %v1498 = vshrl.u32 %v1497, 7
          %v1499 = vsub.s32 %v1496, %v1498
          %v1500 = vrot.slane %v1492, %v1499
          %v1502 = vunpack.c.l.s4 1934713408
          %v1503 = vunpack.c.0.s8 %v1502
          %v1504 = vlaneseq
          %v1505 = vshrl.u32 %v1504, 7
          %v1506 = vsub.s32 %v1503, %v1505
          %v1507 = vrot.slane %v1493, %v1506
          %v1508 = vcombine.high %v1484, 0.0
          %v1509 = vcombine.high %v1491, 0.0
          %v1510 = vcombine.high %v1500, 0.0
          %v1511 = vcombine.high %v1507, 0.0
          %v1512 = vcombine.low %v1484, %v1491
          %v1514 = vunpack.c.l.s4 1983009808
          %v1515 = vunpack.c.0.s8 %v1514
          %v1516 = vlaneseq
          %v1517 = vshrl.u32 %v1516, 7
          %v1518 = vsub.s32 %v1515, %v1517
          %v1519 = vrot.slane %v1512, %v1518
          %v1520 = vcombine.low %v1508, %v1509
          %v1522 = vunpack.c.l.s4 1983009808
          %v1523 = vunpack.c.0.s8 %v1522
          %v1524 = vlaneseq
          %v1525 = vshrl.u32 %v1524, 7
          %v1526 = vsub.s32 %v1523, %v1525
          %v1527 = vrot.slane %v1520, %v1526
          %v1528 = vcombine.low %v1500, %v1507
          %v1530 = vunpack.c.l.s4 1983009808
          %v1531 = vunpack.c.0.s8 %v1530
          %v1532 = vlaneseq
          %v1533 = vshrl.u32 %v1532, 7
          %v1534 = vsub.s32 %v1531, %v1533
          %v1535 = vrot.slane %v1528, %v1534
          %v1536 = vcombine.low %v1510, %v1511
          %v1538 = vunpack.c.l.s4 1983009808
          %v1539 = vunpack.c.0.s8 %v1538
          %v1540 = vlaneseq
          %v1541 = vshrl.u32 %v1540, 7
          %v1542 = vsub.s32 %v1539, %v1541
          %v1543 = vrot.slane %v1536, %v1542
          %v1544 = vcombine.low %v1519, %v1527
          %v1546 = vunpack.c.l.s4 1934713408
          %v1547 = vunpack.c.0.s8 %v1546
          %v1548 = vlaneseq
          %v1549 = vshrl.u32 %v1548, 7
          %v1550 = vsub.s32 %v1547, %v1549
          %v1551 = vrot.slane %v1544, %v1550
          %v1552 = vcombine.low %v1535, %v1543
          %v1554 = vunpack.c.l.s4 1934713408
          %v1555 = vunpack.c.0.s8 %v1554
          %v1556 = vlaneseq
          %v1557 = vshrl.u32 %v1556, 7
          %v1558 = vsub.s32 %v1555, %v1557
          %v1559 = vrot.slane %v1552, %v1558
          %v1560 = vcombine.low %v1551, %v1559
          %v1561 = vcombine.high %v1551, %v1559
          %v1562 = vpack.c.bf16 %v1560, %v1560
          %v1563 = vpack.c.bf16 %v1561, %v1561
          %vm1564 = vcmask 130048
          %v1566 = vsel %vm1564, %v1314, 0
          %v1569 = vsel %vm1564, %v1438, 0
          %1571 = vmatprep.subr.bf16.mxu0 0
          %1572 = vmatpush1.bf16.xpose.msra.mxu0 %v1569
          %1573 = vmatprep.subr.bf16.mxu0 0
          %1574 = vmatpush1.bf16.xpose.msra.mxu0 0
          %1575 = vmatprep.subr.bf16.mxu0 0
          %1576 = vmatpush1.bf16.xpose.msra.mxu0 0
          %1577 = vmatprep.subr.bf16.mxu0 0
          %1578 = vmatpush1.bf16.xpose.msra.mxu0 0
          %1579 = vmatprep.subr.bf16.mxu0 0
          %1580 = vmatpush1.bf16.xpose.msra.mxu0 0
          %1581 = vmatprep.subr.bf16.mxu0 0
          %1582 = vmatpush1.bf16.xpose.msra.mxu0 0
          %1583 = vmatprep.subr.bf16.mxu0 0
          %1584 = vmatpush1.bf16.xpose.msra.mxu0 0
          %1585 = vmatprep.subr.bf16.mxu0 0
          %1586 = vmatpush1.bf16.xpose.msra.mxu0 0
          %1587 = vmatprep.subr.bf16.mxu0 0
          %1588 = vmatpush1.bf16.xpose.msra.mxu0 0
          %1589 = vmatprep.subr.bf16.mxu0 0
          %1590 = vmatpush1.bf16.xpose.msra.mxu0 0
          %1591 = vmatprep.subr.bf16.mxu0 0
          %1592 = vmatpush1.bf16.xpose.msra.mxu0 0
          %1593 = vmatprep.subr.bf16.mxu0 0
          %1594 = vmatpush1.bf16.xpose.msra.mxu0 0
          %1595 = vmatprep.subr.bf16.mxu0 0
          %1596 = vmatpush1.bf16.xpose.msra.mxu0 0
          %1597 = vmatprep.subr.bf16.mxu0 0
          %1598 = vmatpush1.bf16.xpose.msra.mxu0 0
          %1599 = vmatprep.subr.bf16.mxu0 0
          %1600 = vmatpush1.bf16.xpose.msra.mxu0 0
          %1601 = vmatprep.subr.bf16.mxu0 0
          %1602 = vmatpush1.bf16.xpose.msra.mxu0 0
          %1603 = vmatprep.mubr.bf16.mxu0 0
          %1604 = vmatmul.mubr.bf16.gmra.mrb[0].mxu0 %v1566
          %v1605 = vpop.f32.mrb[0].mxu0
          %v1606 = vadd.f32 0.0, %v1605
          %v1607 = vpop.f32.mrb[0].mxu0
          %v1608 = vpop.f32.mrb[0].mxu0
          %v1609 = vpop.f32.mrb[0].mxu0
          %1610 = vdwg.mxu0
          %v1612 = vsel %vm1564, %v1315, 0
          %v1615 = vsel %vm1564, %v1439, 0
          %1617 = vmatprep.subr.bf16.mxu0 0
          %1618 = vmatpush1.bf16.xpose.msra.mxu0 %v1615
          %1619 = vmatprep.subr.bf16.mxu0 0
          %1620 = vmatpush1.bf16.xpose.msra.mxu0 0
          %1621 = vmatprep.subr.bf16.mxu0 0
          %1622 = vmatpush1.bf16.xpose.msra.mxu0 0
          %1623 = vmatprep.subr.bf16.mxu0 0
          %1624 = vmatpush1.bf16.xpose.msra.mxu0 0
          %1625 = vmatprep.subr.bf16.mxu0 0
          %1626 = vmatpush1.bf16.xpose.msra.mxu0 0
          %1627 = vmatprep.subr.bf16.mxu0 0
          %1628 = vmatpush1.bf16.xpose.msra.mxu0 0
          %1629 = vmatprep.subr.bf16.mxu0 0
          %1630 = vmatpush1.bf16.xpose.msra.mxu0 0
          %1631 = vmatprep.subr.bf16.mxu0 0
          %1632 = vmatpush1.bf16.xpose.msra.mxu0 0
          %1633 = vmatprep.subr.bf16.mxu0 0
          %1634 = vmatpush1.bf16.xpose.msra.mxu0 0
          %1635 = vmatprep.subr.bf16.mxu0 0
          %1636 = vmatpush1.bf16.xpose.msra.mxu0 0
          %1637 = vmatprep.subr.bf16.mxu0 0
          %1638 = vmatpush1.bf16.xpose.msra.mxu0 0
          %1639 = vmatprep.subr.bf16.mxu0 0
          %1640 = vmatpush1.bf16.xpose.msra.mxu0 0
          %1641 = vmatprep.subr.bf16.mxu0 0
          %1642 = vmatpush1.bf16.xpose.msra.mxu0 0
          %1643 = vmatprep.subr.bf16.mxu0 0
          %1644 = vmatpush1.bf16.xpose.msra.mxu0 0
          %1645 = vmatprep.subr.bf16.mxu0 0
          %1646 = vmatpush1.bf16.xpose.msra.mxu0 0
          %1647 = vmatprep.subr.bf16.mxu0 0
          %1648 = vmatpush1.bf16.xpose.msra.mxu0 0
          %1649 = vmatprep.mubr.bf16.mxu0 0
          %1650 = vmatmul.mubr.bf16.gmra.mrb[0].mxu0 %v1612
          %v1651 = vpop.f32.mrb[0].mxu0
          %v1652 = vadd.f32 0.0, %v1651
          %v1653 = vpop.f32.mrb[0].mxu0
          %v1654 = vpop.f32.mrb[0].mxu0
          %v1655 = vpop.f32.mrb[0].mxu0
          %1656 = vdwg.mxu0
          %vm1657 = vcmask 64512
          %v1658 = vsel %vm1657, %v1606, -inf
          %1659 = vmax.xlane.f32.xlu0 %v1658
          %v1660 = vpop.xlane.xlu0 %1659
          %v1661 = vsel %vm1657, %v1652, -inf
          %1662 = vmax.xlane.f32.xlu0 %v1661
          %v1663 = vpop.xlane.xlu0 %1662
          %v1664 = vsub.f32 %v1606, %v1660
          %v1665 = vsub.f32 %v1652, %v1663
          %v1666 = vmul.f32 %v1664, 1.442695
          %v1667 = vpow.pop %v1666
          %v1668 = vmul.f32 %v1665, 1.442695
          %v1669 = vpow.pop %v1668
          %v1670 = vsel %vm1657, %v1667, 0.0
          %1671 = vadd.xlane.f32.xlu0 %v1670
          %v1672 = vpop.xlane.xlu0 %1671
          %v1673 = vsel %vm1657, %v1669, 0.0
          %1674 = vadd.xlane.f32.xlu0 %v1673
          %v1675 = vpop.xlane.xlu0 %1674
          %v1676 = vrcp.pop %v1672
          %v1677 = vmul.f32 %v1667, %v1676
          %v1678 = vrcp.pop %v1675
          %v1679 = vmul.f32 %v1669, %v1678
          %v1680 = vpack.c.bf16 %v1677, %v1677
          %v1681 = vpack.c.bf16 %v1679, %v1679
          %v1683 = vsel %vm1657, %v1680, 0
          %vm1685 = vcmask 1043456
          %v1687 = vsel %vm1685, %v1562, 0
          %1689 = vmatprep.subr.bf16.mxu0 0
          %1690 = vmatpush1.bf16.msra.mxu0 %v1687
          %1691 = vmatprep.subr.bf16.mxu0 0
          %1692 = vmatpush1.bf16.msra.mxu0 0
          %1693 = vmatprep.subr.bf16.mxu0 0
          %1694 = vmatpush1.bf16.msra.mxu0 0
          %1695 = vmatprep.subr.bf16.mxu0 0
          %1696 = vmatpush1.bf16.msra.mxu0 0
          %1697 = vmatprep.subr.bf16.mxu0 0
          %1698 = vmatpush1.bf16.msra.mxu0 0
          %1699 = vmatprep.subr.bf16.mxu0 0
          %1700 = vmatpush1.bf16.msra.mxu0 0
          %1701 = vmatprep.subr.bf16.mxu0 0
          %1702 = vmatpush1.bf16.msra.mxu0 0
          %1703 = vmatprep.subr.bf16.mxu0 0
          %1704 = vmatpush1.bf16.msra.mxu0 0
          %1705 = vmatprep.subr.bf16.mxu0 0
          %1706 = vmatpush1.bf16.msra.mxu0 0
          %1707 = vmatprep.subr.bf16.mxu0 0
          %1708 = vmatpush1.bf16.msra.mxu0 0
          %1709 = vmatprep.subr.bf16.mxu0 0
          %1710 = vmatpush1.bf16.msra.mxu0 0
          %1711 = vmatprep.subr.bf16.mxu0 0
          %1712 = vmatpush1.bf16.msra.mxu0 0
          %1713 = vmatprep.subr.bf16.mxu0 0
          %1714 = vmatpush1.bf16.msra.mxu0 0
          %1715 = vmatprep.subr.bf16.mxu0 0
          %1716 = vmatpush1.bf16.msra.mxu0 0
          %1717 = vmatprep.subr.bf16.mxu0 0
          %1718 = vmatpush1.bf16.msra.mxu0 0
          %1719 = vmatprep.subr.bf16.mxu0 0
          %1720 = vmatpush1.bf16.msra.mxu0 0
          %1721 = vmatprep.mubr.bf16.mxu0 0
          %1722 = vmatmul.mubr.bf16.gmra.mrb[0].mxu0 %v1683
          %v1723 = vpop.f32.mrb[0].mxu0
          %v1724 = vadd.f32 0.0, %v1723
          %v1725 = vpop.f32.mrb[0].mxu0
          %v1726 = vpop.f32.mrb[0].mxu0
          %v1727 = vpop.f32.mrb[0].mxu0
          %1728 = vdwg.mxu0
          %v1730 = vsel %vm1657, %v1681, 0
          %v1733 = vsel %vm1685, %v1563, 0
          %1735 = vmatprep.subr.bf16.mxu0 0
          %1736 = vmatpush1.bf16.msra.mxu0 %v1733
          %1737 = vmatprep.subr.bf16.mxu0 0
          %1738 = vmatpush1.bf16.msra.mxu0 0
          %1739 = vmatprep.subr.bf16.mxu0 0
          %1740 = vmatpush1.bf16.msra.mxu0 0
          %1741 = vmatprep.subr.bf16.mxu0 0
          %1742 = vmatpush1.bf16.msra.mxu0 0
          %1743 = vmatprep.subr.bf16.mxu0 0
          %1744 = vmatpush1.bf16.msra.mxu0 0
          %1745 = vmatprep.subr.bf16.mxu0 0
          %1746 = vmatpush1.bf16.msra.mxu0 0
          %1747 = vmatprep.subr.bf16.mxu0 0
          %1748 = vmatpush1.bf16.msra.mxu0 0
          %1749 = vmatprep.subr.bf16.mxu0 0
          %1750 = vmatpush1.bf16.msra.mxu0 0
          %1751 = vmatprep.subr.bf16.mxu0 0
          %1752 = vmatpush1.bf16.msra.mxu0 0
          %1753 = vmatprep.subr.bf16.mxu0 0
          %1754 = vmatpush1.bf16.msra.mxu0 0
          %1755 = vmatprep.subr.bf16.mxu0 0
          %1756 = vmatpush1.bf16.msra.mxu0 0
          %1757 = vmatprep.subr.bf16.mxu0 0
          %1758 = vmatpush1.bf16.msra.mxu0 0
          %1759 = vmatprep.subr.bf16.mxu0 0
          %1760 = vmatpush1.bf16.msra.mxu0 0
          %1761 = vmatprep.subr.bf16.mxu0 0
          %1762 = vmatpush1.bf16.msra.mxu0 0
          %1763 = vmatprep.subr.bf16.mxu0 0
          %1764 = vmatpush1.bf16.msra.mxu0 0
          %1765 = vmatprep.subr.bf16.mxu0 0
          %1766 = vmatpush1.bf16.msra.mxu0 0
          %1767 = vmatprep.mubr.bf16.mxu0 0
          %1768 = vmatmul.mubr.bf16.gmra.mrb[0].mxu0 %v1730
          %v1769 = vpop.f32.mrb[0].mxu0
          %v1770 = vadd.f32 0.0, %v1769
          %v1771 = vpop.f32.mrb[0].mxu0
          %v1772 = vpop.f32.mrb[0].mxu0
          %v1773 = vpop.f32.mrb[0].mxu0
          %1774 = vdwg.mxu0
          %v1775 = vcombine.high %v1724, 0.0
          %v1777 = vunpack.c.l.s4 1983009808
          %v1778 = vunpack.c.0.s8 %v1777
          %v1779 = vlaneseq
          %v1780 = vshrl.u32 %v1779, 7
          %v1781 = vsub.s32 %v1778, %v1780
          %v1782 = vrot.slane %v1724, %v1781
          %v1784 = vunpack.c.l.s4 1983009808
          %v1785 = vunpack.c.0.s8 %v1784
          %v1786 = vlaneseq
          %v1787 = vshrl.u32 %v1786, 7
          %v1788 = vsub.s32 %v1785, %v1787
          %v1789 = vrot.slane %v1775, %v1788
          %v1790 = vcombine.high %v1770, 0.0
          %v1792 = vunpack.c.l.s4 1983009808
          %v1793 = vunpack.c.0.s8 %v1792
          %v1794 = vlaneseq
          %v1795 = vshrl.u32 %v1794, 7
          %v1796 = vsub.s32 %v1793, %v1795
          %v1797 = vrot.slane %v1770, %v1796
          %v1799 = vunpack.c.l.s4 1983009808
          %v1800 = vunpack.c.0.s8 %v1799
          %v1801 = vlaneseq
          %v1802 = vshrl.u32 %v1801, 7
          %v1803 = vsub.s32 %v1800, %v1802
          %v1804 = vrot.slane %v1790, %v1803
          %v1805 = vcombine.low %v1782, %v1797
          %v1806 = vcombine.high %v1782, %v1797
          %v1808 = vunpack.c.l.s4 1934713408
          %v1809 = vunpack.c.0.s8 %v1808
          %v1810 = vlaneseq
          %v1811 = vshrl.u32 %v1810, 7
          %v1812 = vsub.s32 %v1809, %v1811
          %v1813 = vrot.slane %v1805, %v1812
          %v1815 = vunpack.c.l.s4 1934713408
          %v1816 = vunpack.c.0.s8 %v1815
          %v1817 = vlaneseq
          %v1818 = vshrl.u32 %v1817, 7
          %v1819 = vsub.s32 %v1816, %v1818
          %v1820 = vrot.slane %v1806, %v1819
          %v1821 = vcombine.low %v1789, %v1804
          %v1822 = vcombine.high %v1789, %v1804
          %v1824 = vunpack.c.l.s4 1934713408
          %v1825 = vunpack.c.0.s8 %v1824
          %v1826 = vlaneseq
          %v1827 = vshrl.u32 %v1826, 7
          %v1828 = vsub.s32 %v1825, %v1827
          %v1829 = vrot.slane %v1821, %v1828
          %v1831 = vunpack.c.l.s4 1934713408
          %v1832 = vunpack.c.0.s8 %v1831
          %v1833 = vlaneseq
          %v1834 = vshrl.u32 %v1833, 7
          %v1835 = vsub.s32 %v1832, %v1834
          %v1836 = vrot.slane %v1822, %v1835
          %v1837 = vcombine.high %v1813, 0.0
          %v1838 = vcombine.high %v1820, 0.0
          %v1839 = vcombine.high %v1829, 0.0
          %v1840 = vcombine.high %v1836, 0.0
          %v1841 = vcombine.low %v1813, %v1820
          %v1843 = vunpack.c.l.s4 1983009808
          %v1844 = vunpack.c.0.s8 %v1843
          %v1845 = vlaneseq
          %v1846 = vshrl.u32 %v1845, 7
          %v1847 = vsub.s32 %v1844, %v1846
          %v1848 = vrot.slane %v1841, %v1847
          %v1849 = vcombine.low %v1837, %v1838
          %v1851 = vunpack.c.l.s4 1983009808
          %v1852 = vunpack.c.0.s8 %v1851
          %v1853 = vlaneseq
          %v1854 = vshrl.u32 %v1853, 7
          %v1855 = vsub.s32 %v1852, %v1854
          %v1856 = vrot.slane %v1849, %v1855
          %v1857 = vcombine.low %v1829, %v1836
          %v1859 = vunpack.c.l.s4 1983009808
          %v1860 = vunpack.c.0.s8 %v1859
          %v1861 = vlaneseq
          %v1862 = vshrl.u32 %v1861, 7
          %v1863 = vsub.s32 %v1860, %v1862
          %v1864 = vrot.slane %v1857, %v1863
          %v1865 = vcombine.low %v1839, %v1840
          %v1867 = vunpack.c.l.s4 1983009808
          %v1868 = vunpack.c.0.s8 %v1867
          %v1869 = vlaneseq
          %v1870 = vshrl.u32 %v1869, 7
          %v1871 = vsub.s32 %v1868, %v1870
          %v1872 = vrot.slane %v1865, %v1871
          %v1873 = vcombine.low %v1848, %v1856
          %v1875 = vunpack.c.l.s4 1934713408
          %v1876 = vunpack.c.0.s8 %v1875
          %v1877 = vlaneseq
          %v1878 = vshrl.u32 %v1877, 7
          %v1879 = vsub.s32 %v1876, %v1878
          %v1880 = vrot.slane %v1873, %v1879
          %v1881 = vcombine.low %v1864, %v1872
          %v1883 = vunpack.c.l.s4 1934713408
          %v1884 = vunpack.c.0.s8 %v1883
          %v1885 = vlaneseq
          %v1886 = vshrl.u32 %v1885, 7
          %v1887 = vsub.s32 %v1884, %v1886
          %v1888 = vrot.slane %v1881, %v1887
          %v1889 = vcombine.low %v1880, %v1888
          %v1890 = vcombine.high %v1880, %v1888
          %1892 = vrot.lane.b32.xlu0 %v1890, 16
          %v1893 = vpop.permute.xlu0 %1892
          %v1895 = vsel %vm1564, %v1889, %v1893
          %v1896 = vpack.c.bf16 %v1895, %v1895
          %s1897 = smul.addr %s1123, 4
          %s1898 = scalar_lea.vmem [#allocation12], %s1897
          %v1899 = vld [vmem:[%s1898] sm:$0xf]
          %v1900 = vld [vmem:[%s1898 + $0x4] sm:$0xf]
          %v1901 = vld [vmem:[%s1898 + $0x8] sm:$0xf]
          %v1902 = vld [vmem:[%s1898 + $0xc] sm:$0xf]
          %s1903 = scalar_lea.vmem [#allocation13], %s1116
          %v1904 = vld [vmem:[%s1903] sm:$0x1]
          %v1906 = vlaneseq
          %v1907 = vshrl.u32 %v1906, 7
          %v1908 = vsub.s32 0, %v1907
          %v1909 = vrot.slane %v1904, %v1908
          %v1915 = vunpack.c.l.b16 %v1899
          %v1916 = vunpack.c.l.b16 %v1900
          %v1917 = vunpack.c.l.b16 %v1901
          %v1918 = vunpack.c.l.b16 %v1902
          %v1919 = vpack.c.b16 %v1916, %v1915
          %v1920 = vpack.c.b16 %v1918, %v1917
          %v1924 = vsel %vm1150, %v1896, 0
          %1926 = vmatprep.subr.bf16.mxu0 0
          %1927 = vmatpush1.bf16.msra.mxu0 %v1919
          %1928 = vmatprep.subr.bf16.mxu0 0
          %1929 = vmatpush1.bf16.msra.mxu0 %v1920
          %1930 = vmatprep.subr.bf16.mxu0 0
          %1931 = vmatpush1.bf16.msra.mxu0 0
          %1932 = vmatprep.subr.bf16.mxu0 0
          %1933 = vmatpush1.bf16.msra.mxu0 0
          %1934 = vmatprep.subr.bf16.mxu0 0
          %1935 = vmatpush1.bf16.msra.mxu0 0
          %1936 = vmatprep.subr.bf16.mxu0 0
          %1937 = vmatpush1.bf16.msra.mxu0 0
          %1938 = vmatprep.subr.bf16.mxu0 0
          %1939 = vmatpush1.bf16.msra.mxu0 0
          %1940 = vmatprep.subr.bf16.mxu0 0
          %1941 = vmatpush1.bf16.msra.mxu0 0
          %1942 = vmatprep.subr.bf16.mxu0 0
          %1943 = vmatpush1.bf16.msra.mxu0 0
          %1944 = vmatprep.subr.bf16.mxu0 0
          %1945 = vmatpush1.bf16.msra.mxu0 0
          %1946 = vmatprep.subr.bf16.mxu0 0
          %1947 = vmatpush1.bf16.msra.mxu0 0
          %1948 = vmatprep.subr.bf16.mxu0 0
          %1949 = vmatpush1.bf16.msra.mxu0 0
          %1950 = vmatprep.subr.bf16.mxu0 0
          %1951 = vmatpush1.bf16.msra.mxu0 0
          %1952 = vmatprep.subr.bf16.mxu0 0
          %1953 = vmatpush1.bf16.msra.mxu0 0
          %1954 = vmatprep.subr.bf16.mxu0 0
          %1955 = vmatpush1.bf16.msra.mxu0 0
          %1956 = vmatprep.subr.bf16.mxu0 0
          %1957 = vmatpush1.bf16.msra.mxu0 0
          %1958 = vmatprep.mubr.bf16.mxu0 0
          %1959 = vmatmul.mubr.bf16.gmra.mrb[0].mxu0 %v1924
          %v1960 = vpop.f32.mrb[0].mxu0
          %v1961 = vadd.f32 %v1909, %v1960
          %v1962 = vpop.f32.mrb[0].mxu0
          %v1963 = vpop.f32.mrb[0].mxu0
          %v1964 = vpop.f32.mrb[0].mxu0
          %1965 = vdwg.mxu0
          %v1966 = vadd.f32 %v1121, %v1961
          %s1967 = scalar_lea.vmem [#allocation15], %s1116
          %v1968 = vld [vmem:[%s1967] sm:$0x1]
          %s1969 = scalar_lea.vmem [#allocation16], %s1116
          %v1970 = vld [vmem:[%s1969] sm:$0x1]
          %v1971 = vsel %vm1150, %v1966, 0.0
          %1972 = vadd.xlane.f32.xlu0 %v1971
          %v1973 = vpop.xlane.xlu0 %1972
          %v1974 = vrcp.pop 32.0
          %v1975 = vmul.f32 %v1973, %v1974
          %v1976 = vsub.f32 %v1966, %v1975
          %v1977 = vmul.f32 %v1976, %v1976
          %v1978 = vsel %vm1150, %v1977, 0.0
          %1979 = vadd.xlane.f32.xlu0 %v1978
          %v1980 = vpop.xlane.xlu0 %1979
          %v1981 = vmul.f32 %v1980, %v1974
          %v1982 = vadd.f32 %v1981, 1e-05
          %v1983 = vrsqrt.pop %v1982
          %v1984 = vmul.f32 %v1976, %v1983
          %v1986 = vlaneseq
          %v1987 = vshrl.u32 %v1986, 7
          %v1988 = vsub.s32 0, %v1987
          %v1989 = vrot.slane %v1968, %v1988
          %v1991 = vmul.f32 %v1984, %v1989
          %v1993 = vlaneseq
          %v1994 = vshrl.u32 %v1993, 7
          %v1995 = vsub.s32 0, %v1994
          %v1996 = vrot.slane %v1970, %v1995
          %v1998 = vadd.f32 %v1991, %v1996
          %v1999 = vpack.c.bf16 %v1998, %v1998
          %s2000 = smul.addr %s1123, 4
          %s2001 = scalar_lea.vmem [#allocation18], %s2000
          %v2002 = vld [vmem:[%s2001] sm:$0xf]
          %v2003 = vld [vmem:[%s2001 + $0x4] sm:$0xf]
          %v2004 = vld [vmem:[%s2001 + $0x8] sm:$0xf]
          %v2005 = vld [vmem:[%s2001 + $0xc] sm:$0xf]
          %s2006 = scalar_lea.vmem [#allocation19], %s1116
          %v2007 = vld [vmem:[%s2006] sm:$0x1]
          %v2009 = vlaneseq
          %v2010 = vshrl.u32 %v2009, 7
          %v2011 = vsub.s32 0, %v2010
          %v2012 = vrot.slane %v2007, %v2011
          %v2018 = vunpack.c.l.b16 %v2002
          %v2019 = vunpack.c.l.b16 %v2003
          %v2020 = vunpack.c.l.b16 %v2004
          %v2021 = vunpack.c.l.b16 %v2005
          %v2022 = vpack.c.b16 %v2019, %v2018
          %v2023 = vpack.c.b16 %v2021, %v2020
          %v2027 = vsel %vm1150, %v1999, 0
          %2029 = vmatprep.subr.bf16.mxu0 0
          %2030 = vmatpush1.bf16.msra.mxu0 %v2022
          %2031 = vmatprep.subr.bf16.mxu0 0
          %2032 = vmatpush1.bf16.msra.mxu0 %v2023
          %2033 = vmatprep.subr.bf16.mxu0 0
          %2034 = vmatpush1.bf16.msra.mxu0 0
          %2035 = vmatprep.subr.bf16.mxu0 0
          %2036 = vmatpush1.bf16.msra.mxu0 0
          %2037 = vmatprep.subr.bf16.mxu0 0
          %2038 = vmatpush1.bf16.msra.mxu0 0
          %2039 = vmatprep.subr.bf16.mxu0 0
          %2040 = vmatpush1.bf16.msra.mxu0 0
          %2041 = vmatprep.subr.bf16.mxu0 0
          %2042 = vmatpush1.bf16.msra.mxu0 0
          %2043 = vmatprep.subr.bf16.mxu0 0
          %2044 = vmatpush1.bf16.msra.mxu0 0
          %2045 = vmatprep.subr.bf16.mxu0 0
          %2046 = vmatpush1.bf16.msra.mxu0 0
          %2047 = vmatprep.subr.bf16.mxu0 0
          %2048 = vmatpush1.bf16.msra.mxu0 0
          %2049 = vmatprep.subr.bf16.mxu0 0
          %2050 = vmatpush1.bf16.msra.mxu0 0
          %2051 = vmatprep.subr.bf16.mxu0 0
          %2052 = vmatpush1.bf16.msra.mxu0 0
          %2053 = vmatprep.subr.bf16.mxu0 0
          %2054 = vmatpush1.bf16.msra.mxu0 0
          %2055 = vmatprep.subr.bf16.mxu0 0
          %2056 = vmatpush1.bf16.msra.mxu0 0
          %2057 = vmatprep.subr.bf16.mxu0 0
          %2058 = vmatpush1.bf16.msra.mxu0 0
          %2059 = vmatprep.subr.bf16.mxu0 0
          %2060 = vmatpush1.bf16.msra.mxu0 0
          %2061 = vmatprep.mubr.bf16.mxu0 0
          %2062 = vmatmul.mubr.bf16.gmra.mrb[0].mxu0 %v2027
          %v2063 = vpop.f32.mrb[0].mxu0
          %v2064 = vadd.f32 %v2012, %v2063
          %v2065 = vpop.f32.mrb[0].mxu0
          %v2066 = vpop.f32.mrb[0].mxu0
          %v2067 = vpop.f32.mrb[0].mxu0
          %2068 = vdwg.mxu0
          %v2069 = vmax.f32 %v2064, 0.0
          %v2070 = vpack.c.bf16 %v2069, %v2069
          %s2071 = smul.u32 %s1116, 16
          %s2072 = smul.addr %s2071, 4
          %s2073 = scalar_lea.vmem [#allocation21], %s2072
          %v2074 = vld [vmem:[%s2073] sm:$0xf]
          %v2075 = vld [vmem:[%s2073 + $0x4] sm:$0xf]
          %v2076 = vld [vmem:[%s2073 + $0x8] sm:$0xf]
          %v2077 = vld [vmem:[%s2073 + $0xc] sm:$0xf]
          %v2078 = vld [vmem:[%s2073 + $0x10] sm:$0xf]
          %v2079 = vld [vmem:[%s2073 + $0x14] sm:$0xf]
          %v2080 = vld [vmem:[%s2073 + $0x18] sm:$0xf]
          %v2081 = vld [vmem:[%s2073 + $0x1c] sm:$0xf]
          %v2082 = vld [vmem:[%s2073 + $0x20] sm:$0xf]
          %v2083 = vld [vmem:[%s2073 + $0x24] sm:$0xf]
          %v2084 = vld [vmem:[%s2073 + $0x28] sm:$0xf]
          %v2085 = vld [vmem:[%s2073 + $0x2c] sm:$0xf]
          %v2086 = vld [vmem:[%s2073 + $0x30] sm:$0xf]
          %v2087 = vld [vmem:[%s2073 + $0x34] sm:$0xf]
          %v2088 = vld [vmem:[%s2073 + $0x38] sm:$0xf]
          %v2089 = vld [vmem:[%s2073 + $0x3c] sm:$0xf]
          %s2090 = scalar_lea.vmem [#allocation22], %s1116
          %v2091 = vld [vmem:[%s2090] sm:$0x1]
          %v2093 = vlaneseq
          %v2094 = vshrl.u32 %v2093, 7
          %v2095 = vsub.s32 0, %v2094
          %v2096 = vrot.slane %v2091, %v2095
          %v2114 = vunpack.c.l.b16 %v2074
          %v2115 = vunpack.c.l.b16 %v2075
          %v2116 = vunpack.c.l.b16 %v2076
          %v2117 = vunpack.c.l.b16 %v2077
          %v2118 = vunpack.c.l.b16 %v2078
          %v2119 = vunpack.c.l.b16 %v2079
          %v2120 = vunpack.c.l.b16 %v2080
          %v2121 = vunpack.c.l.b16 %v2081
          %v2122 = vunpack.c.l.b16 %v2082
          %v2123 = vunpack.c.l.b16 %v2083
          %v2124 = vunpack.c.l.b16 %v2084
          %v2125 = vunpack.c.l.b16 %v2085
          %v2126 = vunpack.c.l.b16 %v2086
          %v2127 = vunpack.c.l.b16 %v2087
          %v2128 = vunpack.c.l.b16 %v2088
          %v2129 = vunpack.c.l.b16 %v2089
          %v2130 = vpack.c.b16 %v2115, %v2114
          %v2131 = vpack.c.b16 %v2117, %v2116
          %v2132 = vpack.c.b16 %v2119, %v2118
          %v2133 = vpack.c.b16 %v2121, %v2120
          %v2134 = vpack.c.b16 %v2123, %v2122
          %v2135 = vpack.c.b16 %v2125, %v2124
          %v2136 = vpack.c.b16 %v2127, %v2126
          %v2137 = vpack.c.b16 %v2129, %v2128
          %2146 = vmatprep.subr.bf16.mxu0 0
          %2147 = vmatpush1.bf16.msra.mxu0 %v2130
          %2148 = vmatprep.subr.bf16.mxu0 0
          %2149 = vmatpush1.bf16.msra.mxu0 %v2131
          %2150 = vmatprep.subr.bf16.mxu0 0
          %2151 = vmatpush1.bf16.msra.mxu0 %v2132
          %2152 = vmatprep.subr.bf16.mxu0 0
          %2153 = vmatpush1.bf16.msra.mxu0 %v2133
          %2154 = vmatprep.subr.bf16.mxu0 0
          %2155 = vmatpush1.bf16.msra.mxu0 %v2134
          %2156 = vmatprep.subr.bf16.mxu0 0
          %2157 = vmatpush1.bf16.msra.mxu0 %v2135
          %2158 = vmatprep.subr.bf16.mxu0 0
          %2159 = vmatpush1.bf16.msra.mxu0 %v2136
          %2160 = vmatprep.subr.bf16.mxu0 0
          %2161 = vmatpush1.bf16.msra.mxu0 %v2137
          %2162 = vmatprep.subr.bf16.mxu0 0
          %2163 = vmatpush1.bf16.msra.mxu0 0
          %2164 = vmatprep.subr.bf16.mxu0 0
          %2165 = vmatpush1.bf16.msra.mxu0 0
          %2166 = vmatprep.subr.bf16.mxu0 0
          %2167 = vmatpush1.bf16.msra.mxu0 0
          %2168 = vmatprep.subr.bf16.mxu0 0
          %2169 = vmatpush1.bf16.msra.mxu0 0
          %2170 = vmatprep.subr.bf16.mxu0 0
          %2171 = vmatpush1.bf16.msra.mxu0 0
          %2172 = vmatprep.subr.bf16.mxu0 0
          %2173 = vmatpush1.bf16.msra.mxu0 0
          %2174 = vmatprep.subr.bf16.mxu0 0
          %2175 = vmatpush1.bf16.msra.mxu0 0
          %2176 = vmatprep.subr.bf16.mxu0 0
          %2177 = vmatpush1.bf16.msra.mxu0 0
          %2178 = vmatprep.mubr.bf16.mxu0 0
          %2179 = vmatmul.mubr.bf16.gmra.mrb[0].mxu0 %v2070
          %v2180 = vpop.f32.mrb[0].mxu0
          %v2181 = vadd.f32 %v2096, %v2180
          %v2182 = vpop.f32.mrb[0].mxu0
          %v2183 = vpop.f32.mrb[0].mxu0
          %v2184 = vpop.f32.mrb[0].mxu0
          %2185 = vdwg.mxu0
          %v2186 = vadd.f32 %v1998, %v2181
          %s2187 = scalar_lea.vmem [#allocation24], %s1116
          %v2188 = vld [vmem:[%s2187] sm:$0x1]
          %s2189 = scalar_lea.vmem [#allocation25], %s1116
          %v2190 = vld [vmem:[%s2189] sm:$0x1]
          %v2191 = vsel %vm1150, %v2186, 0.0
          %2192 = vadd.xlane.f32.xlu0 %v2191
          %v2193 = vpop.xlane.xlu0 %2192
          %v2194 = vmul.f32 %v2193, %v1974
          %v2195 = vsub.f32 %v2186, %v2194
          %v2196 = vmul.f32 %v2195, %v2195
          %v2197 = vsel %vm1150, %v2196, 0.0
          %2198 = vadd.xlane.f32.xlu0 %v2197
          %v2199 = vpop.xlane.xlu0 %2198
          %v2200 = vmul.f32 %v2199, %v1974
          %v2201 = vadd.f32 %v2200, 1e-05
          %v2202 = vrsqrt.pop %v2201
          %v2203 = vmul.f32 %v2195, %v2202
          %v2205 = vlaneseq
          %v2206 = vshrl.u32 %v2205, 7
          %v2207 = vsub.s32 0, %v2206
          %v2208 = vrot.slane %v2188, %v2207
          %v2210 = vmul.f32 %v2203, %v2208
          %v2212 = vlaneseq
          %v2213 = vshrl.u32 %v2212, 7
          %v2214 = vsub.s32 0, %v2213
          %v2215 = vrot.slane %v2190, %v2214
          %v2217 = vadd.f32 %v2210, %v2215
        $region217: #{tpu_custom_call.1} parent=115 // loop_footer
          %s1120 = sadd.s32 1, %s1116
        $region218: #{tpu_custom_call.1} parent=115 // loop_footer_branch
          %1115 = sbr.rel target = $region214
        $region219: #{tpu_custom_call.1} parent=115 // loop_exit
          _
        %vm2218 = vcmask 261120
        %2219 = vst.msk [vmem:[%s1103] sm:$0xff] %vm2218, %v1121
        %v2221 = vrot.slane %v1121, 7
        %vm2223 = vcmask 1040384
        %v2224 = vsel %vm2223, 0.0, %v2221
        %v2225 = vrot.slane %v1121, 1
        %vm2227 = vcmask 1046528
        %v2228 = vsel %vm2227, %v2225, 0.0
        %2229 = vrot.lane.b32.xlu0 %v1121, 32
        %v2230 = vpop.permute.xlu0 %2229
        %2233 = vrot.lane.b32.xlu0 %v2228, 64
        %v2234 = vpop.permute.xlu0 %2233
        %v2236 = vsel %vm2218, %v2224, %v2230
        %vm2237 = vcmask 523264
        %v2238 = vsel %vm2237, %v2236, %v2234
        %v2239 = vpack.c.bf16 %v2238, %v2238
        %v2240 = vld [vmem:[#allocation27] sm:$0xf]
        %v2241 = vld [vmem:[#allocation27 + $0x4] sm:$0xf]
        %v2242 = vld [vmem:[#allocation27 + $0x8] sm:$0xf]
        %v2243 = vld [vmem:[#allocation27 + $0xc] sm:$0xf]
        %v2244 = vld [vmem:[#allocation27 + $0x10] sm:$0xf]
        %v2245 = vld [vmem:[#allocation27 + $0x14] sm:$0xf]
        %v2246 = vld [vmem:[#allocation27 + $0x18] sm:$0xf]
        %v2247 = vld [vmem:[#allocation27 + $0x1c] sm:$0xf]
        %v2248 = vld [vmem:[#allocation27 + $0x20] sm:$0xf]
        %v2249 = vld [vmem:[#allocation27 + $0x24] sm:$0xf]
        %v2250 = vld [vmem:[#allocation27 + $0x28] sm:$0xf]
        %v2251 = vld [vmem:[#allocation27 + $0x2c] sm:$0xf]
        %v2252 = vld [vmem:[#allocation28] sm:$0x1]
        %v2254 = vlaneseq
        %v2255 = vshrl.u32 %v2254, 7
        %v2256 = vsub.s32 0, %v2255
        %v2257 = vrot.slane %v2252, %v2256
        %v2271 = vunpack.c.l.b16 %v2240
        %v2272 = vunpack.c.l.b16 %v2241
        %v2273 = vunpack.c.l.b16 %v2242
        %v2274 = vunpack.c.l.b16 %v2243
        %v2275 = vunpack.c.l.b16 %v2244
        %v2276 = vunpack.c.l.b16 %v2245
        %v2277 = vunpack.c.l.b16 %v2246
        %v2278 = vunpack.c.l.b16 %v2247
        %v2279 = vunpack.c.l.b16 %v2248
        %v2280 = vunpack.c.l.b16 %v2249
        %v2281 = vunpack.c.l.b16 %v2250
        %v2282 = vunpack.c.l.b16 %v2251
        %v2283 = vpack.c.b16 %v2272, %v2271
        %v2284 = vpack.c.b16 %v2274, %v2273
        %v2285 = vpack.c.b16 %v2276, %v2275
        %v2286 = vpack.c.b16 %v2278, %v2277
        %v2287 = vpack.c.b16 %v2280, %v2279
        %v2288 = vpack.c.b16 %v2282, %v2281
        %vm2295 = vcmask 785408
        %v2297 = vsel %vm2295, %v2239, 0
        %2299 = vmatprep.subr.bf16.mxu0 0
        %2300 = vmatpush1.bf16.msra.mxu0 %v2283
        %2301 = vmatprep.subr.bf16.mxu0 0
        %2302 = vmatpush1.bf16.msra.mxu0 %v2284
        %2303 = vmatprep.subr.bf16.mxu0 0
        %2304 = vmatpush1.bf16.msra.mxu0 %v2285
        %2305 = vmatprep.subr.bf16.mxu0 0
        %2306 = vmatpush1.bf16.msra.mxu0 %v2286
        %2307 = vmatprep.subr.bf16.mxu0 0
        %2308 = vmatpush1.bf16.msra.mxu0 %v2287
        %2309 = vmatprep.subr.bf16.mxu0 0
        %2310 = vmatpush1.bf16.msra.mxu0 %v2288
        %2311 = vmatprep.subr.bf16.mxu0 0
        %2312 = vmatpush1.bf16.msra.mxu0 0
        %2313 = vmatprep.subr.bf16.mxu0 0
        %2314 = vmatpush1.bf16.msra.mxu0 0
        %2315 = vmatprep.subr.bf16.mxu0 0
        %2316 = vmatpush1.bf16.msra.mxu0 0
        %2317 = vmatprep.subr.bf16.mxu0 0
        %2318 = vmatpush1.bf16.msra.mxu0 0
        %2319 = vmatprep.subr.bf16.mxu0 0
        %2320 = vmatpush1.bf16.msra.mxu0 0
        %2321 = vmatprep.subr.bf16.mxu0 0
        %2322 = vmatpush1.bf16.msra.mxu0 0
        %2323 = vmatprep.subr.bf16.mxu0 0
        %2324 = vmatpush1.bf16.msra.mxu0 0
        %2325 = vmatprep.subr.bf16.mxu0 0
        %2326 = vmatpush1.bf16.msra.mxu0 0
        %2327 = vmatprep.subr.bf16.mxu0 0
        %2328 = vmatpush1.bf16.msra.mxu0 0
        %2329 = vmatprep.subr.bf16.mxu0 0
        %2330 = vmatpush1.bf16.msra.mxu0 0
        %2331 = vmatprep.mubr.bf16.mxu0 0
        %2332 = vmatmul.mubr.bf16.gmra.mrb[0].mxu0 %v2297
        %v2333 = vpop.f32.mrb[0].mxu0
        %v2334 = vadd.f32 %v2257, %v2333
        %v2335 = vpop.f32.mrb[0].mxu0
        %v2336 = vpop.f32.mrb[0].mxu0
        %v2337 = vpop.f32.mrb[0].mxu0
        %2338 = vdwg.mxu0
        %v2339 = vld [vmem:[#allocation30] sm:$0x1]
        %v2340 = vld [vmem:[#allocation31] sm:$0x1]
        %v2341 = vsel %vm2237, %v2334, 0.0
        %2342 = vadd.xlane.f32.xlu0 %v2341
        %v2343 = vpop.xlane.xlu0 %2342
        %v2344 = vrcp.pop 64.0
        %v2345 = vmul.f32 %v2343, %v2344
        %v2346 = vsub.f32 %v2334, %v2345
        %v2347 = vmul.f32 %v2346, %v2346
        %v2348 = vsel %vm2237, %v2347, 0.0
        %2349 = vadd.xlane.f32.xlu0 %v2348
        %v2350 = vpop.xlane.xlu0 %2349
        %v2351 = vmul.f32 %v2350, %v2344
        %v2352 = vadd.f32 %v2351, 1e-05
        %v2353 = vrsqrt.pop %v2352
        %v2354 = vmul.f32 %v2346, %v2353
        %v2356 = vlaneseq
        %v2357 = vshrl.u32 %v2356, 7
        %v2358 = vsub.s32 0, %v2357
        %v2359 = vrot.slane %v2339, %v2358
        %v2361 = vmul.f32 %v2354, %v2359
        %v2363 = vlaneseq
        %v2364 = vshrl.u32 %v2363, 7
        %v2365 = vsub.s32 0, %v2364
        %v2366 = vrot.slane %v2340, %v2365
        %v2368 = vadd.f32 %v2361, %v2366
        %v2369 = vmax.f32 %v2368, 0.0
        %v2371 = vrot.slane %v2369, 7
        %v2373 = vsel %vm2223, 0.0, %v2371
        %v2374 = vrot.slane %v2369, 1
        %v2376 = vsel %vm2227, %v2374, 0.0
        %2377 = vrot.lane.b32.xlu0 %v2369, 64
        %v2378 = vpop.permute.xlu0 %2377
        %v2380 = vsel %vm2237, %v2373, %v2378
        %v2381 = vpack.c.bf16 %v2380, %v2380
        %v2382 = vpack.c.bf16 %v2376, %v2376
        %v2383 = vld [vmem:[#allocation33] sm:$0xf]
        %v2384 = vld [vmem:[#allocation33 + $0x4] sm:$0xf]
        %v2385 = vld [vmem:[#allocation33 + $0x8] sm:$0xf]
        %v2386 = vld [vmem:[#allocation33 + $0xc] sm:$0xf]
        %v2387 = vld [vmem:[#allocation33 + $0x10] sm:$0xf]
        %v2388 = vld [vmem:[#allocation33 + $0x14] sm:$0xf]
        %v2389 = vld [vmem:[#allocation33 + $0x18] sm:$0xf]
        %v2390 = vld [vmem:[#allocation33 + $0x1c] sm:$0xf]
        %v2391 = vld [vmem:[#allocation33 + $0x20] sm:$0xf]
        %v2392 = vld [vmem:[#allocation33 + $0x24] sm:$0xf]
        %v2393 = vld [vmem:[#allocation33 + $0x28] sm:$0xf]
        %v2394 = vld [vmem:[#allocation33 + $0x2c] sm:$0xf]
        %v2395 = vld [vmem:[#allocation33 + $0x30] sm:$0xf]
        %v2396 = vld [vmem:[#allocation33 + $0x34] sm:$0xf]
        %v2397 = vld [vmem:[#allocation33 + $0x38] sm:$0xf]
        %v2398 = vld [vmem:[#allocation33 + $0x3c] sm:$0xf]
        %v2399 = vld [vmem:[#allocation33 + $0x40] sm:$0xf]
        %v2400 = vld [vmem:[#allocation33 + $0x44] sm:$0xf]
        %v2401 = vld [vmem:[#allocation33 + $0x48] sm:$0xf]
        %v2402 = vld [vmem:[#allocation33 + $0x4c] sm:$0xf]
        %v2403 = vld [vmem:[#allocation33 + $0x50] sm:$0xf]
        %v2404 = vld [vmem:[#allocation33 + $0x54] sm:$0xf]
        %v2405 = vld [vmem:[#allocation33 + $0x58] sm:$0xf]
        %v2406 = vld [vmem:[#allocation33 + $0x5c] sm:$0xf]
        %v2407 = vld [vmem:[#allocation34] sm:$0x1]
        %v2409 = vlaneseq
        %v2410 = vshrl.u32 %v2409, 7
        %v2411 = vsub.s32 0, %v2410
        %v2412 = vrot.slane %v2407, %v2411
        %v2438 = vunpack.c.l.b16 %v2383
        %v2439 = vunpack.c.l.b16 %v2384
        %v2440 = vunpack.c.l.b16 %v2385
        %v2441 = vunpack.c.l.b16 %v2386
        %v2442 = vunpack.c.l.b16 %v2387
        %v2443 = vunpack.c.l.b16 %v2388
        %v2444 = vunpack.c.l.b16 %v2389
        %v2445 = vunpack.c.l.b16 %v2390
        %v2446 = vunpack.c.l.b16 %v2391
        %v2447 = vunpack.c.l.b16 %v2392
        %v2448 = vunpack.c.l.b16 %v2393
        %v2449 = vunpack.c.l.b16 %v2394
        %v2450 = vunpack.c.l.b16 %v2395
        %v2451 = vunpack.c.l.b16 %v2396
        %v2452 = vunpack.c.l.b16 %v2397
        %v2453 = vunpack.c.l.b16 %v2398
        %v2454 = vunpack.c.l.b16 %v2399
        %v2455 = vunpack.c.l.b16 %v2400
        %v2456 = vunpack.c.l.b16 %v2401
        %v2457 = vunpack.c.l.b16 %v2402
        %v2458 = vunpack.c.l.b16 %v2403
        %v2459 = vunpack.c.l.b16 %v2404
        %v2460 = vunpack.c.l.b16 %v2405
        %v2461 = vunpack.c.l.b16 %v2406
        %v2462 = vpack.c.b16 %v2439, %v2438
        %v2463 = vpack.c.b16 %v2441, %v2440
        %v2464 = vpack.c.b16 %v2443, %v2442
        %v2465 = vpack.c.b16 %v2445, %v2444
        %v2466 = vpack.c.b16 %v2447, %v2446
        %v2467 = vpack.c.b16 %v2449, %v2448
        %v2468 = vpack.c.b16 %v2451, %v2450
        %v2469 = vpack.c.b16 %v2453, %v2452
        %v2470 = vpack.c.b16 %v2455, %v2454
        %v2471 = vpack.c.b16 %v2457, %v2456
        %v2472 = vpack.c.b16 %v2459, %v2458
        %v2473 = vpack.c.b16 %v2461, %v2460
        %v2487 = vsel %vm2237, %v2382, 0
        %2489 = vmatprep.subr.bf16.mxu0 0
        %2490 = vmatpush1.bf16.msra.mxu0 %v2462
        %2491 = vmatprep.subr.bf16.mxu0 0
        %2492 = vmatpush1.bf16.msra.mxu0 %v2463
        %2493 = vmatprep.subr.bf16.mxu0 0
        %2494 = vmatpush1.bf16.msra.mxu0 %v2464
        %2495 = vmatprep.subr.bf16.mxu0 0
        %2496 = vmatpush1.bf16.msra.mxu0 %v2465
        %2497 = vmatprep.subr.bf16.mxu0 0
        %2498 = vmatpush1.bf16.msra.mxu0 %v2466
        %2499 = vmatprep.subr.bf16.mxu0 0
        %2500 = vmatpush1.bf16.msra.mxu0 %v2467
        %2501 = vmatprep.subr.bf16.mxu0 0
        %2502 = vmatpush1.bf16.msra.mxu0 %v2468
        %2503 = vmatprep.subr.bf16.mxu0 0
        %2504 = vmatpush1.bf16.msra.mxu0 %v2469
        %2505 = vmatprep.subr.bf16.mxu0 0
        %2506 = vmatpush1.bf16.msra.mxu0 %v2470
        %2507 = vmatprep.subr.bf16.mxu0 0
        %2508 = vmatpush1.bf16.msra.mxu0 %v2471
        %2509 = vmatprep.subr.bf16.mxu0 0
        %2510 = vmatpush1.bf16.msra.mxu0 %v2472
        %2511 = vmatprep.subr.bf16.mxu0 0
        %2512 = vmatpush1.bf16.msra.mxu0 %v2473
        %2513 = vmatprep.subr.bf16.mxu0 0
        %2514 = vmatpush1.bf16.msra.mxu0 0
        %2515 = vmatprep.subr.bf16.mxu0 0
        %2516 = vmatpush1.bf16.msra.mxu0 0
        %2517 = vmatprep.subr.bf16.mxu0 0
        %2518 = vmatpush1.bf16.msra.mxu0 0
        %2519 = vmatprep.subr.bf16.mxu0 0
        %2520 = vmatpush1.bf16.msra.mxu0 0
        %2521 = vmatprep.mubr.bf16.mxu0 %v2487
        %2522 = vmatmul.mubr.bf16.gmra.mrb[0].mxu0 %v2381
        %v2523 = vpop.f32.mrb[0].mxu0
        %v2524 = vadd.f32 %v2412, %v2523
        %v2525 = vpop.f32.mrb[0].mxu0
        %v2526 = vpop.f32.mrb[0].mxu0
        %v2527 = vpop.f32.mrb[0].mxu0
        %2528 = vdwg.mxu0
        %v2529 = vld [vmem:[#allocation36] sm:$0x1]
        %v2530 = vld [vmem:[#allocation37] sm:$0x1]
        %v2531 = vsel %vm2237, %v2524, 0.0
        %2532 = vadd.xlane.f32.xlu0 %v2531
        %v2533 = vpop.xlane.xlu0 %2532
        %v2534 = vmul.f32 %v2533, %v2344
        %v2535 = vsub.f32 %v2524, %v2534
        %v2536 = vmul.f32 %v2535, %v2535
        %v2537 = vsel %vm2237, %v2536, 0.0
        %2538 = vadd.xlane.f32.xlu0 %v2537
        %v2539 = vpop.xlane.xlu0 %2538
        %v2540 = vmul.f32 %v2539, %v2344
        %v2541 = vadd.f32 %v2540, 1e-05
        %v2542 = vrsqrt.pop %v2541
        %v2543 = vmul.f32 %v2535, %v2542
        %v2545 = vlaneseq
        %v2546 = vshrl.u32 %v2545, 7
        %v2547 = vsub.s32 0, %v2546
        %v2548 = vrot.slane %v2529, %v2547
        %v2550 = vmul.f32 %v2543, %v2548
        %v2552 = vlaneseq
        %v2553 = vshrl.u32 %v2552, 7
        %v2554 = vsub.s32 0, %v2553
        %v2555 = vrot.slane %v2530, %v2554
        %v2557 = vadd.f32 %v2550, %v2555
        %v2558 = vmax.f32 %v2557, 0.0
        %v2559 = vpack.c.bf16 %v2558, %v2558
        %v2560 = vld [vmem:[#allocation39] sm:$0xf]
        %v2561 = vld [vmem:[#allocation39 + $0x4] sm:$0xf]
        %v2562 = vld [vmem:[#allocation39 + $0x8] sm:$0xf]
        %v2563 = vld [vmem:[#allocation39 + $0xc] sm:$0xf]
        %v2564 = vld [vmem:[#allocation39 + $0x10] sm:$0xf]
        %v2565 = vld [vmem:[#allocation39 + $0x14] sm:$0xf]
        %v2566 = vld [vmem:[#allocation39 + $0x18] sm:$0xf]
        %v2567 = vld [vmem:[#allocation39 + $0x1c] sm:$0xf]
        %v2568 = vld [vmem:[#allocation40] sm:$0x1]
        %v2570 = vlaneseq
        %v2571 = vshrl.u32 %v2570, 7
        %v2572 = vsub.s32 0, %v2571
        %v2573 = vrot.slane %v2568, %v2572
        %v2583 = vunpack.c.l.b16 %v2560
        %v2584 = vunpack.c.l.b16 %v2561
        %v2585 = vunpack.c.l.b16 %v2562
        %v2586 = vunpack.c.l.b16 %v2563
        %v2587 = vunpack.c.l.b16 %v2564
        %v2588 = vunpack.c.l.b16 %v2565
        %v2589 = vunpack.c.l.b16 %v2566
        %v2590 = vunpack.c.l.b16 %v2567
        %v2591 = vpack.c.b16 %v2584, %v2583
        %v2592 = vpack.c.b16 %v2586, %v2585
        %v2593 = vpack.c.b16 %v2588, %v2587
        %v2594 = vpack.c.b16 %v2590, %v2589
        %v2600 = vsel %vm2237, %v2559, 0
        %2602 = vmatprep.subr.bf16.mxu0 0
        %2603 = vmatpush1.bf16.msra.mxu0 %v2591
        %2604 = vmatprep.subr.bf16.mxu0 0
        %2605 = vmatpush1.bf16.msra.mxu0 %v2592
        %2606 = vmatprep.subr.bf16.mxu0 0
        %2607 = vmatpush1.bf16.msra.mxu0 %v2593
        %2608 = vmatprep.subr.bf16.mxu0 0
        %2609 = vmatpush1.bf16.msra.mxu0 %v2594
        %2610 = vmatprep.subr.bf16.mxu0 0
        %2611 = vmatpush1.bf16.msra.mxu0 0
        %2612 = vmatprep.subr.bf16.mxu0 0
        %2613 = vmatpush1.bf16.msra.mxu0 0
        %2614 = vmatprep.subr.bf16.mxu0 0
        %2615 = vmatpush1.bf16.msra.mxu0 0
        %2616 = vmatprep.subr.bf16.mxu0 0
        %2617 = vmatpush1.bf16.msra.mxu0 0
        %2618 = vmatprep.subr.bf16.mxu0 0
        %2619 = vmatpush1.bf16.msra.mxu0 0
        %2620 = vmatprep.subr.bf16.mxu0 0
        %2621 = vmatpush1.bf16.msra.mxu0 0
        %2622 = vmatprep.subr.bf16.mxu0 0
        %2623 = vmatpush1.bf16.msra.mxu0 0
        %2624 = vmatprep.subr.bf16.mxu0 0
        %2625 = vmatpush1.bf16.msra.mxu0 0
        %2626 = vmatprep.subr.bf16.mxu0 0
        %2627 = vmatpush1.bf16.msra.mxu0 0
        %2628 = vmatprep.subr.bf16.mxu0 0
        %2629 = vmatpush1.bf16.msra.mxu0 0
        %2630 = vmatprep.subr.bf16.mxu0 0
        %2631 = vmatpush1.bf16.msra.mxu0 0
        %2632 = vmatprep.subr.bf16.mxu0 0
        %2633 = vmatpush1.bf16.msra.mxu0 0
        %2634 = vmatprep.mubr.bf16.mxu0 0
        %2635 = vmatmul.mubr.bf16.gmra.mrb[0].mxu0 %v2600
        %v2636 = vpop.f32.mrb[0].mxu0
        %v2637 = vadd.f32 %v2573, %v2636
        %v2638 = vpop.f32.mrb[0].mxu0
        %v2639 = vpop.f32.mrb[0].mxu0
        %v2640 = vpop.f32.mrb[0].mxu0
        %2641 = vdwg.mxu0
        %2642 = vst [vmem:[%s1110] sm:$0xff] %v2637
        %s2643 = sand.u32 %s577, 1
        %s2644 = scalar_lea.sflag [#allocation6], %s2643
        %s2645 = sand.u32 %s577, 1
        %s2646 = smul.addr %s2645, 8
        %s2647 = scalar_lea.vmem [#allocation42], %s2646
        %s2648 = sand.u32 %s603, 1
        %s2649 = scalar_lea.sflag [#allocation44], %s2648
        %s2650 = sand.u32 %s603, 1
        %s2651 = smul.addr %s2650, 8
        %s2652 = scalar_lea.vmem [#allocation43], %s2651
        // Predicated region
        $region220: #{tpu_custom_call.1} parent=115 // pred_check
          %p2653 = pneg %p587
        $region221: #{tpu_custom_call.1} parent=115 // pred_check_branch
          %2655 = sbr.rel (%p2653) target = $region223
        $region222: #{tpu_custom_call.1} parent=115 // pred_region
          %s2657 = ssub.s32 128, 128
          %2658 = vsyncadd %s2644, %s2657
          %s2659 = smul.addr %s60, 128
          %s2660 = scalar_lea.hbm %s25, %s2659
          %s2662 = sshll.u32 %s2647, 4
          %s2663 = int_to_ptr.vmem [resolvable:$true] %s2662
          %2665 = dma.vmem_to_hbm [thread:$0]  %s2663, 128, %s2660, %s2644
        $region223: #{tpu_custom_call.1} parent=115 // pred_fallthru
          _
        // Predicated region
        $region224: #{tpu_custom_call.1} parent=115 // pred_check
          %p2666 = pneg %p613
        $region225: #{tpu_custom_call.1} parent=115 // pred_check_branch
          %2668 = sbr.rel (%p2666) target = $region227
        $region226: #{tpu_custom_call.1} parent=115 // pred_region
          %s2670 = ssub.s32 128, 128
          %2671 = vsyncadd %s2649, %s2670
          %s2672 = smul.addr %s60, 128
          %s2673 = scalar_lea.hbm %s26, %s2672
          %s2675 = sshll.u32 %s2652, 4
          %s2676 = int_to_ptr.vmem [resolvable:$true] %s2675
          %2678 = dma.vmem_to_hbm [thread:$0]  %s2676, 128, %s2673, %s2649
        $region227: #{tpu_custom_call.1} parent=115 // pred_fallthru
          _
      $region116: #{tpu_custom_call.1} parent=5 // pred_fallthru
        _
      %p2679 = scmp.le.s32.totalorder 2, %s55
      // Predicated region
      $region228: #{tpu_custom_call.1} parent=5 // pred_check
        %p2680 = pneg %p2679
      $region229: #{tpu_custom_call.1} parent=5 // pred_check_branch
        %2682 = sbr.rel (%p2680) target = $region231
      $region230: #{tpu_custom_call.1} parent=5 // pred_region
        %s2683 = ssub.s32 %s55, 2
        // Predicated region
        $region232: #{tpu_custom_call.1} parent=230 // pred_check
          %p2684 = pneg %p593
        $region233: #{tpu_custom_call.1} parent=230 // pred_check_branch
          %2686 = sbr.rel (%p2684) target = $region235
        $region234: #{tpu_custom_call.1} parent=230 // pred_region
          %s2687 = sand.u32 %s578, 1
          %s2688 = scalar_lea.sflag [#allocation6], %s2687
          %s2689 = sand.u32 %s578, 1
          %s2690 = smul.addr %s2689, 8
          %s2691 = scalar_lea.vmem [#allocation42], %s2690
          %2692 = dma.done %s2688, 128
        $region235: #{tpu_custom_call.1} parent=230 // pred_fallthru
          _
        // Predicated region
        $region236: #{tpu_custom_call.1} parent=230 // pred_check
          %p2693 = pneg %p619
        $region237: #{tpu_custom_call.1} parent=230 // pred_check_branch
          %2695 = sbr.rel (%p2693) target = $region239
        $region238: #{tpu_custom_call.1} parent=230 // pred_region
          %s2696 = sand.u32 %s604, 1
          %s2697 = scalar_lea.sflag [#allocation44], %s2696
          %s2698 = sand.u32 %s604, 1
          %s2699 = smul.addr %s2698, 8
          %s2700 = scalar_lea.vmem [#allocation43], %s2699
          %2701 = dma.done %s2697, 128
        $region239: #{tpu_custom_call.1} parent=230 // pred_fallthru
          _
      $region231: #{tpu_custom_call.1} parent=5 // pred_fallthru
        _
    $region6: #{tpu_custom_call.1} parent=1 // loop_footer
      %s59 = sadd.s32 1, %s55
    $region7: #{tpu_custom_call.1} parent=1 // loop_footer_branch
      %54 = sbr.rel target = $region3
    $region8: #{tpu_custom_call.1} parent=1 // loop_exit
      _
    %2702 = vsyncpa [#allocation5], 1
    %s2703 = scalar_lea.sflag [#allocation5], 1
    %2704 = vsyncpa %s2703, 1
    %2705 = vsyncpa [#allocation8], 1
    %2706 = vsyncpa [#allocation11], 1
    %2707 = vsyncpa [#allocation14], 1
    %2708 = vsyncpa [#allocation17], 1
    %2709 = vsyncpa [#allocation20], 1
    %2710 = vsyncpa [#allocation23], 1
    %2711 = vsyncpa [#allocation26], 1
    %2712 = vsyncpa [#allocation29], 1
    %2713 = vsyncpa [#allocation32], 1
    %2714 = vsyncpa [#allocation35], 1
    %2715 = vsyncpa [#allocation38], 1
    %2716 = vsyncpa [#allocation41], 1
    %2717 = vsyncpa [#allocation6], 1
    %s2718 = scalar_lea.sflag [#allocation6], 1
    %2719 = vsyncpa %s2718, 1
    %2720 = vsyncpa [#allocation44], 1
    %s2721 = scalar_lea.sflag [#allocation44], 1
    %2722 = vsyncpa %s2721, 1

</llo_original>
